<compile_context>
chip_gen: v6e
topology: v6e:2x2x1
jax: 0.10.0
libtpu: 0.0.40
codegen_flags: <defaults>
</compile_context>

<pallas_src>
import jax
import jax.numpy as jnp
from jax.experimental import pallas as pl
from jax.experimental.pallas import tpu as pltpu
import numpy as np


def pricenet_kernel(x_ref, v_ref, s_ref, o_ref):
    # x_ref : (TB, D)  batch tile (batch on sublanes, D on lanes)
    # v_ref : (1, D)   collapsed weight vector v = (prod_i (I - W_i^T)) @ w_final^T
    # s_ref : (1, 1)   collapsed scalar bias (SMEM)
    # o_ref : (1, TB)  lane-dense output row for this batch tile
    x = x_ref[...].astype(jnp.float32)                       # upcast (free if already f32)
    v = v_ref[...].astype(jnp.float32)                       # (1, D) broadcast over sublanes
    y = jnp.sum(x * v, axis=-1) + s_ref[0, 0]                # VPU mul + lane (XLU) reduce
    o_ref[...] = y.reshape(1, -1)                            # lane-dense store


def prepare_pricenet_params(weights, biases, w_final, b_final):
    """Collapse the whole (purely affine) network into y = x @ v + s.

    Call ONCE at parameter-load time (outside the per-call hot path).
      out - (out @ W_i^T + b_i) == out @ (I - W_i^T) + (-b_i)
    Chaining L such affine maps and the final Linear(D, 1) gives a single
    (D,) vector v and scalar s.
    """
    L, D, _ = weights.shape
    eye = jnp.eye(D, dtype=jnp.float32)
    M = eye
    c = jnp.zeros((D,), dtype=jnp.float32)
    for i in range(L):
        A = eye - weights[i].astype(jnp.float32).T            # (D, D)
        M = M @ A
        c = c @ A - biases[i].astype(jnp.float32)
    wf = w_final.astype(jnp.float32).reshape(D)                # (D,)
    v = (M @ wf).reshape(1, D)                                 # (1, D)
    s = (c @ wf + b_final.astype(jnp.float32).reshape(())).reshape(1, 1)  # (1, 1) scalar
    return v, s


def pricenet_forward(x, params, *, tb=1024, input_dtype=jnp.float32):
    """x: (B, D).  params: output of prepare_pricenet_params.  Returns (B,) float32.

    input_dtype=jnp.bfloat16 halves HBM read bytes on v6e/v7x (the kernel
    accumulates in f32 regardless).
    """
    v, s = params
    B, D = x.shape

    # Don't use a tile bigger than the (128-rounded) batch; pad ragged batches.
    b128 = ((B + 127) // 128) * 128
    tb = max(128, min(tb, b128))
    b_pad = ((B + tb - 1) // tb) * tb
    x_in = x.astype(input_dtype)
    if b_pad != B:
        x_in = jnp.pad(x_in, ((0, b_pad - B), (0, 0)))
    grid = (b_pad // tb,)

    out = pl.pallas_call(
        pricenet_kernel,
        out_shape=jax.ShapeDtypeStruct((1, b_pad), jnp.float32),
        grid=grid,
        in_specs=[
            pl.BlockSpec((tb, D), lambda i: (i, 0)),            # x: pipelined batch tiles
            pl.BlockSpec((1, D), lambda i: (0, 0)),             # v: VMEM-resident
            pl.BlockSpec(memory_space=pltpu.MemorySpace.SMEM),  # s: scalar in SMEM
        ],
        out_specs=pl.BlockSpec((1, tb), lambda i: (0, i)),      # lane-dense output row
        compiler_params=pltpu.CompilerParams(
            dimension_semantics=("parallel",),                  # batch axis -> megacore/v7x TCs
        ),
    )(x_in, v, s)
    return out[0, :B]


def pricenet_reference(x, weights, biases, w_final, b_final):
    # Unfolded math == exact PyTorch forward semantics.
    out = x.astype(jnp.float32)
    for i in range(weights.shape[0]):
        h = out @ weights[i].T + biases[i]
        out = out - h
    return (out @ w_final.T + b_final)[:, 0]


if __name__ == "__main__":
    B = 300        # ragged batch -> exercises padding + multi-step grid (with tb=128)
    D = 32         # input_dim
    L = 3          # num_layers (module default)

    key = jax.random.PRNGKey(0)
    kx, kw, kb, kwf, kbf = jax.random.split(key, 5)

    # Deterministic synthetic parameters (uniform +/- 1/sqrt(fan_in), like nn.Linear init).
    bound = 1.0 / np.sqrt(D)
    x = jax.random.normal(kx, (B, D), dtype=jnp.float32)
    weights = jax.random.uniform(kw, (L, D, D), minval=-bound, maxval=bound, dtype=jnp.float32)
    biases = jax.random.uniform(kb, (L, D), minval=-bound, maxval=bound, dtype=jnp.float32)
    w_final = jax.random.uniform(kwf, (1, D), minval=-bound, maxval=bound, dtype=jnp.float32)
    b_final = jax.random.uniform(kbf, (1,), minval=-bound, maxval=bound, dtype=jnp.float32)

    params = prepare_pricenet_params(weights, biases, w_final, b_final)
    y_ref = jax.block_until_ready(pricenet_reference(x, weights, biases, w_final, b_final))

    # Default (large) tile: single grid step here.
    y_big = jax.block_until_ready(pricenet_forward(x, params))
    # Small tile: exercises multi-step grid + ragged-tail padding path.
    y_small = jax.block_until_ready(pricenet_forward(x, params, tb=128))

    assert y_big.shape == (B,) and y_small.shape == (B,)
    # The affine collapse changes FP association vs. the unfolded reference;
    # tolerance widened accordingly (grows mildly with L and D).
    np.testing.assert_allclose(np.asarray(y_big), np.asarray(y_ref), rtol=2e-4, atol=2e-4)
    np.testing.assert_allclose(np.asarray(y_small), np.asarray(y_ref), rtol=2e-4, atol=2e-4)
    np.testing.assert_allclose(np.asarray(y_big), np.asarray(y_small), rtol=1e-6, atol=1e-6)

    print("KERNEL_OK")
</pallas_src>

<mosaic_0001>
module attributes {stable_mosaic.version = 11 : i64} {
  func.func @pricenet_kernel(%arg0: i32, %arg1: memref<384x32xf32, #tpu.memory_space<vmem>>, %arg2: memref<1x32xf32, #tpu.memory_space<vmem>>, %arg3: memref<1x1xf32, #tpu.memory_space<smem>>, %arg4: memref<1x384xf32, #tpu.memory_space<vmem>>) attributes {dimension_semantics = [#tpu.dimension_semantics<parallel>], iteration_bounds = array<i64: 1>, scalar_prefetch = 0 : i64, scratch_operands = 0 : i64, tpu.core_type = #tpu.core_type<tc>, window_params = [{transform_indices = @transform_0, window_bounds = array<i64: 384, 32>}, {pipeline_mode = #tpu.pipeline_mode<synchronous>, transform_indices = @transform_1, window_bounds = array<i64: 1, 32>}, {transform_indices = @transform_2, window_bounds = array<i64: 1, 1>}, {transform_indices = @transform_3, window_bounds = array<i64: 1, 384>}]} {
    %c0 = arith.constant 0 : index
    %c0_0 = arith.constant 0 : index
    %0 = vector.load %arg1[%c0, %c0_0] : memref<384x32xf32, #tpu.memory_space<vmem>>, vector<384x32xf32>
    %c0_1 = arith.constant 0 : index
    %c0_2 = arith.constant 0 : index
    %1 = vector.load %arg2[%c0_1, %c0_2] : memref<1x32xf32, #tpu.memory_space<vmem>>, vector<1x32xf32>
    %2 = vector.broadcast %1 : vector<1x32xf32> to vector<384x32xf32>
    %3 = arith.mulf %0, %2 : vector<384x32xf32>
    %cst = arith.constant dense<0.000000e+00> : vector<384xf32>
    %4 = vector.multi_reduction <add>, %3, %cst [1] : vector<384x32xf32> to vector<384xf32>
    %c0_3 = arith.constant 0 : index
    %c0_4 = arith.constant 0 : index
    %5 = memref.load %arg3[%c0_3, %c0_4] : memref<1x1xf32, #tpu.memory_space<smem>>
    %6 = vector.broadcast %5 : f32 to vector<384xf32>
    %7 = arith.addf %4, %6 : vector<384xf32>
    %8 = vector.shape_cast %7 : vector<384xf32> to vector<1x384xf32>
    %c0_5 = arith.constant 0 : index
    %c0_6 = arith.constant 0 : index
    %9 = vector.load %arg4[%c0_5, %c0_6] : memref<1x384xf32, #tpu.memory_space<vmem>>, vector<1x384xf32>
    tpu.vector_store %arg4[%c0_5, %c0_6], %8 {strides = array<i32>} : memref<1x384xf32, #tpu.memory_space<vmem>>, vector<1x384xf32>,
    return
  }
  func.func @transform_0(%arg0: i32) -> (i32, i32) {
    %c0_i32 = arith.constant 0 : i32
    %c0_i32_0 = arith.constant 0 : i32
    return %arg0, %c0_i32 : i32, i32
  }
  func.func @transform_1(%arg0: i32) -> (i32, i32) {
    %c0_i32 = arith.constant 0 : i32
    %c0_i32_0 = arith.constant 0 : i32
    %c0_i32_1 = arith.constant 0 : i32
    return %c0_i32, %c0_i32_0 : i32, i32
  }
  func.func @transform_2(%arg0: i32) -> (i32, i32) {
    %c0_i32 = arith.constant 0 : i32
    %c0_i32_0 = arith.constant 0 : i32
    %c0_i32_1 = arith.constant 0 : i32
    return %c0_i32, %c0_i32_0 : i32, i32
  }
  func.func @transform_3(%arg0: i32) -> (i32, i32) {
    %c0_i32 = arith.constant 0 : i32
    %c0_i32_0 = arith.constant 0 : i32
    return %c0_i32, %arg0 : i32, i32
  }
}

</mosaic_0001>

<llo_original>
// kernel: tpu_custom_call.1
$region0: #{tpu_custom_call.1}
  #allocation0 [shape = 'u32[]', space=smem, size = 0x4, offset = 0x4, fixed_abs, tag = 'smem constant byte address 0x4 - core index']
  #allocation1 [shape = 'u32[144,128]{1,0:T(1,128)}', space=vmem, size = 0x12000, scoped, tag = 'internal scratch']
  #allocation2 [shape = 'f32[1,1]{1,0:T(1,128)S(6)}', space=smem, size = 0x200, scoped, tag = 'scoped memory for tpu_custom_call.1']
  %s0 = inlined_call_operand.vmem [shape: f32[384,32], index: 0, kind: input, shape index: {}]
  %s1 = inlined_call_operand.vmem [shape: f32[1,32], index: 1, kind: input, shape index: {}]
  %s2 = inlined_call_operand.<no memory space> [shape: f32[1,1], index: 2, kind: input, shape index: {}]
  %s3 = inlined_call_operand.hbm [shape: f32[1,384], index: 3, kind: output, shape index: {}]
  %s4 = sld [smem:[#allocation0]]
  $region22: #{tpu_custom_call.1} parent=0
    _
  %s6 = ssub.s32 1, %s4
  %s7 = scalar_select 0, %s6, %s4
  %8 = sst [smem:[#allocation2]] %s2
  $region1: #{tpu_custom_call.1} parent=0
    #allocation3 [shape = 'u8[1536]{0}', space=vmem, size = 0x800, scoped, tag = 'output window, operand 0, single buffered']
    #allocation4 [shape = 's32[1]{0}', space=sflag, size = 0x4, scoped, tag = 'scoped memory for tpu_custom_call.1']
    %9 = vsyncpa [#allocation4], 0
    // Predicated region
    $region2: #{tpu_custom_call.1} parent=1 // pred_check
      _
    $region3: #{tpu_custom_call.1} parent=1 // pred_check_branch
      %11 = sbr.rel (0) target = $region5
    $region4: #{tpu_custom_call.1} parent=1 // pred_region
      _
    $region5: #{tpu_custom_call.1} parent=1 // pred_fallthru
      _
    // Predicated region
    $region6: #{tpu_custom_call.1} parent=1 // pred_check
      _
    $region7: #{tpu_custom_call.1} parent=1 // pred_check_branch
      %13 = sbr.rel (0) target = $region9
    $region8: #{tpu_custom_call.1} parent=1 // pred_region
      _
    $region9: #{tpu_custom_call.1} parent=1 // pred_fallthru
      _
    // Predicated region
    $region10: #{tpu_custom_call.1} parent=1 // pred_check
      _
    $region11: #{tpu_custom_call.1} parent=1 // pred_check_branch
      %15 = sbr.rel (0) target = $region13
    $region12: #{tpu_custom_call.1} parent=1 // pred_region
      _
    $region13: #{tpu_custom_call.1} parent=1 // pred_fallthru
      _
    %v16 = vld [vmem:[%s0] sm:$0xff]
    %v17 = vld [vmem:[%s0 + $0x8] sm:$0xff]
    %v18 = vld [vmem:[%s0 + $0x10] sm:$0xff]
    %v19 = vld [vmem:[%s0 + $0x18] sm:$0xff]
    %v20 = vld [vmem:[%s0 + $0x20] sm:$0xff]
    %v21 = vld [vmem:[%s0 + $0x28] sm:$0xff]
    %v22 = vld [vmem:[%s0 + $0x30] sm:$0xff]
    %v23 = vld [vmem:[%s0 + $0x38] sm:$0xff]
    %v24 = vld [vmem:[%s0 + $0x40] sm:$0xff]
    %v25 = vld [vmem:[%s0 + $0x48] sm:$0xff]
    %v26 = vld [vmem:[%s0 + $0x50] sm:$0xff]
    %v27 = vld [vmem:[%s0 + $0x58] sm:$0xff]
    %v28 = vld [vmem:[%s0 + $0x60] sm:$0xff]
    %v29 = vld [vmem:[%s0 + $0x68] sm:$0xff]
    %v30 = vld [vmem:[%s0 + $0x70] sm:$0xff]
    %v31 = vld [vmem:[%s0 + $0x78] sm:$0xff]
    %v32 = vld [vmem:[%s0 + $0x80] sm:$0xff]
    %v33 = vld [vmem:[%s0 + $0x88] sm:$0xff]
    %v34 = vld [vmem:[%s0 + $0x90] sm:$0xff]
    %v35 = vld [vmem:[%s0 + $0x98] sm:$0xff]
    %v36 = vld [vmem:[%s0 + $0xa0] sm:$0xff]
    %v37 = vld [vmem:[%s0 + $0xa8] sm:$0xff]
    %v38 = vld [vmem:[%s0 + $0xb0] sm:$0xff]
    %v39 = vld [vmem:[%s0 + $0xb8] sm:$0xff]
    %v40 = vld [vmem:[%s0 + $0xc0] sm:$0xff]
    %v41 = vld [vmem:[%s0 + $0xc8] sm:$0xff]
    %v42 = vld [vmem:[%s0 + $0xd0] sm:$0xff]
    %v43 = vld [vmem:[%s0 + $0xd8] sm:$0xff]
    %v44 = vld [vmem:[%s0 + $0xe0] sm:$0xff]
    %v45 = vld [vmem:[%s0 + $0xe8] sm:$0xff]
    %v46 = vld [vmem:[%s0 + $0xf0] sm:$0xff]
    %v47 = vld [vmem:[%s0 + $0xf8] sm:$0xff]
    %v48 = vld [vmem:[%s0 + $0x100] sm:$0xff]
    %v49 = vld [vmem:[%s0 + $0x108] sm:$0xff]
    %v50 = vld [vmem:[%s0 + $0x110] sm:$0xff]
    %v51 = vld [vmem:[%s0 + $0x118] sm:$0xff]
    %v52 = vld [vmem:[%s0 + $0x120] sm:$0xff]
    %v53 = vld [vmem:[%s0 + $0x128] sm:$0xff]
    %v54 = vld [vmem:[%s0 + $0x130] sm:$0xff]
    %v55 = vld [vmem:[%s0 + $0x138] sm:$0xff]
    %v56 = vld [vmem:[%s0 + $0x140] sm:$0xff]
    %v57 = vld [vmem:[%s0 + $0x148] sm:$0xff]
    %v58 = vld [vmem:[%s0 + $0x150] sm:$0xff]
    %v59 = vld [vmem:[%s0 + $0x158] sm:$0xff]
    %v60 = vld [vmem:[%s0 + $0x160] sm:$0xff]
    %v61 = vld [vmem:[%s0 + $0x168] sm:$0xff]
    %v62 = vld [vmem:[%s0 + $0x170] sm:$0xff]
    %v63 = vld [vmem:[%s0 + $0x178] sm:$0xff]
    %v64 = vld [vmem:[%s1] sm:$0x1]
    %v66 = vlaneseq
    %v67 = vshrl.u32 %v66, 7
    %v68 = vsub.s32 0, %v67
    %v69 = vrot.slane %v64, %v68
    %v71 = vmul.f32 %v16, %v69
    %v72 = vmul.f32 %v17, %v69
    %v73 = vmul.f32 %v18, %v69
    %v74 = vmul.f32 %v19, %v69
    %v75 = vmul.f32 %v20, %v69
    %v76 = vmul.f32 %v21, %v69
    %v77 = vmul.f32 %v22, %v69
    %v78 = vmul.f32 %v23, %v69
    %v79 = vmul.f32 %v24, %v69
    %v80 = vmul.f32 %v25, %v69
    %v81 = vmul.f32 %v26, %v69
    %v82 = vmul.f32 %v27, %v69
    %v83 = vmul.f32 %v28, %v69
    %v84 = vmul.f32 %v29, %v69
    %v85 = vmul.f32 %v30, %v69
    %v86 = vmul.f32 %v31, %v69
    %v87 = vmul.f32 %v32, %v69
    %v88 = vmul.f32 %v33, %v69
    %v89 = vmul.f32 %v34, %v69
    %v90 = vmul.f32 %v35, %v69
    %v91 = vmul.f32 %v36, %v69
    %v92 = vmul.f32 %v37, %v69
    %v93 = vmul.f32 %v38, %v69
    %v94 = vmul.f32 %v39, %v69
    %v95 = vmul.f32 %v40, %v69
    %v96 = vmul.f32 %v41, %v69
    %v97 = vmul.f32 %v42, %v69
    %v98 = vmul.f32 %v43, %v69
    %v99 = vmul.f32 %v44, %v69
    %v100 = vmul.f32 %v45, %v69
    %v101 = vmul.f32 %v46, %v69
    %v102 = vmul.f32 %v47, %v69
    %v103 = vmul.f32 %v48, %v69
    %v104 = vmul.f32 %v49, %v69
    %v105 = vmul.f32 %v50, %v69
    %v106 = vmul.f32 %v51, %v69
    %v107 = vmul.f32 %v52, %v69
    %v108 = vmul.f32 %v53, %v69
    %v109 = vmul.f32 %v54, %v69
    %v110 = vmul.f32 %v55, %v69
    %v111 = vmul.f32 %v56, %v69
    %v112 = vmul.f32 %v57, %v69
    %v113 = vmul.f32 %v58, %v69
    %v114 = vmul.f32 %v59, %v69
    %v115 = vmul.f32 %v60, %v69
    %v116 = vmul.f32 %v61, %v69
    %v117 = vmul.f32 %v62, %v69
    %v118 = vmul.f32 %v63, %v69
    %vm119 = vcmask 261120
    %v120 = vsel %vm119, %v71, 0.0
    %121 = vadd.xlane.f32.xlu0 %v120
    %v122 = vpop.xlane.xlu0 %121
    %v123 = vsel %vm119, %v72, 0.0
    %124 = vadd.xlane.f32.xlu0 %v123
    %v125 = vpop.xlane.xlu0 %124
    %v126 = vsel %vm119, %v73, 0.0
    %127 = vadd.xlane.f32.xlu0 %v126
    %v128 = vpop.xlane.xlu0 %127
    %v129 = vsel %vm119, %v74, 0.0
    %130 = vadd.xlane.f32.xlu0 %v129
    %v131 = vpop.xlane.xlu0 %130
    %v132 = vsel %vm119, %v75, 0.0
    %133 = vadd.xlane.f32.xlu0 %v132
    %v134 = vpop.xlane.xlu0 %133
    %v135 = vsel %vm119, %v76, 0.0
    %136 = vadd.xlane.f32.xlu0 %v135
    %v137 = vpop.xlane.xlu0 %136
    %v138 = vsel %vm119, %v77, 0.0
    %139 = vadd.xlane.f32.xlu0 %v138
    %v140 = vpop.xlane.xlu0 %139
    %v141 = vsel %vm119, %v78, 0.0
    %142 = vadd.xlane.f32.xlu0 %v141
    %v143 = vpop.xlane.xlu0 %142
    %v144 = vsel %vm119, %v79, 0.0
    %145 = vadd.xlane.f32.xlu0 %v144
    %v146 = vpop.xlane.xlu0 %145
    %v147 = vsel %vm119, %v80, 0.0
    %148 = vadd.xlane.f32.xlu0 %v147
    %v149 = vpop.xlane.xlu0 %148
    %v150 = vsel %vm119, %v81, 0.0
    %151 = vadd.xlane.f32.xlu0 %v150
    %v152 = vpop.xlane.xlu0 %151
    %v153 = vsel %vm119, %v82, 0.0
    %154 = vadd.xlane.f32.xlu0 %v153
    %v155 = vpop.xlane.xlu0 %154
    %v156 = vsel %vm119, %v83, 0.0
    %157 = vadd.xlane.f32.xlu0 %v156
    %v158 = vpop.xlane.xlu0 %157
    %v159 = vsel %vm119, %v84, 0.0
    %160 = vadd.xlane.f32.xlu0 %v159
    %v161 = vpop.xlane.xlu0 %160
    %v162 = vsel %vm119, %v85, 0.0
    %163 = vadd.xlane.f32.xlu0 %v162
    %v164 = vpop.xlane.xlu0 %163
    %v165 = vsel %vm119, %v86, 0.0
    %166 = vadd.xlane.f32.xlu0 %v165
    %v167 = vpop.xlane.xlu0 %166
    %v168 = vsel %vm119, %v87, 0.0
    %169 = vadd.xlane.f32.xlu0 %v168
    %v170 = vpop.xlane.xlu0 %169
    %v171 = vsel %vm119, %v88, 0.0
    %172 = vadd.xlane.f32.xlu0 %v171
    %v173 = vpop.xlane.xlu0 %172
    %v174 = vsel %vm119, %v89, 0.0
    %175 = vadd.xlane.f32.xlu0 %v174
    %v176 = vpop.xlane.xlu0 %175
    %v177 = vsel %vm119, %v90, 0.0
    %178 = vadd.xlane.f32.xlu0 %v177
    %v179 = vpop.xlane.xlu0 %178
    %v180 = vsel %vm119, %v91, 0.0
    %181 = vadd.xlane.f32.xlu0 %v180
    %v182 = vpop.xlane.xlu0 %181
    %v183 = vsel %vm119, %v92, 0.0
    %184 = vadd.xlane.f32.xlu0 %v183
    %v185 = vpop.xlane.xlu0 %184
    %v186 = vsel %vm119, %v93, 0.0
    %187 = vadd.xlane.f32.xlu0 %v186
    %v188 = vpop.xlane.xlu0 %187
    %v189 = vsel %vm119, %v94, 0.0
    %190 = vadd.xlane.f32.xlu0 %v189
    %v191 = vpop.xlane.xlu0 %190
    %v192 = vsel %vm119, %v95, 0.0
    %193 = vadd.xlane.f32.xlu0 %v192
    %v194 = vpop.xlane.xlu0 %193
    %v195 = vsel %vm119, %v96, 0.0
    %196 = vadd.xlane.f32.xlu0 %v195
    %v197 = vpop.xlane.xlu0 %196
    %v198 = vsel %vm119, %v97, 0.0
    %199 = vadd.xlane.f32.xlu0 %v198
    %v200 = vpop.xlane.xlu0 %199
    %v201 = vsel %vm119, %v98, 0.0
    %202 = vadd.xlane.f32.xlu0 %v201
    %v203 = vpop.xlane.xlu0 %202
    %v204 = vsel %vm119, %v99, 0.0
    %205 = vadd.xlane.f32.xlu0 %v204
    %v206 = vpop.xlane.xlu0 %205
    %v207 = vsel %vm119, %v100, 0.0
    %208 = vadd.xlane.f32.xlu0 %v207
    %v209 = vpop.xlane.xlu0 %208
    %v210 = vsel %vm119, %v101, 0.0
    %211 = vadd.xlane.f32.xlu0 %v210
    %v212 = vpop.xlane.xlu0 %211
    %v213 = vsel %vm119, %v102, 0.0
    %214 = vadd.xlane.f32.xlu0 %v213
    %v215 = vpop.xlane.xlu0 %214
    %v216 = vsel %vm119, %v103, 0.0
    %217 = vadd.xlane.f32.xlu0 %v216
    %v218 = vpop.xlane.xlu0 %217
    %v219 = vsel %vm119, %v104, 0.0
    %220 = vadd.xlane.f32.xlu0 %v219
    %v221 = vpop.xlane.xlu0 %220
    %v222 = vsel %vm119, %v105, 0.0
    %223 = vadd.xlane.f32.xlu0 %v222
    %v224 = vpop.xlane.xlu0 %223
    %v225 = vsel %vm119, %v106, 0.0
    %226 = vadd.xlane.f32.xlu0 %v225
    %v227 = vpop.xlane.xlu0 %226
    %v228 = vsel %vm119, %v107, 0.0
    %229 = vadd.xlane.f32.xlu0 %v228
    %v230 = vpop.xlane.xlu0 %229
    %v231 = vsel %vm119, %v108, 0.0
    %232 = vadd.xlane.f32.xlu0 %v231
    %v233 = vpop.xlane.xlu0 %232
    %v234 = vsel %vm119, %v109, 0.0
    %235 = vadd.xlane.f32.xlu0 %v234
    %v236 = vpop.xlane.xlu0 %235
    %v237 = vsel %vm119, %v110, 0.0
    %238 = vadd.xlane.f32.xlu0 %v237
    %v239 = vpop.xlane.xlu0 %238
    %v240 = vsel %vm119, %v111, 0.0
    %241 = vadd.xlane.f32.xlu0 %v240
    %v242 = vpop.xlane.xlu0 %241
    %v243 = vsel %vm119, %v112, 0.0
    %244 = vadd.xlane.f32.xlu0 %v243
    %v245 = vpop.xlane.xlu0 %244
    %v246 = vsel %vm119, %v113, 0.0
    %247 = vadd.xlane.f32.xlu0 %v246
    %v248 = vpop.xlane.xlu0 %247
    %v249 = vsel %vm119, %v114, 0.0
    %250 = vadd.xlane.f32.xlu0 %v249
    %v251 = vpop.xlane.xlu0 %250
    %v252 = vsel %vm119, %v115, 0.0
    %253 = vadd.xlane.f32.xlu0 %v252
    %v254 = vpop.xlane.xlu0 %253
    %v255 = vsel %vm119, %v116, 0.0
    %256 = vadd.xlane.f32.xlu0 %v255
    %v257 = vpop.xlane.xlu0 %256
    %v258 = vsel %vm119, %v117, 0.0
    %259 = vadd.xlane.f32.xlu0 %v258
    %v260 = vpop.xlane.xlu0 %259
    %v261 = vsel %vm119, %v118, 0.0
    %262 = vadd.xlane.f32.xlu0 %v261
    %v263 = vpop.xlane.xlu0 %262
    %s264 = sld [smem:[#allocation2]]
    %v265 = vstv %s264
    %v266 = vadd.f32 %v122, %v265
    %v267 = vadd.f32 %v125, %v265
    %v268 = vadd.f32 %v128, %v265
    %v269 = vadd.f32 %v131, %v265
    %v270 = vadd.f32 %v134, %v265
    %v271 = vadd.f32 %v137, %v265
    %v272 = vadd.f32 %v140, %v265
    %v273 = vadd.f32 %v143, %v265
    %v274 = vadd.f32 %v146, %v265
    %v275 = vadd.f32 %v149, %v265
    %v276 = vadd.f32 %v152, %v265
    %v277 = vadd.f32 %v155, %v265
    %v278 = vadd.f32 %v158, %v265
    %v279 = vadd.f32 %v161, %v265
    %v280 = vadd.f32 %v164, %v265
    %v281 = vadd.f32 %v167, %v265
    %v282 = vadd.f32 %v170, %v265
    %v283 = vadd.f32 %v173, %v265
    %v284 = vadd.f32 %v176, %v265
    %v285 = vadd.f32 %v179, %v265
    %v286 = vadd.f32 %v182, %v265
    %v287 = vadd.f32 %v185, %v265
    %v288 = vadd.f32 %v188, %v265
    %v289 = vadd.f32 %v191, %v265
    %v290 = vadd.f32 %v194, %v265
    %v291 = vadd.f32 %v197, %v265
    %v292 = vadd.f32 %v200, %v265
    %v293 = vadd.f32 %v203, %v265
    %v294 = vadd.f32 %v206, %v265
    %v295 = vadd.f32 %v209, %v265
    %v296 = vadd.f32 %v212, %v265
    %v297 = vadd.f32 %v215, %v265
    %v298 = vadd.f32 %v218, %v265
    %v299 = vadd.f32 %v221, %v265
    %v300 = vadd.f32 %v224, %v265
    %v301 = vadd.f32 %v227, %v265
    %v302 = vadd.f32 %v230, %v265
    %v303 = vadd.f32 %v233, %v265
    %v304 = vadd.f32 %v236, %v265
    %v305 = vadd.f32 %v239, %v265
    %v306 = vadd.f32 %v242, %v265
    %v307 = vadd.f32 %v245, %v265
    %v308 = vadd.f32 %v248, %v265
    %v309 = vadd.f32 %v251, %v265
    %v310 = vadd.f32 %v254, %v265
    %v311 = vadd.f32 %v257, %v265
    %v312 = vadd.f32 %v260, %v265
    %v313 = vadd.f32 %v263, %v265
    %v362 = vlaneseq
    %v363 = vshrl.u32 %v362, 7
    %v364 = vsub.s32 0, %v363
    %v365 = vrot.slane %v266, %v364
    %v366 = vlaneseq
    %v367 = vshrl.u32 %v366, 7
    %v368 = vsub.s32 1, %v367
    %v369 = vrot.slane %v266, %v368
    %v370 = vlaneseq
    %v371 = vshrl.u32 %v370, 7
    %v372 = vsub.s32 2, %v371
    %v373 = vrot.slane %v266, %v372
    %v374 = vlaneseq
    %v375 = vshrl.u32 %v374, 7
    %v376 = vsub.s32 3, %v375
    %v377 = vrot.slane %v266, %v376
    %v378 = vlaneseq
    %v379 = vshrl.u32 %v378, 7
    %v380 = vsub.s32 4, %v379
    %v381 = vrot.slane %v266, %v380
    %v382 = vlaneseq
    %v383 = vshrl.u32 %v382, 7
    %v384 = vsub.s32 5, %v383
    %v385 = vrot.slane %v266, %v384
    %v386 = vlaneseq
    %v387 = vshrl.u32 %v386, 7
    %v388 = vsub.s32 6, %v387
    %v389 = vrot.slane %v266, %v388
    %v390 = vlaneseq
    %v391 = vshrl.u32 %v390, 7
    %v392 = vsub.s32 7, %v391
    %v393 = vrot.slane %v266, %v392
    %v394 = vlaneseq
    %v395 = vshrl.u32 %v394, 7
    %v396 = vsub.s32 0, %v395
    %v397 = vrot.slane %v267, %v396
    %v398 = vlaneseq
    %v399 = vshrl.u32 %v398, 7
    %v400 = vsub.s32 1, %v399
    %v401 = vrot.slane %v267, %v400
    %v402 = vlaneseq
    %v403 = vshrl.u32 %v402, 7
    %v404 = vsub.s32 2, %v403
    %v405 = vrot.slane %v267, %v404
    %v406 = vlaneseq
    %v407 = vshrl.u32 %v406, 7
    %v408 = vsub.s32 3, %v407
    %v409 = vrot.slane %v267, %v408
    %v410 = vlaneseq
    %v411 = vshrl.u32 %v410, 7
    %v412 = vsub.s32 4, %v411
    %v413 = vrot.slane %v267, %v412
    %v414 = vlaneseq
    %v415 = vshrl.u32 %v414, 7
    %v416 = vsub.s32 5, %v415
    %v417 = vrot.slane %v267, %v416
    %v418 = vlaneseq
    %v419 = vshrl.u32 %v418, 7
    %v420 = vsub.s32 6, %v419
    %v421 = vrot.slane %v267, %v420
    %v422 = vlaneseq
    %v423 = vshrl.u32 %v422, 7
    %v424 = vsub.s32 7, %v423
    %v425 = vrot.slane %v267, %v424
    %v426 = vlaneseq
    %v427 = vshrl.u32 %v426, 7
    %v428 = vsub.s32 0, %v427
    %v429 = vrot.slane %v268, %v428
    %v430 = vlaneseq
    %v431 = vshrl.u32 %v430, 7
    %v432 = vsub.s32 1, %v431
    %v433 = vrot.slane %v268, %v432
    %v434 = vlaneseq
    %v435 = vshrl.u32 %v434, 7
    %v436 = vsub.s32 2, %v435
    %v437 = vrot.slane %v268, %v436
    %v438 = vlaneseq
    %v439 = vshrl.u32 %v438, 7
    %v440 = vsub.s32 3, %v439
    %v441 = vrot.slane %v268, %v440
    %v442 = vlaneseq
    %v443 = vshrl.u32 %v442, 7
    %v444 = vsub.s32 4, %v443
    %v445 = vrot.slane %v268, %v444
    %v446 = vlaneseq
    %v447 = vshrl.u32 %v446, 7
    %v448 = vsub.s32 5, %v447
    %v449 = vrot.slane %v268, %v448
    %v450 = vlaneseq
    %v451 = vshrl.u32 %v450, 7
    %v452 = vsub.s32 6, %v451
    %v453 = vrot.slane %v268, %v452
    %v454 = vlaneseq
    %v455 = vshrl.u32 %v454, 7
    %v456 = vsub.s32 7, %v455
    %v457 = vrot.slane %v268, %v456
    %v458 = vlaneseq
    %v459 = vshrl.u32 %v458, 7
    %v460 = vsub.s32 0, %v459
    %v461 = vrot.slane %v269, %v460
    %v462 = vlaneseq
    %v463 = vshrl.u32 %v462, 7
    %v464 = vsub.s32 1, %v463
    %v465 = vrot.slane %v269, %v464
    %v466 = vlaneseq
    %v467 = vshrl.u32 %v466, 7
    %v468 = vsub.s32 2, %v467
    %v469 = vrot.slane %v269, %v468
    %v470 = vlaneseq
    %v471 = vshrl.u32 %v470, 7
    %v472 = vsub.s32 3, %v471
    %v473 = vrot.slane %v269, %v472
    %v474 = vlaneseq
    %v475 = vshrl.u32 %v474, 7
    %v476 = vsub.s32 4, %v475
    %v477 = vrot.slane %v269, %v476
    %v478 = vlaneseq
    %v479 = vshrl.u32 %v478, 7
    %v480 = vsub.s32 5, %v479
    %v481 = vrot.slane %v269, %v480
    %v482 = vlaneseq
    %v483 = vshrl.u32 %v482, 7
    %v484 = vsub.s32 6, %v483
    %v485 = vrot.slane %v269, %v484
    %v486 = vlaneseq
    %v487 = vshrl.u32 %v486, 7
    %v488 = vsub.s32 7, %v487
    %v489 = vrot.slane %v269, %v488
    %v490 = vlaneseq
    %v491 = vshrl.u32 %v490, 7
    %v492 = vsub.s32 0, %v491
    %v493 = vrot.slane %v270, %v492
    %v494 = vlaneseq
    %v495 = vshrl.u32 %v494, 7
    %v496 = vsub.s32 1, %v495
    %v497 = vrot.slane %v270, %v496
    %v498 = vlaneseq
    %v499 = vshrl.u32 %v498, 7
    %v500 = vsub.s32 2, %v499
    %v501 = vrot.slane %v270, %v500
    %v502 = vlaneseq
    %v503 = vshrl.u32 %v502, 7
    %v504 = vsub.s32 3, %v503
    %v505 = vrot.slane %v270, %v504
    %v506 = vlaneseq
    %v507 = vshrl.u32 %v506, 7
    %v508 = vsub.s32 4, %v507
    %v509 = vrot.slane %v270, %v508
    %v510 = vlaneseq
    %v511 = vshrl.u32 %v510, 7
    %v512 = vsub.s32 5, %v511
    %v513 = vrot.slane %v270, %v512
    %v514 = vlaneseq
    %v515 = vshrl.u32 %v514, 7
    %v516 = vsub.s32 6, %v515
    %v517 = vrot.slane %v270, %v516
    %v518 = vlaneseq
    %v519 = vshrl.u32 %v518, 7
    %v520 = vsub.s32 7, %v519
    %v521 = vrot.slane %v270, %v520
    %v522 = vlaneseq
    %v523 = vshrl.u32 %v522, 7
    %v524 = vsub.s32 0, %v523
    %v525 = vrot.slane %v271, %v524
    %v526 = vlaneseq
    %v527 = vshrl.u32 %v526, 7
    %v528 = vsub.s32 1, %v527
    %v529 = vrot.slane %v271, %v528
    %v530 = vlaneseq
    %v531 = vshrl.u32 %v530, 7
    %v532 = vsub.s32 2, %v531
    %v533 = vrot.slane %v271, %v532
    %v534 = vlaneseq
    %v535 = vshrl.u32 %v534, 7
    %v536 = vsub.s32 3, %v535
    %v537 = vrot.slane %v271, %v536
    %v538 = vlaneseq
    %v539 = vshrl.u32 %v538, 7
    %v540 = vsub.s32 4, %v539
    %v541 = vrot.slane %v271, %v540
    %v542 = vlaneseq
    %v543 = vshrl.u32 %v542, 7
    %v544 = vsub.s32 5, %v543
    %v545 = vrot.slane %v271, %v544
    %v546 = vlaneseq
    %v547 = vshrl.u32 %v546, 7
    %v548 = vsub.s32 6, %v547
    %v549 = vrot.slane %v271, %v548
    %v550 = vlaneseq
    %v551 = vshrl.u32 %v550, 7
    %v552 = vsub.s32 7, %v551
    %v553 = vrot.slane %v271, %v552
    %v554 = vlaneseq
    %v555 = vshrl.u32 %v554, 7
    %v556 = vsub.s32 0, %v555
    %v557 = vrot.slane %v272, %v556
    %v558 = vlaneseq
    %v559 = vshrl.u32 %v558, 7
    %v560 = vsub.s32 1, %v559
    %v561 = vrot.slane %v272, %v560
    %v562 = vlaneseq
    %v563 = vshrl.u32 %v562, 7
    %v564 = vsub.s32 2, %v563
    %v565 = vrot.slane %v272, %v564
    %v566 = vlaneseq
    %v567 = vshrl.u32 %v566, 7
    %v568 = vsub.s32 3, %v567
    %v569 = vrot.slane %v272, %v568
    %v570 = vlaneseq
    %v571 = vshrl.u32 %v570, 7
    %v572 = vsub.s32 4, %v571
    %v573 = vrot.slane %v272, %v572
    %v574 = vlaneseq
    %v575 = vshrl.u32 %v574, 7
    %v576 = vsub.s32 5, %v575
    %v577 = vrot.slane %v272, %v576
    %v578 = vlaneseq
    %v579 = vshrl.u32 %v578, 7
    %v580 = vsub.s32 6, %v579
    %v581 = vrot.slane %v272, %v580
    %v582 = vlaneseq
    %v583 = vshrl.u32 %v582, 7
    %v584 = vsub.s32 7, %v583
    %v585 = vrot.slane %v272, %v584
    %v586 = vlaneseq
    %v587 = vshrl.u32 %v586, 7
    %v588 = vsub.s32 0, %v587
    %v589 = vrot.slane %v273, %v588
    %v590 = vlaneseq
    %v591 = vshrl.u32 %v590, 7
    %v592 = vsub.s32 1, %v591
    %v593 = vrot.slane %v273, %v592
    %v594 = vlaneseq
    %v595 = vshrl.u32 %v594, 7
    %v596 = vsub.s32 2, %v595
    %v597 = vrot.slane %v273, %v596
    %v598 = vlaneseq
    %v599 = vshrl.u32 %v598, 7
    %v600 = vsub.s32 3, %v599
    %v601 = vrot.slane %v273, %v600
    %v602 = vlaneseq
    %v603 = vshrl.u32 %v602, 7
    %v604 = vsub.s32 4, %v603
    %v605 = vrot.slane %v273, %v604
    %v606 = vlaneseq
    %v607 = vshrl.u32 %v606, 7
    %v608 = vsub.s32 5, %v607
    %v609 = vrot.slane %v273, %v608
    %v610 = vlaneseq
    %v611 = vshrl.u32 %v610, 7
    %v612 = vsub.s32 6, %v611
    %v613 = vrot.slane %v273, %v612
    %v614 = vlaneseq
    %v615 = vshrl.u32 %v614, 7
    %v616 = vsub.s32 7, %v615
    %v617 = vrot.slane %v273, %v616
    %v618 = vlaneseq
    %v619 = vshrl.u32 %v618, 7
    %v620 = vsub.s32 0, %v619
    %v621 = vrot.slane %v274, %v620
    %v622 = vlaneseq
    %v623 = vshrl.u32 %v622, 7
    %v624 = vsub.s32 1, %v623
    %v625 = vrot.slane %v274, %v624
    %v626 = vlaneseq
    %v627 = vshrl.u32 %v626, 7
    %v628 = vsub.s32 2, %v627
    %v629 = vrot.slane %v274, %v628
    %v630 = vlaneseq
    %v631 = vshrl.u32 %v630, 7
    %v632 = vsub.s32 3, %v631
    %v633 = vrot.slane %v274, %v632
    %v634 = vlaneseq
    %v635 = vshrl.u32 %v634, 7
    %v636 = vsub.s32 4, %v635
    %v637 = vrot.slane %v274, %v636
    %v638 = vlaneseq
    %v639 = vshrl.u32 %v638, 7
    %v640 = vsub.s32 5, %v639
    %v641 = vrot.slane %v274, %v640
    %v642 = vlaneseq
    %v643 = vshrl.u32 %v642, 7
    %v644 = vsub.s32 6, %v643
    %v645 = vrot.slane %v274, %v644
    %v646 = vlaneseq
    %v647 = vshrl.u32 %v646, 7
    %v648 = vsub.s32 7, %v647
    %v649 = vrot.slane %v274, %v648
    %v650 = vlaneseq
    %v651 = vshrl.u32 %v650, 7
    %v652 = vsub.s32 0, %v651
    %v653 = vrot.slane %v275, %v652
    %v654 = vlaneseq
    %v655 = vshrl.u32 %v654, 7
    %v656 = vsub.s32 1, %v655
    %v657 = vrot.slane %v275, %v656
    %v658 = vlaneseq
    %v659 = vshrl.u32 %v658, 7
    %v660 = vsub.s32 2, %v659
    %v661 = vrot.slane %v275, %v660
    %v662 = vlaneseq
    %v663 = vshrl.u32 %v662, 7
    %v664 = vsub.s32 3, %v663
    %v665 = vrot.slane %v275, %v664
    %v666 = vlaneseq
    %v667 = vshrl.u32 %v666, 7
    %v668 = vsub.s32 4, %v667
    %v669 = vrot.slane %v275, %v668
    %v670 = vlaneseq
    %v671 = vshrl.u32 %v670, 7
    %v672 = vsub.s32 5, %v671
    %v673 = vrot.slane %v275, %v672
    %v674 = vlaneseq
    %v675 = vshrl.u32 %v674, 7
    %v676 = vsub.s32 6, %v675
    %v677 = vrot.slane %v275, %v676
    %v678 = vlaneseq
    %v679 = vshrl.u32 %v678, 7
    %v680 = vsub.s32 7, %v679
    %v681 = vrot.slane %v275, %v680
    %v682 = vlaneseq
    %v683 = vshrl.u32 %v682, 7
    %v684 = vsub.s32 0, %v683
    %v685 = vrot.slane %v276, %v684
    %v686 = vlaneseq
    %v687 = vshrl.u32 %v686, 7
    %v688 = vsub.s32 1, %v687
    %v689 = vrot.slane %v276, %v688
    %v690 = vlaneseq
    %v691 = vshrl.u32 %v690, 7
    %v692 = vsub.s32 2, %v691
    %v693 = vrot.slane %v276, %v692
    %v694 = vlaneseq
    %v695 = vshrl.u32 %v694, 7
    %v696 = vsub.s32 3, %v695
    %v697 = vrot.slane %v276, %v696
    %v698 = vlaneseq
    %v699 = vshrl.u32 %v698, 7
    %v700 = vsub.s32 4, %v699
    %v701 = vrot.slane %v276, %v700
    %v702 = vlaneseq
    %v703 = vshrl.u32 %v702, 7
    %v704 = vsub.s32 5, %v703
    %v705 = vrot.slane %v276, %v704
    %v706 = vlaneseq
    %v707 = vshrl.u32 %v706, 7
    %v708 = vsub.s32 6, %v707
    %v709 = vrot.slane %v276, %v708
    %v710 = vlaneseq
    %v711 = vshrl.u32 %v710, 7
    %v712 = vsub.s32 7, %v711
    %v713 = vrot.slane %v276, %v712
    %v714 = vlaneseq
    %v715 = vshrl.u32 %v714, 7
    %v716 = vsub.s32 0, %v715
    %v717 = vrot.slane %v277, %v716
    %v718 = vlaneseq
    %v719 = vshrl.u32 %v718, 7
    %v720 = vsub.s32 1, %v719
    %v721 = vrot.slane %v277, %v720
    %v722 = vlaneseq
    %v723 = vshrl.u32 %v722, 7
    %v724 = vsub.s32 2, %v723
    %v725 = vrot.slane %v277, %v724
    %v726 = vlaneseq
    %v727 = vshrl.u32 %v726, 7
    %v728 = vsub.s32 3, %v727
    %v729 = vrot.slane %v277, %v728
    %v730 = vlaneseq
    %v731 = vshrl.u32 %v730, 7
    %v732 = vsub.s32 4, %v731
    %v733 = vrot.slane %v277, %v732
    %v734 = vlaneseq
    %v735 = vshrl.u32 %v734, 7
    %v736 = vsub.s32 5, %v735
    %v737 = vrot.slane %v277, %v736
    %v738 = vlaneseq
    %v739 = vshrl.u32 %v738, 7
    %v740 = vsub.s32 6, %v739
    %v741 = vrot.slane %v277, %v740
    %v742 = vlaneseq
    %v743 = vshrl.u32 %v742, 7
    %v744 = vsub.s32 7, %v743
    %v745 = vrot.slane %v277, %v744
    %v746 = vlaneseq
    %v747 = vshrl.u32 %v746, 7
    %v748 = vsub.s32 0, %v747
    %v749 = vrot.slane %v278, %v748
    %v750 = vlaneseq
    %v751 = vshrl.u32 %v750, 7
    %v752 = vsub.s32 1, %v751
    %v753 = vrot.slane %v278, %v752
    %v754 = vlaneseq
    %v755 = vshrl.u32 %v754, 7
    %v756 = vsub.s32 2, %v755
    %v757 = vrot.slane %v278, %v756
    %v758 = vlaneseq
    %v759 = vshrl.u32 %v758, 7
    %v760 = vsub.s32 3, %v759
    %v761 = vrot.slane %v278, %v760
    %v762 = vlaneseq
    %v763 = vshrl.u32 %v762, 7
    %v764 = vsub.s32 4, %v763
    %v765 = vrot.slane %v278, %v764
    %v766 = vlaneseq
    %v767 = vshrl.u32 %v766, 7
    %v768 = vsub.s32 5, %v767
    %v769 = vrot.slane %v278, %v768
    %v770 = vlaneseq
    %v771 = vshrl.u32 %v770, 7
    %v772 = vsub.s32 6, %v771
    %v773 = vrot.slane %v278, %v772
    %v774 = vlaneseq
    %v775 = vshrl.u32 %v774, 7
    %v776 = vsub.s32 7, %v775
    %v777 = vrot.slane %v278, %v776
    %v778 = vlaneseq
    %v779 = vshrl.u32 %v778, 7
    %v780 = vsub.s32 0, %v779
    %v781 = vrot.slane %v279, %v780
    %v782 = vlaneseq
    %v783 = vshrl.u32 %v782, 7
    %v784 = vsub.s32 1, %v783
    %v785 = vrot.slane %v279, %v784
    %v786 = vlaneseq
    %v787 = vshrl.u32 %v786, 7
    %v788 = vsub.s32 2, %v787
    %v789 = vrot.slane %v279, %v788
    %v790 = vlaneseq
    %v791 = vshrl.u32 %v790, 7
    %v792 = vsub.s32 3, %v791
    %v793 = vrot.slane %v279, %v792
    %v794 = vlaneseq
    %v795 = vshrl.u32 %v794, 7
    %v796 = vsub.s32 4, %v795
    %v797 = vrot.slane %v279, %v796
    %v798 = vlaneseq
    %v799 = vshrl.u32 %v798, 7
    %v800 = vsub.s32 5, %v799
    %v801 = vrot.slane %v279, %v800
    %v802 = vlaneseq
    %v803 = vshrl.u32 %v802, 7
    %v804 = vsub.s32 6, %v803
    %v805 = vrot.slane %v279, %v804
    %v806 = vlaneseq
    %v807 = vshrl.u32 %v806, 7
    %v808 = vsub.s32 7, %v807
    %v809 = vrot.slane %v279, %v808
    %v810 = vlaneseq
    %v811 = vshrl.u32 %v810, 7
    %v812 = vsub.s32 0, %v811
    %v813 = vrot.slane %v280, %v812
    %v814 = vlaneseq
    %v815 = vshrl.u32 %v814, 7
    %v816 = vsub.s32 1, %v815
    %v817 = vrot.slane %v280, %v816
    %v818 = vlaneseq
    %v819 = vshrl.u32 %v818, 7
    %v820 = vsub.s32 2, %v819
    %v821 = vrot.slane %v280, %v820
    %v822 = vlaneseq
    %v823 = vshrl.u32 %v822, 7
    %v824 = vsub.s32 3, %v823
    %v825 = vrot.slane %v280, %v824
    %v826 = vlaneseq
    %v827 = vshrl.u32 %v826, 7
    %v828 = vsub.s32 4, %v827
    %v829 = vrot.slane %v280, %v828
    %v830 = vlaneseq
    %v831 = vshrl.u32 %v830, 7
    %v832 = vsub.s32 5, %v831
    %v833 = vrot.slane %v280, %v832
    %v834 = vlaneseq
    %v835 = vshrl.u32 %v834, 7
    %v836 = vsub.s32 6, %v835
    %v837 = vrot.slane %v280, %v836
    %v838 = vlaneseq
    %v839 = vshrl.u32 %v838, 7
    %v840 = vsub.s32 7, %v839
    %v841 = vrot.slane %v280, %v840
    %v842 = vlaneseq
    %v843 = vshrl.u32 %v842, 7
    %v844 = vsub.s32 0, %v843
    %v845 = vrot.slane %v281, %v844
    %v846 = vlaneseq
    %v847 = vshrl.u32 %v846, 7
    %v848 = vsub.s32 1, %v847
    %v849 = vrot.slane %v281, %v848
    %v850 = vlaneseq
    %v851 = vshrl.u32 %v850, 7
    %v852 = vsub.s32 2, %v851
    %v853 = vrot.slane %v281, %v852
    %v854 = vlaneseq
    %v855 = vshrl.u32 %v854, 7
    %v856 = vsub.s32 3, %v855
    %v857 = vrot.slane %v281, %v856
    %v858 = vlaneseq
    %v859 = vshrl.u32 %v858, 7
    %v860 = vsub.s32 4, %v859
    %v861 = vrot.slane %v281, %v860
    %v862 = vlaneseq
    %v863 = vshrl.u32 %v862, 7
    %v864 = vsub.s32 5, %v863
    %v865 = vrot.slane %v281, %v864
    %v866 = vlaneseq
    %v867 = vshrl.u32 %v866, 7
    %v868 = vsub.s32 6, %v867
    %v869 = vrot.slane %v281, %v868
    %v870 = vlaneseq
    %v871 = vshrl.u32 %v870, 7
    %v872 = vsub.s32 7, %v871
    %v873 = vrot.slane %v281, %v872
    %v874 = vlaneseq
    %v875 = vshrl.u32 %v874, 7
    %v876 = vsub.s32 0, %v875
    %v877 = vrot.slane %v282, %v876
    %v878 = vlaneseq
    %v879 = vshrl.u32 %v878, 7
    %v880 = vsub.s32 1, %v879
    %v881 = vrot.slane %v282, %v880
    %v882 = vlaneseq
    %v883 = vshrl.u32 %v882, 7
    %v884 = vsub.s32 2, %v883
    %v885 = vrot.slane %v282, %v884
    %v886 = vlaneseq
    %v887 = vshrl.u32 %v886, 7
    %v888 = vsub.s32 3, %v887
    %v889 = vrot.slane %v282, %v888
    %v890 = vlaneseq
    %v891 = vshrl.u32 %v890, 7
    %v892 = vsub.s32 4, %v891
    %v893 = vrot.slane %v282, %v892
    %v894 = vlaneseq
    %v895 = vshrl.u32 %v894, 7
    %v896 = vsub.s32 5, %v895
    %v897 = vrot.slane %v282, %v896
    %v898 = vlaneseq
    %v899 = vshrl.u32 %v898, 7
    %v900 = vsub.s32 6, %v899
    %v901 = vrot.slane %v282, %v900
    %v902 = vlaneseq
    %v903 = vshrl.u32 %v902, 7
    %v904 = vsub.s32 7, %v903
    %v905 = vrot.slane %v282, %v904
    %v906 = vlaneseq
    %v907 = vshrl.u32 %v906, 7
    %v908 = vsub.s32 0, %v907
    %v909 = vrot.slane %v283, %v908
    %v910 = vlaneseq
    %v911 = vshrl.u32 %v910, 7
    %v912 = vsub.s32 1, %v911
    %v913 = vrot.slane %v283, %v912
    %v914 = vlaneseq
    %v915 = vshrl.u32 %v914, 7
    %v916 = vsub.s32 2, %v915
    %v917 = vrot.slane %v283, %v916
    %v918 = vlaneseq
    %v919 = vshrl.u32 %v918, 7
    %v920 = vsub.s32 3, %v919
    %v921 = vrot.slane %v283, %v920
    %v922 = vlaneseq
    %v923 = vshrl.u32 %v922, 7
    %v924 = vsub.s32 4, %v923
    %v925 = vrot.slane %v283, %v924
    %v926 = vlaneseq
    %v927 = vshrl.u32 %v926, 7
    %v928 = vsub.s32 5, %v927
    %v929 = vrot.slane %v283, %v928
    %v930 = vlaneseq
    %v931 = vshrl.u32 %v930, 7
    %v932 = vsub.s32 6, %v931
    %v933 = vrot.slane %v283, %v932
    %v934 = vlaneseq
    %v935 = vshrl.u32 %v934, 7
    %v936 = vsub.s32 7, %v935
    %v937 = vrot.slane %v283, %v936
    %v938 = vlaneseq
    %v939 = vshrl.u32 %v938, 7
    %v940 = vsub.s32 0, %v939
    %v941 = vrot.slane %v284, %v940
    %v942 = vlaneseq
    %v943 = vshrl.u32 %v942, 7
    %v944 = vsub.s32 1, %v943
    %v945 = vrot.slane %v284, %v944
    %v946 = vlaneseq
    %v947 = vshrl.u32 %v946, 7
    %v948 = vsub.s32 2, %v947
    %v949 = vrot.slane %v284, %v948
    %v950 = vlaneseq
    %v951 = vshrl.u32 %v950, 7
    %v952 = vsub.s32 3, %v951
    %v953 = vrot.slane %v284, %v952
    %v954 = vlaneseq
    %v955 = vshrl.u32 %v954, 7
    %v956 = vsub.s32 4, %v955
    %v957 = vrot.slane %v284, %v956
    %v958 = vlaneseq
    %v959 = vshrl.u32 %v958, 7
    %v960 = vsub.s32 5, %v959
    %v961 = vrot.slane %v284, %v960
    %v962 = vlaneseq
    %v963 = vshrl.u32 %v962, 7
    %v964 = vsub.s32 6, %v963
    %v965 = vrot.slane %v284, %v964
    %v966 = vlaneseq
    %v967 = vshrl.u32 %v966, 7
    %v968 = vsub.s32 7, %v967
    %v969 = vrot.slane %v284, %v968
    %v970 = vlaneseq
    %v971 = vshrl.u32 %v970, 7
    %v972 = vsub.s32 0, %v971
    %v973 = vrot.slane %v285, %v972
    %v974 = vlaneseq
    %v975 = vshrl.u32 %v974, 7
    %v976 = vsub.s32 1, %v975
    %v977 = vrot.slane %v285, %v976
    %v978 = vlaneseq
    %v979 = vshrl.u32 %v978, 7
    %v980 = vsub.s32 2, %v979
    %v981 = vrot.slane %v285, %v980
    %v982 = vlaneseq
    %v983 = vshrl.u32 %v982, 7
    %v984 = vsub.s32 3, %v983
    %v985 = vrot.slane %v285, %v984
    %v986 = vlaneseq
    %v987 = vshrl.u32 %v986, 7
    %v988 = vsub.s32 4, %v987
    %v989 = vrot.slane %v285, %v988
    %v990 = vlaneseq
    %v991 = vshrl.u32 %v990, 7
    %v992 = vsub.s32 5, %v991
    %v993 = vrot.slane %v285, %v992
    %v994 = vlaneseq
    %v995 = vshrl.u32 %v994, 7
    %v996 = vsub.s32 6, %v995
    %v997 = vrot.slane %v285, %v996
    %v998 = vlaneseq
    %v999 = vshrl.u32 %v998, 7
    %v1000 = vsub.s32 7, %v999
    %v1001 = vrot.slane %v285, %v1000
    %v1002 = vlaneseq
    %v1003 = vshrl.u32 %v1002, 7
    %v1004 = vsub.s32 0, %v1003
    %v1005 = vrot.slane %v286, %v1004
    %v1006 = vlaneseq
    %v1007 = vshrl.u32 %v1006, 7
    %v1008 = vsub.s32 1, %v1007
    %v1009 = vrot.slane %v286, %v1008
    %v1010 = vlaneseq
    %v1011 = vshrl.u32 %v1010, 7
    %v1012 = vsub.s32 2, %v1011
    %v1013 = vrot.slane %v286, %v1012
    %v1014 = vlaneseq
    %v1015 = vshrl.u32 %v1014, 7
    %v1016 = vsub.s32 3, %v1015
    %v1017 = vrot.slane %v286, %v1016
    %v1018 = vlaneseq
    %v1019 = vshrl.u32 %v1018, 7
    %v1020 = vsub.s32 4, %v1019
    %v1021 = vrot.slane %v286, %v1020
    %v1022 = vlaneseq
    %v1023 = vshrl.u32 %v1022, 7
    %v1024 = vsub.s32 5, %v1023
    %v1025 = vrot.slane %v286, %v1024
    %v1026 = vlaneseq
    %v1027 = vshrl.u32 %v1026, 7
    %v1028 = vsub.s32 6, %v1027
    %v1029 = vrot.slane %v286, %v1028
    %v1030 = vlaneseq
    %v1031 = vshrl.u32 %v1030, 7
    %v1032 = vsub.s32 7, %v1031
    %v1033 = vrot.slane %v286, %v1032
    %v1034 = vlaneseq
    %v1035 = vshrl.u32 %v1034, 7
    %v1036 = vsub.s32 0, %v1035
    %v1037 = vrot.slane %v287, %v1036
    %v1038 = vlaneseq
    %v1039 = vshrl.u32 %v1038, 7
    %v1040 = vsub.s32 1, %v1039
    %v1041 = vrot.slane %v287, %v1040
    %v1042 = vlaneseq
    %v1043 = vshrl.u32 %v1042, 7
    %v1044 = vsub.s32 2, %v1043
    %v1045 = vrot.slane %v287, %v1044
    %v1046 = vlaneseq
    %v1047 = vshrl.u32 %v1046, 7
    %v1048 = vsub.s32 3, %v1047
    %v1049 = vrot.slane %v287, %v1048
    %v1050 = vlaneseq
    %v1051 = vshrl.u32 %v1050, 7
    %v1052 = vsub.s32 4, %v1051
    %v1053 = vrot.slane %v287, %v1052
    %v1054 = vlaneseq
    %v1055 = vshrl.u32 %v1054, 7
    %v1056 = vsub.s32 5, %v1055
    %v1057 = vrot.slane %v287, %v1056
    %v1058 = vlaneseq
    %v1059 = vshrl.u32 %v1058, 7
    %v1060 = vsub.s32 6, %v1059
    %v1061 = vrot.slane %v287, %v1060
    %v1062 = vlaneseq
    %v1063 = vshrl.u32 %v1062, 7
    %v1064 = vsub.s32 7, %v1063
    %v1065 = vrot.slane %v287, %v1064
    %v1066 = vlaneseq
    %v1067 = vshrl.u32 %v1066, 7
    %v1068 = vsub.s32 0, %v1067
    %v1069 = vrot.slane %v288, %v1068
    %v1070 = vlaneseq
    %v1071 = vshrl.u32 %v1070, 7
    %v1072 = vsub.s32 1, %v1071
    %v1073 = vrot.slane %v288, %v1072
    %v1074 = vlaneseq
    %v1075 = vshrl.u32 %v1074, 7
    %v1076 = vsub.s32 2, %v1075
    %v1077 = vrot.slane %v288, %v1076
    %v1078 = vlaneseq
    %v1079 = vshrl.u32 %v1078, 7
    %v1080 = vsub.s32 3, %v1079
    %v1081 = vrot.slane %v288, %v1080
    %v1082 = vlaneseq
    %v1083 = vshrl.u32 %v1082, 7
    %v1084 = vsub.s32 4, %v1083
    %v1085 = vrot.slane %v288, %v1084
    %v1086 = vlaneseq
    %v1087 = vshrl.u32 %v1086, 7
    %v1088 = vsub.s32 5, %v1087
    %v1089 = vrot.slane %v288, %v1088
    %v1090 = vlaneseq
    %v1091 = vshrl.u32 %v1090, 7
    %v1092 = vsub.s32 6, %v1091
    %v1093 = vrot.slane %v288, %v1092
    %v1094 = vlaneseq
    %v1095 = vshrl.u32 %v1094, 7
    %v1096 = vsub.s32 7, %v1095
    %v1097 = vrot.slane %v288, %v1096
    %v1098 = vlaneseq
    %v1099 = vshrl.u32 %v1098, 7
    %v1100 = vsub.s32 0, %v1099
    %v1101 = vrot.slane %v289, %v1100
    %v1102 = vlaneseq
    %v1103 = vshrl.u32 %v1102, 7
    %v1104 = vsub.s32 1, %v1103
    %v1105 = vrot.slane %v289, %v1104
    %v1106 = vlaneseq
    %v1107 = vshrl.u32 %v1106, 7
    %v1108 = vsub.s32 2, %v1107
    %v1109 = vrot.slane %v289, %v1108
    %v1110 = vlaneseq
    %v1111 = vshrl.u32 %v1110, 7
    %v1112 = vsub.s32 3, %v1111
    %v1113 = vrot.slane %v289, %v1112
    %v1114 = vlaneseq
    %v1115 = vshrl.u32 %v1114, 7
    %v1116 = vsub.s32 4, %v1115
    %v1117 = vrot.slane %v289, %v1116
    %v1118 = vlaneseq
    %v1119 = vshrl.u32 %v1118, 7
    %v1120 = vsub.s32 5, %v1119
    %v1121 = vrot.slane %v289, %v1120
    %v1122 = vlaneseq
    %v1123 = vshrl.u32 %v1122, 7
    %v1124 = vsub.s32 6, %v1123
    %v1125 = vrot.slane %v289, %v1124
    %v1126 = vlaneseq
    %v1127 = vshrl.u32 %v1126, 7
    %v1128 = vsub.s32 7, %v1127
    %v1129 = vrot.slane %v289, %v1128
    %v1130 = vlaneseq
    %v1131 = vshrl.u32 %v1130, 7
    %v1132 = vsub.s32 0, %v1131
    %v1133 = vrot.slane %v290, %v1132
    %v1134 = vlaneseq
    %v1135 = vshrl.u32 %v1134, 7
    %v1136 = vsub.s32 1, %v1135
    %v1137 = vrot.slane %v290, %v1136
    %v1138 = vlaneseq
    %v1139 = vshrl.u32 %v1138, 7
    %v1140 = vsub.s32 2, %v1139
    %v1141 = vrot.slane %v290, %v1140
    %v1142 = vlaneseq
    %v1143 = vshrl.u32 %v1142, 7
    %v1144 = vsub.s32 3, %v1143
    %v1145 = vrot.slane %v290, %v1144
    %v1146 = vlaneseq
    %v1147 = vshrl.u32 %v1146, 7
    %v1148 = vsub.s32 4, %v1147
    %v1149 = vrot.slane %v290, %v1148
    %v1150 = vlaneseq
    %v1151 = vshrl.u32 %v1150, 7
    %v1152 = vsub.s32 5, %v1151
    %v1153 = vrot.slane %v290, %v1152
    %v1154 = vlaneseq
    %v1155 = vshrl.u32 %v1154, 7
    %v1156 = vsub.s32 6, %v1155
    %v1157 = vrot.slane %v290, %v1156
    %v1158 = vlaneseq
    %v1159 = vshrl.u32 %v1158, 7
    %v1160 = vsub.s32 7, %v1159
    %v1161 = vrot.slane %v290, %v1160
    %v1162 = vlaneseq
    %v1163 = vshrl.u32 %v1162, 7
    %v1164 = vsub.s32 0, %v1163
    %v1165 = vrot.slane %v291, %v1164
    %v1166 = vlaneseq
    %v1167 = vshrl.u32 %v1166, 7
    %v1168 = vsub.s32 1, %v1167
    %v1169 = vrot.slane %v291, %v1168
    %v1170 = vlaneseq
    %v1171 = vshrl.u32 %v1170, 7
    %v1172 = vsub.s32 2, %v1171
    %v1173 = vrot.slane %v291, %v1172
    %v1174 = vlaneseq
    %v1175 = vshrl.u32 %v1174, 7
    %v1176 = vsub.s32 3, %v1175
    %v1177 = vrot.slane %v291, %v1176
    %v1178 = vlaneseq
    %v1179 = vshrl.u32 %v1178, 7
    %v1180 = vsub.s32 4, %v1179
    %v1181 = vrot.slane %v291, %v1180
    %v1182 = vlaneseq
    %v1183 = vshrl.u32 %v1182, 7
    %v1184 = vsub.s32 5, %v1183
    %v1185 = vrot.slane %v291, %v1184
    %v1186 = vlaneseq
    %v1187 = vshrl.u32 %v1186, 7
    %v1188 = vsub.s32 6, %v1187
    %v1189 = vrot.slane %v291, %v1188
    %v1190 = vlaneseq
    %v1191 = vshrl.u32 %v1190, 7
    %v1192 = vsub.s32 7, %v1191
    %v1193 = vrot.slane %v291, %v1192
    %v1194 = vlaneseq
    %v1195 = vshrl.u32 %v1194, 7
    %v1196 = vsub.s32 0, %v1195
    %v1197 = vrot.slane %v292, %v1196
    %v1198 = vlaneseq
    %v1199 = vshrl.u32 %v1198, 7
    %v1200 = vsub.s32 1, %v1199
    %v1201 = vrot.slane %v292, %v1200
    %v1202 = vlaneseq
    %v1203 = vshrl.u32 %v1202, 7
    %v1204 = vsub.s32 2, %v1203
    %v1205 = vrot.slane %v292, %v1204
    %v1206 = vlaneseq
    %v1207 = vshrl.u32 %v1206, 7
    %v1208 = vsub.s32 3, %v1207
    %v1209 = vrot.slane %v292, %v1208
    %v1210 = vlaneseq
    %v1211 = vshrl.u32 %v1210, 7
    %v1212 = vsub.s32 4, %v1211
    %v1213 = vrot.slane %v292, %v1212
    %v1214 = vlaneseq
    %v1215 = vshrl.u32 %v1214, 7
    %v1216 = vsub.s32 5, %v1215
    %v1217 = vrot.slane %v292, %v1216
    %v1218 = vlaneseq
    %v1219 = vshrl.u32 %v1218, 7
    %v1220 = vsub.s32 6, %v1219
    %v1221 = vrot.slane %v292, %v1220
    %v1222 = vlaneseq
    %v1223 = vshrl.u32 %v1222, 7
    %v1224 = vsub.s32 7, %v1223
    %v1225 = vrot.slane %v292, %v1224
    %v1226 = vlaneseq
    %v1227 = vshrl.u32 %v1226, 7
    %v1228 = vsub.s32 0, %v1227
    %v1229 = vrot.slane %v293, %v1228
    %v1230 = vlaneseq
    %v1231 = vshrl.u32 %v1230, 7
    %v1232 = vsub.s32 1, %v1231
    %v1233 = vrot.slane %v293, %v1232
    %v1234 = vlaneseq
    %v1235 = vshrl.u32 %v1234, 7
    %v1236 = vsub.s32 2, %v1235
    %v1237 = vrot.slane %v293, %v1236
    %v1238 = vlaneseq
    %v1239 = vshrl.u32 %v1238, 7
    %v1240 = vsub.s32 3, %v1239
    %v1241 = vrot.slane %v293, %v1240
    %v1242 = vlaneseq
    %v1243 = vshrl.u32 %v1242, 7
    %v1244 = vsub.s32 4, %v1243
    %v1245 = vrot.slane %v293, %v1244
    %v1246 = vlaneseq
    %v1247 = vshrl.u32 %v1246, 7
    %v1248 = vsub.s32 5, %v1247
    %v1249 = vrot.slane %v293, %v1248
    %v1250 = vlaneseq
    %v1251 = vshrl.u32 %v1250, 7
    %v1252 = vsub.s32 6, %v1251
    %v1253 = vrot.slane %v293, %v1252
    %v1254 = vlaneseq
    %v1255 = vshrl.u32 %v1254, 7
    %v1256 = vsub.s32 7, %v1255
    %v1257 = vrot.slane %v293, %v1256
    %v1258 = vlaneseq
    %v1259 = vshrl.u32 %v1258, 7
    %v1260 = vsub.s32 0, %v1259
    %v1261 = vrot.slane %v294, %v1260
    %v1262 = vlaneseq
    %v1263 = vshrl.u32 %v1262, 7
    %v1264 = vsub.s32 1, %v1263
    %v1265 = vrot.slane %v294, %v1264
    %v1266 = vlaneseq
    %v1267 = vshrl.u32 %v1266, 7
    %v1268 = vsub.s32 2, %v1267
    %v1269 = vrot.slane %v294, %v1268
    %v1270 = vlaneseq
    %v1271 = vshrl.u32 %v1270, 7
    %v1272 = vsub.s32 3, %v1271
    %v1273 = vrot.slane %v294, %v1272
    %v1274 = vlaneseq
    %v1275 = vshrl.u32 %v1274, 7
    %v1276 = vsub.s32 4, %v1275
    %v1277 = vrot.slane %v294, %v1276
    %v1278 = vlaneseq
    %v1279 = vshrl.u32 %v1278, 7
    %v1280 = vsub.s32 5, %v1279
    %v1281 = vrot.slane %v294, %v1280
    %v1282 = vlaneseq
    %v1283 = vshrl.u32 %v1282, 7
    %v1284 = vsub.s32 6, %v1283
    %v1285 = vrot.slane %v294, %v1284
    %v1286 = vlaneseq
    %v1287 = vshrl.u32 %v1286, 7
    %v1288 = vsub.s32 7, %v1287
    %v1289 = vrot.slane %v294, %v1288
    %v1290 = vlaneseq
    %v1291 = vshrl.u32 %v1290, 7
    %v1292 = vsub.s32 0, %v1291
    %v1293 = vrot.slane %v295, %v1292
    %v1294 = vlaneseq
    %v1295 = vshrl.u32 %v1294, 7
    %v1296 = vsub.s32 1, %v1295
    %v1297 = vrot.slane %v295, %v1296
    %v1298 = vlaneseq
    %v1299 = vshrl.u32 %v1298, 7
    %v1300 = vsub.s32 2, %v1299
    %v1301 = vrot.slane %v295, %v1300
    %v1302 = vlaneseq
    %v1303 = vshrl.u32 %v1302, 7
    %v1304 = vsub.s32 3, %v1303
    %v1305 = vrot.slane %v295, %v1304
    %v1306 = vlaneseq
    %v1307 = vshrl.u32 %v1306, 7
    %v1308 = vsub.s32 4, %v1307
    %v1309 = vrot.slane %v295, %v1308
    %v1310 = vlaneseq
    %v1311 = vshrl.u32 %v1310, 7
    %v1312 = vsub.s32 5, %v1311
    %v1313 = vrot.slane %v295, %v1312
    %v1314 = vlaneseq
    %v1315 = vshrl.u32 %v1314, 7
    %v1316 = vsub.s32 6, %v1315
    %v1317 = vrot.slane %v295, %v1316
    %v1318 = vlaneseq
    %v1319 = vshrl.u32 %v1318, 7
    %v1320 = vsub.s32 7, %v1319
    %v1321 = vrot.slane %v295, %v1320
    %v1322 = vlaneseq
    %v1323 = vshrl.u32 %v1322, 7
    %v1324 = vsub.s32 0, %v1323
    %v1325 = vrot.slane %v296, %v1324
    %v1326 = vlaneseq
    %v1327 = vshrl.u32 %v1326, 7
    %v1328 = vsub.s32 1, %v1327
    %v1329 = vrot.slane %v296, %v1328
    %v1330 = vlaneseq
    %v1331 = vshrl.u32 %v1330, 7
    %v1332 = vsub.s32 2, %v1331
    %v1333 = vrot.slane %v296, %v1332
    %v1334 = vlaneseq
    %v1335 = vshrl.u32 %v1334, 7
    %v1336 = vsub.s32 3, %v1335
    %v1337 = vrot.slane %v296, %v1336
    %v1338 = vlaneseq
    %v1339 = vshrl.u32 %v1338, 7
    %v1340 = vsub.s32 4, %v1339
    %v1341 = vrot.slane %v296, %v1340
    %v1342 = vlaneseq
    %v1343 = vshrl.u32 %v1342, 7
    %v1344 = vsub.s32 5, %v1343
    %v1345 = vrot.slane %v296, %v1344
    %v1346 = vlaneseq
    %v1347 = vshrl.u32 %v1346, 7
    %v1348 = vsub.s32 6, %v1347
    %v1349 = vrot.slane %v296, %v1348
    %v1350 = vlaneseq
    %v1351 = vshrl.u32 %v1350, 7
    %v1352 = vsub.s32 7, %v1351
    %v1353 = vrot.slane %v296, %v1352
    %v1354 = vlaneseq
    %v1355 = vshrl.u32 %v1354, 7
    %v1356 = vsub.s32 0, %v1355
    %v1357 = vrot.slane %v297, %v1356
    %v1358 = vlaneseq
    %v1359 = vshrl.u32 %v1358, 7
    %v1360 = vsub.s32 1, %v1359
    %v1361 = vrot.slane %v297, %v1360
    %v1362 = vlaneseq
    %v1363 = vshrl.u32 %v1362, 7
    %v1364 = vsub.s32 2, %v1363
    %v1365 = vrot.slane %v297, %v1364
    %v1366 = vlaneseq
    %v1367 = vshrl.u32 %v1366, 7
    %v1368 = vsub.s32 3, %v1367
    %v1369 = vrot.slane %v297, %v1368
    %v1370 = vlaneseq
    %v1371 = vshrl.u32 %v1370, 7
    %v1372 = vsub.s32 4, %v1371
    %v1373 = vrot.slane %v297, %v1372
    %v1374 = vlaneseq
    %v1375 = vshrl.u32 %v1374, 7
    %v1376 = vsub.s32 5, %v1375
    %v1377 = vrot.slane %v297, %v1376
    %v1378 = vlaneseq
    %v1379 = vshrl.u32 %v1378, 7
    %v1380 = vsub.s32 6, %v1379
    %v1381 = vrot.slane %v297, %v1380
    %v1382 = vlaneseq
    %v1383 = vshrl.u32 %v1382, 7
    %v1384 = vsub.s32 7, %v1383
    %v1385 = vrot.slane %v297, %v1384
    %v1386 = vlaneseq
    %v1387 = vshrl.u32 %v1386, 7
    %v1388 = vsub.s32 0, %v1387
    %v1389 = vrot.slane %v298, %v1388
    %v1390 = vlaneseq
    %v1391 = vshrl.u32 %v1390, 7
    %v1392 = vsub.s32 1, %v1391
    %v1393 = vrot.slane %v298, %v1392
    %v1394 = vlaneseq
    %v1395 = vshrl.u32 %v1394, 7
    %v1396 = vsub.s32 2, %v1395
    %v1397 = vrot.slane %v298, %v1396
    %v1398 = vlaneseq
    %v1399 = vshrl.u32 %v1398, 7
    %v1400 = vsub.s32 3, %v1399
    %v1401 = vrot.slane %v298, %v1400
    %v1402 = vlaneseq
    %v1403 = vshrl.u32 %v1402, 7
    %v1404 = vsub.s32 4, %v1403
    %v1405 = vrot.slane %v298, %v1404
    %v1406 = vlaneseq
    %v1407 = vshrl.u32 %v1406, 7
    %v1408 = vsub.s32 5, %v1407
    %v1409 = vrot.slane %v298, %v1408
    %v1410 = vlaneseq
    %v1411 = vshrl.u32 %v1410, 7
    %v1412 = vsub.s32 6, %v1411
    %v1413 = vrot.slane %v298, %v1412
    %v1414 = vlaneseq
    %v1415 = vshrl.u32 %v1414, 7
    %v1416 = vsub.s32 7, %v1415
    %v1417 = vrot.slane %v298, %v1416
    %v1418 = vlaneseq
    %v1419 = vshrl.u32 %v1418, 7
    %v1420 = vsub.s32 0, %v1419
    %v1421 = vrot.slane %v299, %v1420
    %v1422 = vlaneseq
    %v1423 = vshrl.u32 %v1422, 7
    %v1424 = vsub.s32 1, %v1423
    %v1425 = vrot.slane %v299, %v1424
    %v1426 = vlaneseq
    %v1427 = vshrl.u32 %v1426, 7
    %v1428 = vsub.s32 2, %v1427
    %v1429 = vrot.slane %v299, %v1428
    %v1430 = vlaneseq
    %v1431 = vshrl.u32 %v1430, 7
    %v1432 = vsub.s32 3, %v1431
    %v1433 = vrot.slane %v299, %v1432
    %v1434 = vlaneseq
    %v1435 = vshrl.u32 %v1434, 7
    %v1436 = vsub.s32 4, %v1435
    %v1437 = vrot.slane %v299, %v1436
    %v1438 = vlaneseq
    %v1439 = vshrl.u32 %v1438, 7
    %v1440 = vsub.s32 5, %v1439
    %v1441 = vrot.slane %v299, %v1440
    %v1442 = vlaneseq
    %v1443 = vshrl.u32 %v1442, 7
    %v1444 = vsub.s32 6, %v1443
    %v1445 = vrot.slane %v299, %v1444
    %v1446 = vlaneseq
    %v1447 = vshrl.u32 %v1446, 7
    %v1448 = vsub.s32 7, %v1447
    %v1449 = vrot.slane %v299, %v1448
    %v1450 = vlaneseq
    %v1451 = vshrl.u32 %v1450, 7
    %v1452 = vsub.s32 0, %v1451
    %v1453 = vrot.slane %v300, %v1452
    %v1454 = vlaneseq
    %v1455 = vshrl.u32 %v1454, 7
    %v1456 = vsub.s32 1, %v1455
    %v1457 = vrot.slane %v300, %v1456
    %v1458 = vlaneseq
    %v1459 = vshrl.u32 %v1458, 7
    %v1460 = vsub.s32 2, %v1459
    %v1461 = vrot.slane %v300, %v1460
    %v1462 = vlaneseq
    %v1463 = vshrl.u32 %v1462, 7
    %v1464 = vsub.s32 3, %v1463
    %v1465 = vrot.slane %v300, %v1464
    %v1466 = vlaneseq
    %v1467 = vshrl.u32 %v1466, 7
    %v1468 = vsub.s32 4, %v1467
    %v1469 = vrot.slane %v300, %v1468
    %v1470 = vlaneseq
    %v1471 = vshrl.u32 %v1470, 7
    %v1472 = vsub.s32 5, %v1471
    %v1473 = vrot.slane %v300, %v1472
    %v1474 = vlaneseq
    %v1475 = vshrl.u32 %v1474, 7
    %v1476 = vsub.s32 6, %v1475
    %v1477 = vrot.slane %v300, %v1476
    %v1478 = vlaneseq
    %v1479 = vshrl.u32 %v1478, 7
    %v1480 = vsub.s32 7, %v1479
    %v1481 = vrot.slane %v300, %v1480
    %v1482 = vlaneseq
    %v1483 = vshrl.u32 %v1482, 7
    %v1484 = vsub.s32 0, %v1483
    %v1485 = vrot.slane %v301, %v1484
    %v1486 = vlaneseq
    %v1487 = vshrl.u32 %v1486, 7
    %v1488 = vsub.s32 1, %v1487
    %v1489 = vrot.slane %v301, %v1488
    %v1490 = vlaneseq
    %v1491 = vshrl.u32 %v1490, 7
    %v1492 = vsub.s32 2, %v1491
    %v1493 = vrot.slane %v301, %v1492
    %v1494 = vlaneseq
    %v1495 = vshrl.u32 %v1494, 7
    %v1496 = vsub.s32 3, %v1495
    %v1497 = vrot.slane %v301, %v1496
    %v1498 = vlaneseq
    %v1499 = vshrl.u32 %v1498, 7
    %v1500 = vsub.s32 4, %v1499
    %v1501 = vrot.slane %v301, %v1500
    %v1502 = vlaneseq
    %v1503 = vshrl.u32 %v1502, 7
    %v1504 = vsub.s32 5, %v1503
    %v1505 = vrot.slane %v301, %v1504
    %v1506 = vlaneseq
    %v1507 = vshrl.u32 %v1506, 7
    %v1508 = vsub.s32 6, %v1507
    %v1509 = vrot.slane %v301, %v1508
    %v1510 = vlaneseq
    %v1511 = vshrl.u32 %v1510, 7
    %v1512 = vsub.s32 7, %v1511
    %v1513 = vrot.slane %v301, %v1512
    %v1514 = vlaneseq
    %v1515 = vshrl.u32 %v1514, 7
    %v1516 = vsub.s32 0, %v1515
    %v1517 = vrot.slane %v302, %v1516
    %v1518 = vlaneseq
    %v1519 = vshrl.u32 %v1518, 7
    %v1520 = vsub.s32 1, %v1519
    %v1521 = vrot.slane %v302, %v1520
    %v1522 = vlaneseq
    %v1523 = vshrl.u32 %v1522, 7
    %v1524 = vsub.s32 2, %v1523
    %v1525 = vrot.slane %v302, %v1524
    %v1526 = vlaneseq
    %v1527 = vshrl.u32 %v1526, 7
    %v1528 = vsub.s32 3, %v1527
    %v1529 = vrot.slane %v302, %v1528
    %v1530 = vlaneseq
    %v1531 = vshrl.u32 %v1530, 7
    %v1532 = vsub.s32 4, %v1531
    %v1533 = vrot.slane %v302, %v1532
    %v1534 = vlaneseq
    %v1535 = vshrl.u32 %v1534, 7
    %v1536 = vsub.s32 5, %v1535
    %v1537 = vrot.slane %v302, %v1536
    %v1538 = vlaneseq
    %v1539 = vshrl.u32 %v1538, 7
    %v1540 = vsub.s32 6, %v1539
    %v1541 = vrot.slane %v302, %v1540
    %v1542 = vlaneseq
    %v1543 = vshrl.u32 %v1542, 7
    %v1544 = vsub.s32 7, %v1543
    %v1545 = vrot.slane %v302, %v1544
    %v1546 = vlaneseq
    %v1547 = vshrl.u32 %v1546, 7
    %v1548 = vsub.s32 0, %v1547
    %v1549 = vrot.slane %v303, %v1548
    %v1550 = vlaneseq
    %v1551 = vshrl.u32 %v1550, 7
    %v1552 = vsub.s32 1, %v1551
    %v1553 = vrot.slane %v303, %v1552
    %v1554 = vlaneseq
    %v1555 = vshrl.u32 %v1554, 7
    %v1556 = vsub.s32 2, %v1555
    %v1557 = vrot.slane %v303, %v1556
    %v1558 = vlaneseq
    %v1559 = vshrl.u32 %v1558, 7
    %v1560 = vsub.s32 3, %v1559
    %v1561 = vrot.slane %v303, %v1560
    %v1562 = vlaneseq
    %v1563 = vshrl.u32 %v1562, 7
    %v1564 = vsub.s32 4, %v1563
    %v1565 = vrot.slane %v303, %v1564
    %v1566 = vlaneseq
    %v1567 = vshrl.u32 %v1566, 7
    %v1568 = vsub.s32 5, %v1567
    %v1569 = vrot.slane %v303, %v1568
    %v1570 = vlaneseq
    %v1571 = vshrl.u32 %v1570, 7
    %v1572 = vsub.s32 6, %v1571
    %v1573 = vrot.slane %v303, %v1572
    %v1574 = vlaneseq
    %v1575 = vshrl.u32 %v1574, 7
    %v1576 = vsub.s32 7, %v1575
    %v1577 = vrot.slane %v303, %v1576
    %v1578 = vlaneseq
    %v1579 = vshrl.u32 %v1578, 7
    %v1580 = vsub.s32 0, %v1579
    %v1581 = vrot.slane %v304, %v1580
    %v1582 = vlaneseq
    %v1583 = vshrl.u32 %v1582, 7
    %v1584 = vsub.s32 1, %v1583
    %v1585 = vrot.slane %v304, %v1584
    %v1586 = vlaneseq
    %v1587 = vshrl.u32 %v1586, 7
    %v1588 = vsub.s32 2, %v1587
    %v1589 = vrot.slane %v304, %v1588
    %v1590 = vlaneseq
    %v1591 = vshrl.u32 %v1590, 7
    %v1592 = vsub.s32 3, %v1591
    %v1593 = vrot.slane %v304, %v1592
    %v1594 = vlaneseq
    %v1595 = vshrl.u32 %v1594, 7
    %v1596 = vsub.s32 4, %v1595
    %v1597 = vrot.slane %v304, %v1596
    %v1598 = vlaneseq
    %v1599 = vshrl.u32 %v1598, 7
    %v1600 = vsub.s32 5, %v1599
    %v1601 = vrot.slane %v304, %v1600
    %v1602 = vlaneseq
    %v1603 = vshrl.u32 %v1602, 7
    %v1604 = vsub.s32 6, %v1603
    %v1605 = vrot.slane %v304, %v1604
    %v1606 = vlaneseq
    %v1607 = vshrl.u32 %v1606, 7
    %v1608 = vsub.s32 7, %v1607
    %v1609 = vrot.slane %v304, %v1608
    %v1610 = vlaneseq
    %v1611 = vshrl.u32 %v1610, 7
    %v1612 = vsub.s32 0, %v1611
    %v1613 = vrot.slane %v305, %v1612
    %v1614 = vlaneseq
    %v1615 = vshrl.u32 %v1614, 7
    %v1616 = vsub.s32 1, %v1615
    %v1617 = vrot.slane %v305, %v1616
    %v1618 = vlaneseq
    %v1619 = vshrl.u32 %v1618, 7
    %v1620 = vsub.s32 2, %v1619
    %v1621 = vrot.slane %v305, %v1620
    %v1622 = vlaneseq
    %v1623 = vshrl.u32 %v1622, 7
    %v1624 = vsub.s32 3, %v1623
    %v1625 = vrot.slane %v305, %v1624
    %v1626 = vlaneseq
    %v1627 = vshrl.u32 %v1626, 7
    %v1628 = vsub.s32 4, %v1627
    %v1629 = vrot.slane %v305, %v1628
    %v1630 = vlaneseq
    %v1631 = vshrl.u32 %v1630, 7
    %v1632 = vsub.s32 5, %v1631
    %v1633 = vrot.slane %v305, %v1632
    %v1634 = vlaneseq
    %v1635 = vshrl.u32 %v1634, 7
    %v1636 = vsub.s32 6, %v1635
    %v1637 = vrot.slane %v305, %v1636
    %v1638 = vlaneseq
    %v1639 = vshrl.u32 %v1638, 7
    %v1640 = vsub.s32 7, %v1639
    %v1641 = vrot.slane %v305, %v1640
    %v1642 = vlaneseq
    %v1643 = vshrl.u32 %v1642, 7
    %v1644 = vsub.s32 0, %v1643
    %v1645 = vrot.slane %v306, %v1644
    %v1646 = vlaneseq
    %v1647 = vshrl.u32 %v1646, 7
    %v1648 = vsub.s32 1, %v1647
    %v1649 = vrot.slane %v306, %v1648
    %v1650 = vlaneseq
    %v1651 = vshrl.u32 %v1650, 7
    %v1652 = vsub.s32 2, %v1651
    %v1653 = vrot.slane %v306, %v1652
    %v1654 = vlaneseq
    %v1655 = vshrl.u32 %v1654, 7
    %v1656 = vsub.s32 3, %v1655
    %v1657 = vrot.slane %v306, %v1656
    %v1658 = vlaneseq
    %v1659 = vshrl.u32 %v1658, 7
    %v1660 = vsub.s32 4, %v1659
    %v1661 = vrot.slane %v306, %v1660
    %v1662 = vlaneseq
    %v1663 = vshrl.u32 %v1662, 7
    %v1664 = vsub.s32 5, %v1663
    %v1665 = vrot.slane %v306, %v1664
    %v1666 = vlaneseq
    %v1667 = vshrl.u32 %v1666, 7
    %v1668 = vsub.s32 6, %v1667
    %v1669 = vrot.slane %v306, %v1668
    %v1670 = vlaneseq
    %v1671 = vshrl.u32 %v1670, 7
    %v1672 = vsub.s32 7, %v1671
    %v1673 = vrot.slane %v306, %v1672
    %v1674 = vlaneseq
    %v1675 = vshrl.u32 %v1674, 7
    %v1676 = vsub.s32 0, %v1675
    %v1677 = vrot.slane %v307, %v1676
    %v1678 = vlaneseq
    %v1679 = vshrl.u32 %v1678, 7
    %v1680 = vsub.s32 1, %v1679
    %v1681 = vrot.slane %v307, %v1680
    %v1682 = vlaneseq
    %v1683 = vshrl.u32 %v1682, 7
    %v1684 = vsub.s32 2, %v1683
    %v1685 = vrot.slane %v307, %v1684
    %v1686 = vlaneseq
    %v1687 = vshrl.u32 %v1686, 7
    %v1688 = vsub.s32 3, %v1687
    %v1689 = vrot.slane %v307, %v1688
    %v1690 = vlaneseq
    %v1691 = vshrl.u32 %v1690, 7
    %v1692 = vsub.s32 4, %v1691
    %v1693 = vrot.slane %v307, %v1692
    %v1694 = vlaneseq
    %v1695 = vshrl.u32 %v1694, 7
    %v1696 = vsub.s32 5, %v1695
    %v1697 = vrot.slane %v307, %v1696
    %v1698 = vlaneseq
    %v1699 = vshrl.u32 %v1698, 7
    %v1700 = vsub.s32 6, %v1699
    %v1701 = vrot.slane %v307, %v1700
    %v1702 = vlaneseq
    %v1703 = vshrl.u32 %v1702, 7
    %v1704 = vsub.s32 7, %v1703
    %v1705 = vrot.slane %v307, %v1704
    %v1706 = vlaneseq
    %v1707 = vshrl.u32 %v1706, 7
    %v1708 = vsub.s32 0, %v1707
    %v1709 = vrot.slane %v308, %v1708
    %v1710 = vlaneseq
    %v1711 = vshrl.u32 %v1710, 7
    %v1712 = vsub.s32 1, %v1711
    %v1713 = vrot.slane %v308, %v1712
    %v1714 = vlaneseq
    %v1715 = vshrl.u32 %v1714, 7
    %v1716 = vsub.s32 2, %v1715
    %v1717 = vrot.slane %v308, %v1716
    %v1718 = vlaneseq
    %v1719 = vshrl.u32 %v1718, 7
    %v1720 = vsub.s32 3, %v1719
    %v1721 = vrot.slane %v308, %v1720
    %v1722 = vlaneseq
    %v1723 = vshrl.u32 %v1722, 7
    %v1724 = vsub.s32 4, %v1723
    %v1725 = vrot.slane %v308, %v1724
    %v1726 = vlaneseq
    %v1727 = vshrl.u32 %v1726, 7
    %v1728 = vsub.s32 5, %v1727
    %v1729 = vrot.slane %v308, %v1728
    %v1730 = vlaneseq
    %v1731 = vshrl.u32 %v1730, 7
    %v1732 = vsub.s32 6, %v1731
    %v1733 = vrot.slane %v308, %v1732
    %v1734 = vlaneseq
    %v1735 = vshrl.u32 %v1734, 7
    %v1736 = vsub.s32 7, %v1735
    %v1737 = vrot.slane %v308, %v1736
    %v1738 = vlaneseq
    %v1739 = vshrl.u32 %v1738, 7
    %v1740 = vsub.s32 0, %v1739
    %v1741 = vrot.slane %v309, %v1740
    %v1742 = vlaneseq
    %v1743 = vshrl.u32 %v1742, 7
    %v1744 = vsub.s32 1, %v1743
    %v1745 = vrot.slane %v309, %v1744
    %v1746 = vlaneseq
    %v1747 = vshrl.u32 %v1746, 7
    %v1748 = vsub.s32 2, %v1747
    %v1749 = vrot.slane %v309, %v1748
    %v1750 = vlaneseq
    %v1751 = vshrl.u32 %v1750, 7
    %v1752 = vsub.s32 3, %v1751
    %v1753 = vrot.slane %v309, %v1752
    %v1754 = vlaneseq
    %v1755 = vshrl.u32 %v1754, 7
    %v1756 = vsub.s32 4, %v1755
    %v1757 = vrot.slane %v309, %v1756
    %v1758 = vlaneseq
    %v1759 = vshrl.u32 %v1758, 7
    %v1760 = vsub.s32 5, %v1759
    %v1761 = vrot.slane %v309, %v1760
    %v1762 = vlaneseq
    %v1763 = vshrl.u32 %v1762, 7
    %v1764 = vsub.s32 6, %v1763
    %v1765 = vrot.slane %v309, %v1764
    %v1766 = vlaneseq
    %v1767 = vshrl.u32 %v1766, 7
    %v1768 = vsub.s32 7, %v1767
    %v1769 = vrot.slane %v309, %v1768
    %v1770 = vlaneseq
    %v1771 = vshrl.u32 %v1770, 7
    %v1772 = vsub.s32 0, %v1771
    %v1773 = vrot.slane %v310, %v1772
    %v1774 = vlaneseq
    %v1775 = vshrl.u32 %v1774, 7
    %v1776 = vsub.s32 1, %v1775
    %v1777 = vrot.slane %v310, %v1776
    %v1778 = vlaneseq
    %v1779 = vshrl.u32 %v1778, 7
    %v1780 = vsub.s32 2, %v1779
    %v1781 = vrot.slane %v310, %v1780
    %v1782 = vlaneseq
    %v1783 = vshrl.u32 %v1782, 7
    %v1784 = vsub.s32 3, %v1783
    %v1785 = vrot.slane %v310, %v1784
    %v1786 = vlaneseq
    %v1787 = vshrl.u32 %v1786, 7
    %v1788 = vsub.s32 4, %v1787
    %v1789 = vrot.slane %v310, %v1788
    %v1790 = vlaneseq
    %v1791 = vshrl.u32 %v1790, 7
    %v1792 = vsub.s32 5, %v1791
    %v1793 = vrot.slane %v310, %v1792
    %v1794 = vlaneseq
    %v1795 = vshrl.u32 %v1794, 7
    %v1796 = vsub.s32 6, %v1795
    %v1797 = vrot.slane %v310, %v1796
    %v1798 = vlaneseq
    %v1799 = vshrl.u32 %v1798, 7
    %v1800 = vsub.s32 7, %v1799
    %v1801 = vrot.slane %v310, %v1800
    %v1802 = vlaneseq
    %v1803 = vshrl.u32 %v1802, 7
    %v1804 = vsub.s32 0, %v1803
    %v1805 = vrot.slane %v311, %v1804
    %v1806 = vlaneseq
    %v1807 = vshrl.u32 %v1806, 7
    %v1808 = vsub.s32 1, %v1807
    %v1809 = vrot.slane %v311, %v1808
    %v1810 = vlaneseq
    %v1811 = vshrl.u32 %v1810, 7
    %v1812 = vsub.s32 2, %v1811
    %v1813 = vrot.slane %v311, %v1812
    %v1814 = vlaneseq
    %v1815 = vshrl.u32 %v1814, 7
    %v1816 = vsub.s32 3, %v1815
    %v1817 = vrot.slane %v311, %v1816
    %v1818 = vlaneseq
    %v1819 = vshrl.u32 %v1818, 7
    %v1820 = vsub.s32 4, %v1819
    %v1821 = vrot.slane %v311, %v1820
    %v1822 = vlaneseq
    %v1823 = vshrl.u32 %v1822, 7
    %v1824 = vsub.s32 5, %v1823
    %v1825 = vrot.slane %v311, %v1824
    %v1826 = vlaneseq
    %v1827 = vshrl.u32 %v1826, 7
    %v1828 = vsub.s32 6, %v1827
    %v1829 = vrot.slane %v311, %v1828
    %v1830 = vlaneseq
    %v1831 = vshrl.u32 %v1830, 7
    %v1832 = vsub.s32 7, %v1831
    %v1833 = vrot.slane %v311, %v1832
    %v1834 = vlaneseq
    %v1835 = vshrl.u32 %v1834, 7
    %v1836 = vsub.s32 0, %v1835
    %v1837 = vrot.slane %v312, %v1836
    %v1838 = vlaneseq
    %v1839 = vshrl.u32 %v1838, 7
    %v1840 = vsub.s32 1, %v1839
    %v1841 = vrot.slane %v312, %v1840
    %v1842 = vlaneseq
    %v1843 = vshrl.u32 %v1842, 7
    %v1844 = vsub.s32 2, %v1843
    %v1845 = vrot.slane %v312, %v1844
    %v1846 = vlaneseq
    %v1847 = vshrl.u32 %v1846, 7
    %v1848 = vsub.s32 3, %v1847
    %v1849 = vrot.slane %v312, %v1848
    %v1850 = vlaneseq
    %v1851 = vshrl.u32 %v1850, 7
    %v1852 = vsub.s32 4, %v1851
    %v1853 = vrot.slane %v312, %v1852
    %v1854 = vlaneseq
    %v1855 = vshrl.u32 %v1854, 7
    %v1856 = vsub.s32 5, %v1855
    %v1857 = vrot.slane %v312, %v1856
    %v1858 = vlaneseq
    %v1859 = vshrl.u32 %v1858, 7
    %v1860 = vsub.s32 6, %v1859
    %v1861 = vrot.slane %v312, %v1860
    %v1862 = vlaneseq
    %v1863 = vshrl.u32 %v1862, 7
    %v1864 = vsub.s32 7, %v1863
    %v1865 = vrot.slane %v312, %v1864
    %v1866 = vlaneseq
    %v1867 = vshrl.u32 %v1866, 7
    %v1868 = vsub.s32 0, %v1867
    %v1869 = vrot.slane %v313, %v1868
    %v1870 = vlaneseq
    %v1871 = vshrl.u32 %v1870, 7
    %v1872 = vsub.s32 1, %v1871
    %v1873 = vrot.slane %v313, %v1872
    %v1874 = vlaneseq
    %v1875 = vshrl.u32 %v1874, 7
    %v1876 = vsub.s32 2, %v1875
    %v1877 = vrot.slane %v313, %v1876
    %v1878 = vlaneseq
    %v1879 = vshrl.u32 %v1878, 7
    %v1880 = vsub.s32 3, %v1879
    %v1881 = vrot.slane %v313, %v1880
    %v1882 = vlaneseq
    %v1883 = vshrl.u32 %v1882, 7
    %v1884 = vsub.s32 4, %v1883
    %v1885 = vrot.slane %v313, %v1884
    %v1886 = vlaneseq
    %v1887 = vshrl.u32 %v1886, 7
    %v1888 = vsub.s32 5, %v1887
    %v1889 = vrot.slane %v313, %v1888
    %v1890 = vlaneseq
    %v1891 = vshrl.u32 %v1890, 7
    %v1892 = vsub.s32 6, %v1891
    %v1893 = vrot.slane %v313, %v1892
    %v1894 = vlaneseq
    %v1895 = vshrl.u32 %v1894, 7
    %v1896 = vsub.s32 7, %v1895
    %v1897 = vrot.slane %v313, %v1896
    %v1898 = vcombine.low %v365, %v369
    %v1899 = vcombine.low %v373, %v377
    %v1900 = vcombine.low %v381, %v385
    %v1901 = vcombine.low %v389, %v393
    %v1903 = vunpack.c.l.s4 1966171168
    %v1904 = vunpack.c.0.s8 %v1903
    %v1905 = vlaneseq
    %v1906 = vshrl.u32 %v1905, 7
    %v1907 = vsub.s32 %v1904, %v1906
    %v1908 = vrot.slane %v1898, %v1907
    %v1910 = vunpack.c.l.s4 1966171168
    %v1911 = vunpack.c.0.s8 %v1910
    %v1912 = vlaneseq
    %v1913 = vshrl.u32 %v1912, 7
    %v1914 = vsub.s32 %v1911, %v1913
    %v1915 = vrot.slane %v1899, %v1914
    %v1917 = vunpack.c.l.s4 1966171168
    %v1918 = vunpack.c.0.s8 %v1917
    %v1919 = vlaneseq
    %v1920 = vshrl.u32 %v1919, 7
    %v1921 = vsub.s32 %v1918, %v1920
    %v1922 = vrot.slane %v1900, %v1921
    %v1924 = vunpack.c.l.s4 1966171168
    %v1925 = vunpack.c.0.s8 %v1924
    %v1926 = vlaneseq
    %v1927 = vshrl.u32 %v1926, 7
    %v1928 = vsub.s32 %v1925, %v1927
    %v1929 = vrot.slane %v1901, %v1928
    %v1930 = vcombine.low %v1908, %v1915
    %v1931 = vcombine.low %v1922, %v1929
    %v1933 = vunpack.c.l.s4 1966171168
    %v1934 = vunpack.c.0.s8 %v1933
    %v1935 = vlaneseq
    %v1936 = vshrl.u32 %v1935, 7
    %v1937 = vsub.s32 %v1934, %v1936
    %v1938 = vrot.slane %v1930, %v1937
    %v1940 = vunpack.c.l.s4 1966171168
    %v1941 = vunpack.c.0.s8 %v1940
    %v1942 = vlaneseq
    %v1943 = vshrl.u32 %v1942, 7
    %v1944 = vsub.s32 %v1941, %v1943
    %v1945 = vrot.slane %v1931, %v1944
    %v1946 = vcombine.low %v1938, %v1945
    %v1947 = vcombine.low %v397, %v401
    %v1948 = vcombine.low %v405, %v409
    %v1949 = vcombine.low %v413, %v417
    %v1950 = vcombine.low %v421, %v425
    %v1952 = vunpack.c.l.s4 1966171168
    %v1953 = vunpack.c.0.s8 %v1952
    %v1954 = vlaneseq
    %v1955 = vshrl.u32 %v1954, 7
    %v1956 = vsub.s32 %v1953, %v1955
    %v1957 = vrot.slane %v1947, %v1956
    %v1959 = vunpack.c.l.s4 1966171168
    %v1960 = vunpack.c.0.s8 %v1959
    %v1961 = vlaneseq
    %v1962 = vshrl.u32 %v1961, 7
    %v1963 = vsub.s32 %v1960, %v1962
    %v1964 = vrot.slane %v1948, %v1963
    %v1966 = vunpack.c.l.s4 1966171168
    %v1967 = vunpack.c.0.s8 %v1966
    %v1968 = vlaneseq
    %v1969 = vshrl.u32 %v1968, 7
    %v1970 = vsub.s32 %v1967, %v1969
    %v1971 = vrot.slane %v1949, %v1970
    %v1973 = vunpack.c.l.s4 1966171168
    %v1974 = vunpack.c.0.s8 %v1973
    %v1975 = vlaneseq
    %v1976 = vshrl.u32 %v1975, 7
    %v1977 = vsub.s32 %v1974, %v1976
    %v1978 = vrot.slane %v1950, %v1977
    %v1979 = vcombine.low %v1957, %v1964
    %v1980 = vcombine.low %v1971, %v1978
    %v1982 = vunpack.c.l.s4 1966171168
    %v1983 = vunpack.c.0.s8 %v1982
    %v1984 = vlaneseq
    %v1985 = vshrl.u32 %v1984, 7
    %v1986 = vsub.s32 %v1983, %v1985
    %v1987 = vrot.slane %v1979, %v1986
    %v1989 = vunpack.c.l.s4 1966171168
    %v1990 = vunpack.c.0.s8 %v1989
    %v1991 = vlaneseq
    %v1992 = vshrl.u32 %v1991, 7
    %v1993 = vsub.s32 %v1990, %v1992
    %v1994 = vrot.slane %v1980, %v1993
    %v1995 = vcombine.low %v1987, %v1994
    %v1996 = vcombine.low %v429, %v433
    %v1997 = vcombine.low %v437, %v441
    %v1998 = vcombine.low %v445, %v449
    %v1999 = vcombine.low %v453, %v457
    %v2001 = vunpack.c.l.s4 1966171168
    %v2002 = vunpack.c.0.s8 %v2001
    %v2003 = vlaneseq
    %v2004 = vshrl.u32 %v2003, 7
    %v2005 = vsub.s32 %v2002, %v2004
    %v2006 = vrot.slane %v1996, %v2005
    %v2008 = vunpack.c.l.s4 1966171168
    %v2009 = vunpack.c.0.s8 %v2008
    %v2010 = vlaneseq
    %v2011 = vshrl.u32 %v2010, 7
    %v2012 = vsub.s32 %v2009, %v2011
    %v2013 = vrot.slane %v1997, %v2012
    %v2015 = vunpack.c.l.s4 1966171168
    %v2016 = vunpack.c.0.s8 %v2015
    %v2017 = vlaneseq
    %v2018 = vshrl.u32 %v2017, 7
    %v2019 = vsub.s32 %v2016, %v2018
    %v2020 = vrot.slane %v1998, %v2019
    %v2022 = vunpack.c.l.s4 1966171168
    %v2023 = vunpack.c.0.s8 %v2022
    %v2024 = vlaneseq
    %v2025 = vshrl.u32 %v2024, 7
    %v2026 = vsub.s32 %v2023, %v2025
    %v2027 = vrot.slane %v1999, %v2026
    %v2028 = vcombine.low %v2006, %v2013
    %v2029 = vcombine.low %v2020, %v2027
    %v2031 = vunpack.c.l.s4 1966171168
    %v2032 = vunpack.c.0.s8 %v2031
    %v2033 = vlaneseq
    %v2034 = vshrl.u32 %v2033, 7
    %v2035 = vsub.s32 %v2032, %v2034
    %v2036 = vrot.slane %v2028, %v2035
    %v2038 = vunpack.c.l.s4 1966171168
    %v2039 = vunpack.c.0.s8 %v2038
    %v2040 = vlaneseq
    %v2041 = vshrl.u32 %v2040, 7
    %v2042 = vsub.s32 %v2039, %v2041
    %v2043 = vrot.slane %v2029, %v2042
    %v2044 = vcombine.low %v2036, %v2043
    %v2045 = vcombine.low %v461, %v465
    %v2046 = vcombine.low %v469, %v473
    %v2047 = vcombine.low %v477, %v481
    %v2048 = vcombine.low %v485, %v489
    %v2050 = vunpack.c.l.s4 1966171168
    %v2051 = vunpack.c.0.s8 %v2050
    %v2052 = vlaneseq
    %v2053 = vshrl.u32 %v2052, 7
    %v2054 = vsub.s32 %v2051, %v2053
    %v2055 = vrot.slane %v2045, %v2054
    %v2057 = vunpack.c.l.s4 1966171168
    %v2058 = vunpack.c.0.s8 %v2057
    %v2059 = vlaneseq
    %v2060 = vshrl.u32 %v2059, 7
    %v2061 = vsub.s32 %v2058, %v2060
    %v2062 = vrot.slane %v2046, %v2061
    %v2064 = vunpack.c.l.s4 1966171168
    %v2065 = vunpack.c.0.s8 %v2064
    %v2066 = vlaneseq
    %v2067 = vshrl.u32 %v2066, 7
    %v2068 = vsub.s32 %v2065, %v2067
    %v2069 = vrot.slane %v2047, %v2068
    %v2071 = vunpack.c.l.s4 1966171168
    %v2072 = vunpack.c.0.s8 %v2071
    %v2073 = vlaneseq
    %v2074 = vshrl.u32 %v2073, 7
    %v2075 = vsub.s32 %v2072, %v2074
    %v2076 = vrot.slane %v2048, %v2075
    %v2077 = vcombine.low %v2055, %v2062
    %v2078 = vcombine.low %v2069, %v2076
    %v2080 = vunpack.c.l.s4 1966171168
    %v2081 = vunpack.c.0.s8 %v2080
    %v2082 = vlaneseq
    %v2083 = vshrl.u32 %v2082, 7
    %v2084 = vsub.s32 %v2081, %v2083
    %v2085 = vrot.slane %v2077, %v2084
    %v2087 = vunpack.c.l.s4 1966171168
    %v2088 = vunpack.c.0.s8 %v2087
    %v2089 = vlaneseq
    %v2090 = vshrl.u32 %v2089, 7
    %v2091 = vsub.s32 %v2088, %v2090
    %v2092 = vrot.slane %v2078, %v2091
    %v2093 = vcombine.low %v2085, %v2092
    %v2094 = vcombine.low %v493, %v497
    %v2095 = vcombine.low %v501, %v505
    %v2096 = vcombine.low %v509, %v513
    %v2097 = vcombine.low %v517, %v521
    %v2099 = vunpack.c.l.s4 1966171168
    %v2100 = vunpack.c.0.s8 %v2099
    %v2101 = vlaneseq
    %v2102 = vshrl.u32 %v2101, 7
    %v2103 = vsub.s32 %v2100, %v2102
    %v2104 = vrot.slane %v2094, %v2103
    %v2106 = vunpack.c.l.s4 1966171168
    %v2107 = vunpack.c.0.s8 %v2106
    %v2108 = vlaneseq
    %v2109 = vshrl.u32 %v2108, 7
    %v2110 = vsub.s32 %v2107, %v2109
    %v2111 = vrot.slane %v2095, %v2110
    %v2113 = vunpack.c.l.s4 1966171168
    %v2114 = vunpack.c.0.s8 %v2113
    %v2115 = vlaneseq
    %v2116 = vshrl.u32 %v2115, 7
    %v2117 = vsub.s32 %v2114, %v2116
    %v2118 = vrot.slane %v2096, %v2117
    %v2120 = vunpack.c.l.s4 1966171168
    %v2121 = vunpack.c.0.s8 %v2120
    %v2122 = vlaneseq
    %v2123 = vshrl.u32 %v2122, 7
    %v2124 = vsub.s32 %v2121, %v2123
    %v2125 = vrot.slane %v2097, %v2124
    %v2126 = vcombine.low %v2104, %v2111
    %v2127 = vcombine.low %v2118, %v2125
    %v2129 = vunpack.c.l.s4 1966171168
    %v2130 = vunpack.c.0.s8 %v2129
    %v2131 = vlaneseq
    %v2132 = vshrl.u32 %v2131, 7
    %v2133 = vsub.s32 %v2130, %v2132
    %v2134 = vrot.slane %v2126, %v2133
    %v2136 = vunpack.c.l.s4 1966171168
    %v2137 = vunpack.c.0.s8 %v2136
    %v2138 = vlaneseq
    %v2139 = vshrl.u32 %v2138, 7
    %v2140 = vsub.s32 %v2137, %v2139
    %v2141 = vrot.slane %v2127, %v2140
    %v2142 = vcombine.low %v2134, %v2141
    %v2143 = vcombine.low %v525, %v529
    %v2144 = vcombine.low %v533, %v537
    %v2145 = vcombine.low %v541, %v545
    %v2146 = vcombine.low %v549, %v553
    %v2148 = vunpack.c.l.s4 1966171168
    %v2149 = vunpack.c.0.s8 %v2148
    %v2150 = vlaneseq
    %v2151 = vshrl.u32 %v2150, 7
    %v2152 = vsub.s32 %v2149, %v2151
    %v2153 = vrot.slane %v2143, %v2152
    %v2155 = vunpack.c.l.s4 1966171168
    %v2156 = vunpack.c.0.s8 %v2155
    %v2157 = vlaneseq
    %v2158 = vshrl.u32 %v2157, 7
    %v2159 = vsub.s32 %v2156, %v2158
    %v2160 = vrot.slane %v2144, %v2159
    %v2162 = vunpack.c.l.s4 1966171168
    %v2163 = vunpack.c.0.s8 %v2162
    %v2164 = vlaneseq
    %v2165 = vshrl.u32 %v2164, 7
    %v2166 = vsub.s32 %v2163, %v2165
    %v2167 = vrot.slane %v2145, %v2166
    %v2169 = vunpack.c.l.s4 1966171168
    %v2170 = vunpack.c.0.s8 %v2169
    %v2171 = vlaneseq
    %v2172 = vshrl.u32 %v2171, 7
    %v2173 = vsub.s32 %v2170, %v2172
    %v2174 = vrot.slane %v2146, %v2173
    %v2175 = vcombine.low %v2153, %v2160
    %v2176 = vcombine.low %v2167, %v2174
    %v2178 = vunpack.c.l.s4 1966171168
    %v2179 = vunpack.c.0.s8 %v2178
    %v2180 = vlaneseq
    %v2181 = vshrl.u32 %v2180, 7
    %v2182 = vsub.s32 %v2179, %v2181
    %v2183 = vrot.slane %v2175, %v2182
    %v2185 = vunpack.c.l.s4 1966171168
    %v2186 = vunpack.c.0.s8 %v2185
    %v2187 = vlaneseq
    %v2188 = vshrl.u32 %v2187, 7
    %v2189 = vsub.s32 %v2186, %v2188
    %v2190 = vrot.slane %v2176, %v2189
    %v2191 = vcombine.low %v2183, %v2190
    %v2192 = vcombine.low %v557, %v561
    %v2193 = vcombine.low %v565, %v569
    %v2194 = vcombine.low %v573, %v577
    %v2195 = vcombine.low %v581, %v585
    %v2197 = vunpack.c.l.s4 1966171168
    %v2198 = vunpack.c.0.s8 %v2197
    %v2199 = vlaneseq
    %v2200 = vshrl.u32 %v2199, 7
    %v2201 = vsub.s32 %v2198, %v2200
    %v2202 = vrot.slane %v2192, %v2201
    %v2204 = vunpack.c.l.s4 1966171168
    %v2205 = vunpack.c.0.s8 %v2204
    %v2206 = vlaneseq
    %v2207 = vshrl.u32 %v2206, 7
    %v2208 = vsub.s32 %v2205, %v2207
    %v2209 = vrot.slane %v2193, %v2208
    %v2211 = vunpack.c.l.s4 1966171168
    %v2212 = vunpack.c.0.s8 %v2211
    %v2213 = vlaneseq
    %v2214 = vshrl.u32 %v2213, 7
    %v2215 = vsub.s32 %v2212, %v2214
    %v2216 = vrot.slane %v2194, %v2215
    %v2218 = vunpack.c.l.s4 1966171168
    %v2219 = vunpack.c.0.s8 %v2218
    %v2220 = vlaneseq
    %v2221 = vshrl.u32 %v2220, 7
    %v2222 = vsub.s32 %v2219, %v2221
    %v2223 = vrot.slane %v2195, %v2222
    %v2224 = vcombine.low %v2202, %v2209
    %v2225 = vcombine.low %v2216, %v2223
    %v2227 = vunpack.c.l.s4 1966171168
    %v2228 = vunpack.c.0.s8 %v2227
    %v2229 = vlaneseq
    %v2230 = vshrl.u32 %v2229, 7
    %v2231 = vsub.s32 %v2228, %v2230
    %v2232 = vrot.slane %v2224, %v2231
    %v2234 = vunpack.c.l.s4 1966171168
    %v2235 = vunpack.c.0.s8 %v2234
    %v2236 = vlaneseq
    %v2237 = vshrl.u32 %v2236, 7
    %v2238 = vsub.s32 %v2235, %v2237
    %v2239 = vrot.slane %v2225, %v2238
    %v2240 = vcombine.low %v2232, %v2239
    %v2241 = vcombine.low %v589, %v593
    %v2242 = vcombine.low %v597, %v601
    %v2243 = vcombine.low %v605, %v609
    %v2244 = vcombine.low %v613, %v617
    %v2246 = vunpack.c.l.s4 1966171168
    %v2247 = vunpack.c.0.s8 %v2246
    %v2248 = vlaneseq
    %v2249 = vshrl.u32 %v2248, 7
    %v2250 = vsub.s32 %v2247, %v2249
    %v2251 = vrot.slane %v2241, %v2250
    %v2253 = vunpack.c.l.s4 1966171168
    %v2254 = vunpack.c.0.s8 %v2253
    %v2255 = vlaneseq
    %v2256 = vshrl.u32 %v2255, 7
    %v2257 = vsub.s32 %v2254, %v2256
    %v2258 = vrot.slane %v2242, %v2257
    %v2260 = vunpack.c.l.s4 1966171168
    %v2261 = vunpack.c.0.s8 %v2260
    %v2262 = vlaneseq
    %v2263 = vshrl.u32 %v2262, 7
    %v2264 = vsub.s32 %v2261, %v2263
    %v2265 = vrot.slane %v2243, %v2264
    %v2267 = vunpack.c.l.s4 1966171168
    %v2268 = vunpack.c.0.s8 %v2267
    %v2269 = vlaneseq
    %v2270 = vshrl.u32 %v2269, 7
    %v2271 = vsub.s32 %v2268, %v2270
    %v2272 = vrot.slane %v2244, %v2271
    %v2273 = vcombine.low %v2251, %v2258
    %v2274 = vcombine.low %v2265, %v2272
    %v2276 = vunpack.c.l.s4 1966171168
    %v2277 = vunpack.c.0.s8 %v2276
    %v2278 = vlaneseq
    %v2279 = vshrl.u32 %v2278, 7
    %v2280 = vsub.s32 %v2277, %v2279
    %v2281 = vrot.slane %v2273, %v2280
    %v2283 = vunpack.c.l.s4 1966171168
    %v2284 = vunpack.c.0.s8 %v2283
    %v2285 = vlaneseq
    %v2286 = vshrl.u32 %v2285, 7
    %v2287 = vsub.s32 %v2284, %v2286
    %v2288 = vrot.slane %v2274, %v2287
    %v2289 = vcombine.low %v2281, %v2288
    %v2290 = vcombine.low %v621, %v625
    %v2291 = vcombine.low %v629, %v633
    %v2292 = vcombine.low %v637, %v641
    %v2293 = vcombine.low %v645, %v649
    %v2295 = vunpack.c.l.s4 1966171168
    %v2296 = vunpack.c.0.s8 %v2295
    %v2297 = vlaneseq
    %v2298 = vshrl.u32 %v2297, 7
    %v2299 = vsub.s32 %v2296, %v2298
    %v2300 = vrot.slane %v2290, %v2299
    %v2302 = vunpack.c.l.s4 1966171168
    %v2303 = vunpack.c.0.s8 %v2302
    %v2304 = vlaneseq
    %v2305 = vshrl.u32 %v2304, 7
    %v2306 = vsub.s32 %v2303, %v2305
    %v2307 = vrot.slane %v2291, %v2306
    %v2309 = vunpack.c.l.s4 1966171168
    %v2310 = vunpack.c.0.s8 %v2309
    %v2311 = vlaneseq
    %v2312 = vshrl.u32 %v2311, 7
    %v2313 = vsub.s32 %v2310, %v2312
    %v2314 = vrot.slane %v2292, %v2313
    %v2316 = vunpack.c.l.s4 1966171168
    %v2317 = vunpack.c.0.s8 %v2316
    %v2318 = vlaneseq
    %v2319 = vshrl.u32 %v2318, 7
    %v2320 = vsub.s32 %v2317, %v2319
    %v2321 = vrot.slane %v2293, %v2320
    %v2322 = vcombine.low %v2300, %v2307
    %v2323 = vcombine.low %v2314, %v2321
    %v2325 = vunpack.c.l.s4 1966171168
    %v2326 = vunpack.c.0.s8 %v2325
    %v2327 = vlaneseq
    %v2328 = vshrl.u32 %v2327, 7
    %v2329 = vsub.s32 %v2326, %v2328
    %v2330 = vrot.slane %v2322, %v2329
    %v2332 = vunpack.c.l.s4 1966171168
    %v2333 = vunpack.c.0.s8 %v2332
    %v2334 = vlaneseq
    %v2335 = vshrl.u32 %v2334, 7
    %v2336 = vsub.s32 %v2333, %v2335
    %v2337 = vrot.slane %v2323, %v2336
    %v2338 = vcombine.low %v2330, %v2337
    %v2339 = vcombine.low %v653, %v657
    %v2340 = vcombine.low %v661, %v665
    %v2341 = vcombine.low %v669, %v673
    %v2342 = vcombine.low %v677, %v681
    %v2344 = vunpack.c.l.s4 1966171168
    %v2345 = vunpack.c.0.s8 %v2344
    %v2346 = vlaneseq
    %v2347 = vshrl.u32 %v2346, 7
    %v2348 = vsub.s32 %v2345, %v2347
    %v2349 = vrot.slane %v2339, %v2348
    %v2351 = vunpack.c.l.s4 1966171168
    %v2352 = vunpack.c.0.s8 %v2351
    %v2353 = vlaneseq
    %v2354 = vshrl.u32 %v2353, 7
    %v2355 = vsub.s32 %v2352, %v2354
    %v2356 = vrot.slane %v2340, %v2355
    %v2358 = vunpack.c.l.s4 1966171168
    %v2359 = vunpack.c.0.s8 %v2358
    %v2360 = vlaneseq
    %v2361 = vshrl.u32 %v2360, 7
    %v2362 = vsub.s32 %v2359, %v2361
    %v2363 = vrot.slane %v2341, %v2362
    %v2365 = vunpack.c.l.s4 1966171168
    %v2366 = vunpack.c.0.s8 %v2365
    %v2367 = vlaneseq
    %v2368 = vshrl.u32 %v2367, 7
    %v2369 = vsub.s32 %v2366, %v2368
    %v2370 = vrot.slane %v2342, %v2369
    %v2371 = vcombine.low %v2349, %v2356
    %v2372 = vcombine.low %v2363, %v2370
    %v2374 = vunpack.c.l.s4 1966171168
    %v2375 = vunpack.c.0.s8 %v2374
    %v2376 = vlaneseq
    %v2377 = vshrl.u32 %v2376, 7
    %v2378 = vsub.s32 %v2375, %v2377
    %v2379 = vrot.slane %v2371, %v2378
    %v2381 = vunpack.c.l.s4 1966171168
    %v2382 = vunpack.c.0.s8 %v2381
    %v2383 = vlaneseq
    %v2384 = vshrl.u32 %v2383, 7
    %v2385 = vsub.s32 %v2382, %v2384
    %v2386 = vrot.slane %v2372, %v2385
    %v2387 = vcombine.low %v2379, %v2386
    %v2388 = vcombine.low %v685, %v689
    %v2389 = vcombine.low %v693, %v697
    %v2390 = vcombine.low %v701, %v705
    %v2391 = vcombine.low %v709, %v713
    %v2393 = vunpack.c.l.s4 1966171168
    %v2394 = vunpack.c.0.s8 %v2393
    %v2395 = vlaneseq
    %v2396 = vshrl.u32 %v2395, 7
    %v2397 = vsub.s32 %v2394, %v2396
    %v2398 = vrot.slane %v2388, %v2397
    %v2400 = vunpack.c.l.s4 1966171168
    %v2401 = vunpack.c.0.s8 %v2400
    %v2402 = vlaneseq
    %v2403 = vshrl.u32 %v2402, 7
    %v2404 = vsub.s32 %v2401, %v2403
    %v2405 = vrot.slane %v2389, %v2404
    %v2407 = vunpack.c.l.s4 1966171168
    %v2408 = vunpack.c.0.s8 %v2407
    %v2409 = vlaneseq
    %v2410 = vshrl.u32 %v2409, 7
    %v2411 = vsub.s32 %v2408, %v2410
    %v2412 = vrot.slane %v2390, %v2411
    %v2414 = vunpack.c.l.s4 1966171168
    %v2415 = vunpack.c.0.s8 %v2414
    %v2416 = vlaneseq
    %v2417 = vshrl.u32 %v2416, 7
    %v2418 = vsub.s32 %v2415, %v2417
    %v2419 = vrot.slane %v2391, %v2418
    %v2420 = vcombine.low %v2398, %v2405
    %v2421 = vcombine.low %v2412, %v2419
    %v2423 = vunpack.c.l.s4 1966171168
    %v2424 = vunpack.c.0.s8 %v2423
    %v2425 = vlaneseq
    %v2426 = vshrl.u32 %v2425, 7
    %v2427 = vsub.s32 %v2424, %v2426
    %v2428 = vrot.slane %v2420, %v2427
    %v2430 = vunpack.c.l.s4 1966171168
    %v2431 = vunpack.c.0.s8 %v2430
    %v2432 = vlaneseq
    %v2433 = vshrl.u32 %v2432, 7
    %v2434 = vsub.s32 %v2431, %v2433
    %v2435 = vrot.slane %v2421, %v2434
    %v2436 = vcombine.low %v2428, %v2435
    %v2437 = vcombine.low %v717, %v721
    %v2438 = vcombine.low %v725, %v729
    %v2439 = vcombine.low %v733, %v737
    %v2440 = vcombine.low %v741, %v745
    %v2442 = vunpack.c.l.s4 1966171168
    %v2443 = vunpack.c.0.s8 %v2442
    %v2444 = vlaneseq
    %v2445 = vshrl.u32 %v2444, 7
    %v2446 = vsub.s32 %v2443, %v2445
    %v2447 = vrot.slane %v2437, %v2446
    %v2449 = vunpack.c.l.s4 1966171168
    %v2450 = vunpack.c.0.s8 %v2449
    %v2451 = vlaneseq
    %v2452 = vshrl.u32 %v2451, 7
    %v2453 = vsub.s32 %v2450, %v2452
    %v2454 = vrot.slane %v2438, %v2453
    %v2456 = vunpack.c.l.s4 1966171168
    %v2457 = vunpack.c.0.s8 %v2456
    %v2458 = vlaneseq
    %v2459 = vshrl.u32 %v2458, 7
    %v2460 = vsub.s32 %v2457, %v2459
    %v2461 = vrot.slane %v2439, %v2460
    %v2463 = vunpack.c.l.s4 1966171168
    %v2464 = vunpack.c.0.s8 %v2463
    %v2465 = vlaneseq
    %v2466 = vshrl.u32 %v2465, 7
    %v2467 = vsub.s32 %v2464, %v2466
    %v2468 = vrot.slane %v2440, %v2467
    %v2469 = vcombine.low %v2447, %v2454
    %v2470 = vcombine.low %v2461, %v2468
    %v2472 = vunpack.c.l.s4 1966171168
    %v2473 = vunpack.c.0.s8 %v2472
    %v2474 = vlaneseq
    %v2475 = vshrl.u32 %v2474, 7
    %v2476 = vsub.s32 %v2473, %v2475
    %v2477 = vrot.slane %v2469, %v2476
    %v2479 = vunpack.c.l.s4 1966171168
    %v2480 = vunpack.c.0.s8 %v2479
    %v2481 = vlaneseq
    %v2482 = vshrl.u32 %v2481, 7
    %v2483 = vsub.s32 %v2480, %v2482
    %v2484 = vrot.slane %v2470, %v2483
    %v2485 = vcombine.low %v2477, %v2484
    %v2486 = vcombine.low %v749, %v753
    %v2487 = vcombine.low %v757, %v761
    %v2488 = vcombine.low %v765, %v769
    %v2489 = vcombine.low %v773, %v777
    %v2491 = vunpack.c.l.s4 1966171168
    %v2492 = vunpack.c.0.s8 %v2491
    %v2493 = vlaneseq
    %v2494 = vshrl.u32 %v2493, 7
    %v2495 = vsub.s32 %v2492, %v2494
    %v2496 = vrot.slane %v2486, %v2495
    %v2498 = vunpack.c.l.s4 1966171168
    %v2499 = vunpack.c.0.s8 %v2498
    %v2500 = vlaneseq
    %v2501 = vshrl.u32 %v2500, 7
    %v2502 = vsub.s32 %v2499, %v2501
    %v2503 = vrot.slane %v2487, %v2502
    %v2505 = vunpack.c.l.s4 1966171168
    %v2506 = vunpack.c.0.s8 %v2505
    %v2507 = vlaneseq
    %v2508 = vshrl.u32 %v2507, 7
    %v2509 = vsub.s32 %v2506, %v2508
    %v2510 = vrot.slane %v2488, %v2509
    %v2512 = vunpack.c.l.s4 1966171168
    %v2513 = vunpack.c.0.s8 %v2512
    %v2514 = vlaneseq
    %v2515 = vshrl.u32 %v2514, 7
    %v2516 = vsub.s32 %v2513, %v2515
    %v2517 = vrot.slane %v2489, %v2516
    %v2518 = vcombine.low %v2496, %v2503
    %v2519 = vcombine.low %v2510, %v2517
    %v2521 = vunpack.c.l.s4 1966171168
    %v2522 = vunpack.c.0.s8 %v2521
    %v2523 = vlaneseq
    %v2524 = vshrl.u32 %v2523, 7
    %v2525 = vsub.s32 %v2522, %v2524
    %v2526 = vrot.slane %v2518, %v2525
    %v2528 = vunpack.c.l.s4 1966171168
    %v2529 = vunpack.c.0.s8 %v2528
    %v2530 = vlaneseq
    %v2531 = vshrl.u32 %v2530, 7
    %v2532 = vsub.s32 %v2529, %v2531
    %v2533 = vrot.slane %v2519, %v2532
    %v2534 = vcombine.low %v2526, %v2533
    %v2535 = vcombine.low %v781, %v785
    %v2536 = vcombine.low %v789, %v793
    %v2537 = vcombine.low %v797, %v801
    %v2538 = vcombine.low %v805, %v809
    %v2540 = vunpack.c.l.s4 1966171168
    %v2541 = vunpack.c.0.s8 %v2540
    %v2542 = vlaneseq
    %v2543 = vshrl.u32 %v2542, 7
    %v2544 = vsub.s32 %v2541, %v2543
    %v2545 = vrot.slane %v2535, %v2544
    %v2547 = vunpack.c.l.s4 1966171168
    %v2548 = vunpack.c.0.s8 %v2547
    %v2549 = vlaneseq
    %v2550 = vshrl.u32 %v2549, 7
    %v2551 = vsub.s32 %v2548, %v2550
    %v2552 = vrot.slane %v2536, %v2551
    %v2554 = vunpack.c.l.s4 1966171168
    %v2555 = vunpack.c.0.s8 %v2554
    %v2556 = vlaneseq
    %v2557 = vshrl.u32 %v2556, 7
    %v2558 = vsub.s32 %v2555, %v2557
    %v2559 = vrot.slane %v2537, %v2558
    %v2561 = vunpack.c.l.s4 1966171168
    %v2562 = vunpack.c.0.s8 %v2561
    %v2563 = vlaneseq
    %v2564 = vshrl.u32 %v2563, 7
    %v2565 = vsub.s32 %v2562, %v2564
    %v2566 = vrot.slane %v2538, %v2565
    %v2567 = vcombine.low %v2545, %v2552
    %v2568 = vcombine.low %v2559, %v2566
    %v2570 = vunpack.c.l.s4 1966171168
    %v2571 = vunpack.c.0.s8 %v2570
    %v2572 = vlaneseq
    %v2573 = vshrl.u32 %v2572, 7
    %v2574 = vsub.s32 %v2571, %v2573
    %v2575 = vrot.slane %v2567, %v2574
    %v2577 = vunpack.c.l.s4 1966171168
    %v2578 = vunpack.c.0.s8 %v2577
    %v2579 = vlaneseq
    %v2580 = vshrl.u32 %v2579, 7
    %v2581 = vsub.s32 %v2578, %v2580
    %v2582 = vrot.slane %v2568, %v2581
    %v2583 = vcombine.low %v2575, %v2582
    %v2584 = vcombine.low %v813, %v817
    %v2585 = vcombine.low %v821, %v825
    %v2586 = vcombine.low %v829, %v833
    %v2587 = vcombine.low %v837, %v841
    %v2589 = vunpack.c.l.s4 1966171168
    %v2590 = vunpack.c.0.s8 %v2589
    %v2591 = vlaneseq
    %v2592 = vshrl.u32 %v2591, 7
    %v2593 = vsub.s32 %v2590, %v2592
    %v2594 = vrot.slane %v2584, %v2593
    %v2596 = vunpack.c.l.s4 1966171168
    %v2597 = vunpack.c.0.s8 %v2596
    %v2598 = vlaneseq
    %v2599 = vshrl.u32 %v2598, 7
    %v2600 = vsub.s32 %v2597, %v2599
    %v2601 = vrot.slane %v2585, %v2600
    %v2603 = vunpack.c.l.s4 1966171168
    %v2604 = vunpack.c.0.s8 %v2603
    %v2605 = vlaneseq
    %v2606 = vshrl.u32 %v2605, 7
    %v2607 = vsub.s32 %v2604, %v2606
    %v2608 = vrot.slane %v2586, %v2607
    %v2610 = vunpack.c.l.s4 1966171168
    %v2611 = vunpack.c.0.s8 %v2610
    %v2612 = vlaneseq
    %v2613 = vshrl.u32 %v2612, 7
    %v2614 = vsub.s32 %v2611, %v2613
    %v2615 = vrot.slane %v2587, %v2614
    %v2616 = vcombine.low %v2594, %v2601
    %v2617 = vcombine.low %v2608, %v2615
    %v2619 = vunpack.c.l.s4 1966171168
    %v2620 = vunpack.c.0.s8 %v2619
    %v2621 = vlaneseq
    %v2622 = vshrl.u32 %v2621, 7
    %v2623 = vsub.s32 %v2620, %v2622
    %v2624 = vrot.slane %v2616, %v2623
    %v2626 = vunpack.c.l.s4 1966171168
    %v2627 = vunpack.c.0.s8 %v2626
    %v2628 = vlaneseq
    %v2629 = vshrl.u32 %v2628, 7
    %v2630 = vsub.s32 %v2627, %v2629
    %v2631 = vrot.slane %v2617, %v2630
    %v2632 = vcombine.low %v2624, %v2631
    %v2633 = vcombine.low %v845, %v849
    %v2634 = vcombine.low %v853, %v857
    %v2635 = vcombine.low %v861, %v865
    %v2636 = vcombine.low %v869, %v873
    %v2638 = vunpack.c.l.s4 1966171168
    %v2639 = vunpack.c.0.s8 %v2638
    %v2640 = vlaneseq
    %v2641 = vshrl.u32 %v2640, 7
    %v2642 = vsub.s32 %v2639, %v2641
    %v2643 = vrot.slane %v2633, %v2642
    %v2645 = vunpack.c.l.s4 1966171168
    %v2646 = vunpack.c.0.s8 %v2645
    %v2647 = vlaneseq
    %v2648 = vshrl.u32 %v2647, 7
    %v2649 = vsub.s32 %v2646, %v2648
    %v2650 = vrot.slane %v2634, %v2649
    %v2652 = vunpack.c.l.s4 1966171168
    %v2653 = vunpack.c.0.s8 %v2652
    %v2654 = vlaneseq
    %v2655 = vshrl.u32 %v2654, 7
    %v2656 = vsub.s32 %v2653, %v2655
    %v2657 = vrot.slane %v2635, %v2656
    %v2659 = vunpack.c.l.s4 1966171168
    %v2660 = vunpack.c.0.s8 %v2659
    %v2661 = vlaneseq
    %v2662 = vshrl.u32 %v2661, 7
    %v2663 = vsub.s32 %v2660, %v2662
    %v2664 = vrot.slane %v2636, %v2663
    %v2665 = vcombine.low %v2643, %v2650
    %v2666 = vcombine.low %v2657, %v2664
    %v2668 = vunpack.c.l.s4 1966171168
    %v2669 = vunpack.c.0.s8 %v2668
    %v2670 = vlaneseq
    %v2671 = vshrl.u32 %v2670, 7
    %v2672 = vsub.s32 %v2669, %v2671
    %v2673 = vrot.slane %v2665, %v2672
    %v2675 = vunpack.c.l.s4 1966171168
    %v2676 = vunpack.c.0.s8 %v2675
    %v2677 = vlaneseq
    %v2678 = vshrl.u32 %v2677, 7
    %v2679 = vsub.s32 %v2676, %v2678
    %v2680 = vrot.slane %v2666, %v2679
    %v2681 = vcombine.low %v2673, %v2680
    %v2682 = vcombine.low %v877, %v881
    %v2683 = vcombine.low %v885, %v889
    %v2684 = vcombine.low %v893, %v897
    %v2685 = vcombine.low %v901, %v905
    %v2687 = vunpack.c.l.s4 1966171168
    %v2688 = vunpack.c.0.s8 %v2687
    %v2689 = vlaneseq
    %v2690 = vshrl.u32 %v2689, 7
    %v2691 = vsub.s32 %v2688, %v2690
    %v2692 = vrot.slane %v2682, %v2691
    %v2694 = vunpack.c.l.s4 1966171168
    %v2695 = vunpack.c.0.s8 %v2694
    %v2696 = vlaneseq
    %v2697 = vshrl.u32 %v2696, 7
    %v2698 = vsub.s32 %v2695, %v2697
    %v2699 = vrot.slane %v2683, %v2698
    %v2701 = vunpack.c.l.s4 1966171168
    %v2702 = vunpack.c.0.s8 %v2701
    %v2703 = vlaneseq
    %v2704 = vshrl.u32 %v2703, 7
    %v2705 = vsub.s32 %v2702, %v2704
    %v2706 = vrot.slane %v2684, %v2705
    %v2708 = vunpack.c.l.s4 1966171168
    %v2709 = vunpack.c.0.s8 %v2708
    %v2710 = vlaneseq
    %v2711 = vshrl.u32 %v2710, 7
    %v2712 = vsub.s32 %v2709, %v2711
    %v2713 = vrot.slane %v2685, %v2712
    %v2714 = vcombine.low %v2692, %v2699
    %v2715 = vcombine.low %v2706, %v2713
    %v2717 = vunpack.c.l.s4 1966171168
    %v2718 = vunpack.c.0.s8 %v2717
    %v2719 = vlaneseq
    %v2720 = vshrl.u32 %v2719, 7
    %v2721 = vsub.s32 %v2718, %v2720
    %v2722 = vrot.slane %v2714, %v2721
    %v2724 = vunpack.c.l.s4 1966171168
    %v2725 = vunpack.c.0.s8 %v2724
    %v2726 = vlaneseq
    %v2727 = vshrl.u32 %v2726, 7
    %v2728 = vsub.s32 %v2725, %v2727
    %v2729 = vrot.slane %v2715, %v2728
    %v2730 = vcombine.low %v2722, %v2729
    %v2731 = vcombine.low %v909, %v913
    %v2732 = vcombine.low %v917, %v921
    %v2733 = vcombine.low %v925, %v929
    %v2734 = vcombine.low %v933, %v937
    %v2736 = vunpack.c.l.s4 1966171168
    %v2737 = vunpack.c.0.s8 %v2736
    %v2738 = vlaneseq
    %v2739 = vshrl.u32 %v2738, 7
    %v2740 = vsub.s32 %v2737, %v2739
    %v2741 = vrot.slane %v2731, %v2740
    %v2743 = vunpack.c.l.s4 1966171168
    %v2744 = vunpack.c.0.s8 %v2743
    %v2745 = vlaneseq
    %v2746 = vshrl.u32 %v2745, 7
    %v2747 = vsub.s32 %v2744, %v2746
    %v2748 = vrot.slane %v2732, %v2747
    %v2750 = vunpack.c.l.s4 1966171168
    %v2751 = vunpack.c.0.s8 %v2750
    %v2752 = vlaneseq
    %v2753 = vshrl.u32 %v2752, 7
    %v2754 = vsub.s32 %v2751, %v2753
    %v2755 = vrot.slane %v2733, %v2754
    %v2757 = vunpack.c.l.s4 1966171168
    %v2758 = vunpack.c.0.s8 %v2757
    %v2759 = vlaneseq
    %v2760 = vshrl.u32 %v2759, 7
    %v2761 = vsub.s32 %v2758, %v2760
    %v2762 = vrot.slane %v2734, %v2761
    %v2763 = vcombine.low %v2741, %v2748
    %v2764 = vcombine.low %v2755, %v2762
    %v2766 = vunpack.c.l.s4 1966171168
    %v2767 = vunpack.c.0.s8 %v2766
    %v2768 = vlaneseq
    %v2769 = vshrl.u32 %v2768, 7
    %v2770 = vsub.s32 %v2767, %v2769
    %v2771 = vrot.slane %v2763, %v2770
    %v2773 = vunpack.c.l.s4 1966171168
    %v2774 = vunpack.c.0.s8 %v2773
    %v2775 = vlaneseq
    %v2776 = vshrl.u32 %v2775, 7
    %v2777 = vsub.s32 %v2774, %v2776
    %v2778 = vrot.slane %v2764, %v2777
    %v2779 = vcombine.low %v2771, %v2778
    %v2780 = vcombine.low %v941, %v945
    %v2781 = vcombine.low %v949, %v953
    %v2782 = vcombine.low %v957, %v961
    %v2783 = vcombine.low %v965, %v969
    %v2785 = vunpack.c.l.s4 1966171168
    %v2786 = vunpack.c.0.s8 %v2785
    %v2787 = vlaneseq
    %v2788 = vshrl.u32 %v2787, 7
    %v2789 = vsub.s32 %v2786, %v2788
    %v2790 = vrot.slane %v2780, %v2789
    %v2792 = vunpack.c.l.s4 1966171168
    %v2793 = vunpack.c.0.s8 %v2792
    %v2794 = vlaneseq
    %v2795 = vshrl.u32 %v2794, 7
    %v2796 = vsub.s32 %v2793, %v2795
    %v2797 = vrot.slane %v2781, %v2796
    %v2799 = vunpack.c.l.s4 1966171168
    %v2800 = vunpack.c.0.s8 %v2799
    %v2801 = vlaneseq
    %v2802 = vshrl.u32 %v2801, 7
    %v2803 = vsub.s32 %v2800, %v2802
    %v2804 = vrot.slane %v2782, %v2803
    %v2806 = vunpack.c.l.s4 1966171168
    %v2807 = vunpack.c.0.s8 %v2806
    %v2808 = vlaneseq
    %v2809 = vshrl.u32 %v2808, 7
    %v2810 = vsub.s32 %v2807, %v2809
    %v2811 = vrot.slane %v2783, %v2810
    %v2812 = vcombine.low %v2790, %v2797
    %v2813 = vcombine.low %v2804, %v2811
    %v2815 = vunpack.c.l.s4 1966171168
    %v2816 = vunpack.c.0.s8 %v2815
    %v2817 = vlaneseq
    %v2818 = vshrl.u32 %v2817, 7
    %v2819 = vsub.s32 %v2816, %v2818
    %v2820 = vrot.slane %v2812, %v2819
    %v2822 = vunpack.c.l.s4 1966171168
    %v2823 = vunpack.c.0.s8 %v2822
    %v2824 = vlaneseq
    %v2825 = vshrl.u32 %v2824, 7
    %v2826 = vsub.s32 %v2823, %v2825
    %v2827 = vrot.slane %v2813, %v2826
    %v2828 = vcombine.low %v2820, %v2827
    %v2829 = vcombine.low %v973, %v977
    %v2830 = vcombine.low %v981, %v985
    %v2831 = vcombine.low %v989, %v993
    %v2832 = vcombine.low %v997, %v1001
    %v2834 = vunpack.c.l.s4 1966171168
    %v2835 = vunpack.c.0.s8 %v2834
    %v2836 = vlaneseq
    %v2837 = vshrl.u32 %v2836, 7
    %v2838 = vsub.s32 %v2835, %v2837
    %v2839 = vrot.slane %v2829, %v2838
    %v2841 = vunpack.c.l.s4 1966171168
    %v2842 = vunpack.c.0.s8 %v2841
    %v2843 = vlaneseq
    %v2844 = vshrl.u32 %v2843, 7
    %v2845 = vsub.s32 %v2842, %v2844
    %v2846 = vrot.slane %v2830, %v2845
    %v2848 = vunpack.c.l.s4 1966171168
    %v2849 = vunpack.c.0.s8 %v2848
    %v2850 = vlaneseq
    %v2851 = vshrl.u32 %v2850, 7
    %v2852 = vsub.s32 %v2849, %v2851
    %v2853 = vrot.slane %v2831, %v2852
    %v2855 = vunpack.c.l.s4 1966171168
    %v2856 = vunpack.c.0.s8 %v2855
    %v2857 = vlaneseq
    %v2858 = vshrl.u32 %v2857, 7
    %v2859 = vsub.s32 %v2856, %v2858
    %v2860 = vrot.slane %v2832, %v2859
    %v2861 = vcombine.low %v2839, %v2846
    %v2862 = vcombine.low %v2853, %v2860
    %v2864 = vunpack.c.l.s4 1966171168
    %v2865 = vunpack.c.0.s8 %v2864
    %v2866 = vlaneseq
    %v2867 = vshrl.u32 %v2866, 7
    %v2868 = vsub.s32 %v2865, %v2867
    %v2869 = vrot.slane %v2861, %v2868
    %v2871 = vunpack.c.l.s4 1966171168
    %v2872 = vunpack.c.0.s8 %v2871
    %v2873 = vlaneseq
    %v2874 = vshrl.u32 %v2873, 7
    %v2875 = vsub.s32 %v2872, %v2874
    %v2876 = vrot.slane %v2862, %v2875
    %v2877 = vcombine.low %v2869, %v2876
    %v2878 = vcombine.low %v1005, %v1009
    %v2879 = vcombine.low %v1013, %v1017
    %v2880 = vcombine.low %v1021, %v1025
    %v2881 = vcombine.low %v1029, %v1033
    %v2883 = vunpack.c.l.s4 1966171168
    %v2884 = vunpack.c.0.s8 %v2883
    %v2885 = vlaneseq
    %v2886 = vshrl.u32 %v2885, 7
    %v2887 = vsub.s32 %v2884, %v2886
    %v2888 = vrot.slane %v2878, %v2887
    %v2890 = vunpack.c.l.s4 1966171168
    %v2891 = vunpack.c.0.s8 %v2890
    %v2892 = vlaneseq
    %v2893 = vshrl.u32 %v2892, 7
    %v2894 = vsub.s32 %v2891, %v2893
    %v2895 = vrot.slane %v2879, %v2894
    %v2897 = vunpack.c.l.s4 1966171168
    %v2898 = vunpack.c.0.s8 %v2897
    %v2899 = vlaneseq
    %v2900 = vshrl.u32 %v2899, 7
    %v2901 = vsub.s32 %v2898, %v2900
    %v2902 = vrot.slane %v2880, %v2901
    %v2904 = vunpack.c.l.s4 1966171168
    %v2905 = vunpack.c.0.s8 %v2904
    %v2906 = vlaneseq
    %v2907 = vshrl.u32 %v2906, 7
    %v2908 = vsub.s32 %v2905, %v2907
    %v2909 = vrot.slane %v2881, %v2908
    %v2910 = vcombine.low %v2888, %v2895
    %v2911 = vcombine.low %v2902, %v2909
    %v2913 = vunpack.c.l.s4 1966171168
    %v2914 = vunpack.c.0.s8 %v2913
    %v2915 = vlaneseq
    %v2916 = vshrl.u32 %v2915, 7
    %v2917 = vsub.s32 %v2914, %v2916
    %v2918 = vrot.slane %v2910, %v2917
    %v2920 = vunpack.c.l.s4 1966171168
    %v2921 = vunpack.c.0.s8 %v2920
    %v2922 = vlaneseq
    %v2923 = vshrl.u32 %v2922, 7
    %v2924 = vsub.s32 %v2921, %v2923
    %v2925 = vrot.slane %v2911, %v2924
    %v2926 = vcombine.low %v2918, %v2925
    %v2927 = vcombine.low %v1037, %v1041
    %v2928 = vcombine.low %v1045, %v1049
    %v2929 = vcombine.low %v1053, %v1057
    %v2930 = vcombine.low %v1061, %v1065
    %v2932 = vunpack.c.l.s4 1966171168
    %v2933 = vunpack.c.0.s8 %v2932
    %v2934 = vlaneseq
    %v2935 = vshrl.u32 %v2934, 7
    %v2936 = vsub.s32 %v2933, %v2935
    %v2937 = vrot.slane %v2927, %v2936
    %v2939 = vunpack.c.l.s4 1966171168
    %v2940 = vunpack.c.0.s8 %v2939
    %v2941 = vlaneseq
    %v2942 = vshrl.u32 %v2941, 7
    %v2943 = vsub.s32 %v2940, %v2942
    %v2944 = vrot.slane %v2928, %v2943
    %v2946 = vunpack.c.l.s4 1966171168
    %v2947 = vunpack.c.0.s8 %v2946
    %v2948 = vlaneseq
    %v2949 = vshrl.u32 %v2948, 7
    %v2950 = vsub.s32 %v2947, %v2949
    %v2951 = vrot.slane %v2929, %v2950
    %v2953 = vunpack.c.l.s4 1966171168
    %v2954 = vunpack.c.0.s8 %v2953
    %v2955 = vlaneseq
    %v2956 = vshrl.u32 %v2955, 7
    %v2957 = vsub.s32 %v2954, %v2956
    %v2958 = vrot.slane %v2930, %v2957
    %v2959 = vcombine.low %v2937, %v2944
    %v2960 = vcombine.low %v2951, %v2958
    %v2962 = vunpack.c.l.s4 1966171168
    %v2963 = vunpack.c.0.s8 %v2962
    %v2964 = vlaneseq
    %v2965 = vshrl.u32 %v2964, 7
    %v2966 = vsub.s32 %v2963, %v2965
    %v2967 = vrot.slane %v2959, %v2966
    %v2969 = vunpack.c.l.s4 1966171168
    %v2970 = vunpack.c.0.s8 %v2969
    %v2971 = vlaneseq
    %v2972 = vshrl.u32 %v2971, 7
    %v2973 = vsub.s32 %v2970, %v2972
    %v2974 = vrot.slane %v2960, %v2973
    %v2975 = vcombine.low %v2967, %v2974
    %v2976 = vcombine.low %v1069, %v1073
    %v2977 = vcombine.low %v1077, %v1081
    %v2978 = vcombine.low %v1085, %v1089
    %v2979 = vcombine.low %v1093, %v1097
    %v2981 = vunpack.c.l.s4 1966171168
    %v2982 = vunpack.c.0.s8 %v2981
    %v2983 = vlaneseq
    %v2984 = vshrl.u32 %v2983, 7
    %v2985 = vsub.s32 %v2982, %v2984
    %v2986 = vrot.slane %v2976, %v2985
    %v2988 = vunpack.c.l.s4 1966171168
    %v2989 = vunpack.c.0.s8 %v2988
    %v2990 = vlaneseq
    %v2991 = vshrl.u32 %v2990, 7
    %v2992 = vsub.s32 %v2989, %v2991
    %v2993 = vrot.slane %v2977, %v2992
    %v2995 = vunpack.c.l.s4 1966171168
    %v2996 = vunpack.c.0.s8 %v2995
    %v2997 = vlaneseq
    %v2998 = vshrl.u32 %v2997, 7
    %v2999 = vsub.s32 %v2996, %v2998
    %v3000 = vrot.slane %v2978, %v2999
    %v3002 = vunpack.c.l.s4 1966171168
    %v3003 = vunpack.c.0.s8 %v3002
    %v3004 = vlaneseq
    %v3005 = vshrl.u32 %v3004, 7
    %v3006 = vsub.s32 %v3003, %v3005
    %v3007 = vrot.slane %v2979, %v3006
    %v3008 = vcombine.low %v2986, %v2993
    %v3009 = vcombine.low %v3000, %v3007
    %v3011 = vunpack.c.l.s4 1966171168
    %v3012 = vunpack.c.0.s8 %v3011
    %v3013 = vlaneseq
    %v3014 = vshrl.u32 %v3013, 7
    %v3015 = vsub.s32 %v3012, %v3014
    %v3016 = vrot.slane %v3008, %v3015
    %v3018 = vunpack.c.l.s4 1966171168
    %v3019 = vunpack.c.0.s8 %v3018
    %v3020 = vlaneseq
    %v3021 = vshrl.u32 %v3020, 7
    %v3022 = vsub.s32 %v3019, %v3021
    %v3023 = vrot.slane %v3009, %v3022
    %v3024 = vcombine.low %v3016, %v3023
    %v3025 = vcombine.low %v1101, %v1105
    %v3026 = vcombine.low %v1109, %v1113
    %v3027 = vcombine.low %v1117, %v1121
    %v3028 = vcombine.low %v1125, %v1129
    %v3030 = vunpack.c.l.s4 1966171168
    %v3031 = vunpack.c.0.s8 %v3030
    %v3032 = vlaneseq
    %v3033 = vshrl.u32 %v3032, 7
    %v3034 = vsub.s32 %v3031, %v3033
    %v3035 = vrot.slane %v3025, %v3034
    %v3037 = vunpack.c.l.s4 1966171168
    %v3038 = vunpack.c.0.s8 %v3037
    %v3039 = vlaneseq
    %v3040 = vshrl.u32 %v3039, 7
    %v3041 = vsub.s32 %v3038, %v3040
    %v3042 = vrot.slane %v3026, %v3041
    %v3044 = vunpack.c.l.s4 1966171168
    %v3045 = vunpack.c.0.s8 %v3044
    %v3046 = vlaneseq
    %v3047 = vshrl.u32 %v3046, 7
    %v3048 = vsub.s32 %v3045, %v3047
    %v3049 = vrot.slane %v3027, %v3048
    %v3051 = vunpack.c.l.s4 1966171168
    %v3052 = vunpack.c.0.s8 %v3051
    %v3053 = vlaneseq
    %v3054 = vshrl.u32 %v3053, 7
    %v3055 = vsub.s32 %v3052, %v3054
    %v3056 = vrot.slane %v3028, %v3055
    %v3057 = vcombine.low %v3035, %v3042
    %v3058 = vcombine.low %v3049, %v3056
    %v3060 = vunpack.c.l.s4 1966171168
    %v3061 = vunpack.c.0.s8 %v3060
    %v3062 = vlaneseq
    %v3063 = vshrl.u32 %v3062, 7
    %v3064 = vsub.s32 %v3061, %v3063
    %v3065 = vrot.slane %v3057, %v3064
    %v3067 = vunpack.c.l.s4 1966171168
    %v3068 = vunpack.c.0.s8 %v3067
    %v3069 = vlaneseq
    %v3070 = vshrl.u32 %v3069, 7
    %v3071 = vsub.s32 %v3068, %v3070
    %v3072 = vrot.slane %v3058, %v3071
    %v3073 = vcombine.low %v3065, %v3072
    %v3074 = vcombine.low %v1133, %v1137
    %v3075 = vcombine.low %v1141, %v1145
    %v3076 = vcombine.low %v1149, %v1153
    %v3077 = vcombine.low %v1157, %v1161
    %v3079 = vunpack.c.l.s4 1966171168
    %v3080 = vunpack.c.0.s8 %v3079
    %v3081 = vlaneseq
    %v3082 = vshrl.u32 %v3081, 7
    %v3083 = vsub.s32 %v3080, %v3082
    %v3084 = vrot.slane %v3074, %v3083
    %v3086 = vunpack.c.l.s4 1966171168
    %v3087 = vunpack.c.0.s8 %v3086
    %v3088 = vlaneseq
    %v3089 = vshrl.u32 %v3088, 7
    %v3090 = vsub.s32 %v3087, %v3089
    %v3091 = vrot.slane %v3075, %v3090
    %v3093 = vunpack.c.l.s4 1966171168
    %v3094 = vunpack.c.0.s8 %v3093
    %v3095 = vlaneseq
    %v3096 = vshrl.u32 %v3095, 7
    %v3097 = vsub.s32 %v3094, %v3096
    %v3098 = vrot.slane %v3076, %v3097
    %v3100 = vunpack.c.l.s4 1966171168
    %v3101 = vunpack.c.0.s8 %v3100
    %v3102 = vlaneseq
    %v3103 = vshrl.u32 %v3102, 7
    %v3104 = vsub.s32 %v3101, %v3103
    %v3105 = vrot.slane %v3077, %v3104
    %v3106 = vcombine.low %v3084, %v3091
    %v3107 = vcombine.low %v3098, %v3105
    %v3109 = vunpack.c.l.s4 1966171168
    %v3110 = vunpack.c.0.s8 %v3109
    %v3111 = vlaneseq
    %v3112 = vshrl.u32 %v3111, 7
    %v3113 = vsub.s32 %v3110, %v3112
    %v3114 = vrot.slane %v3106, %v3113
    %v3116 = vunpack.c.l.s4 1966171168
    %v3117 = vunpack.c.0.s8 %v3116
    %v3118 = vlaneseq
    %v3119 = vshrl.u32 %v3118, 7
    %v3120 = vsub.s32 %v3117, %v3119
    %v3121 = vrot.slane %v3107, %v3120
    %v3122 = vcombine.low %v3114, %v3121
    %v3123 = vcombine.low %v1165, %v1169
    %v3124 = vcombine.low %v1173, %v1177
    %v3125 = vcombine.low %v1181, %v1185
    %v3126 = vcombine.low %v1189, %v1193
    %v3128 = vunpack.c.l.s4 1966171168
    %v3129 = vunpack.c.0.s8 %v3128
    %v3130 = vlaneseq
    %v3131 = vshrl.u32 %v3130, 7
    %v3132 = vsub.s32 %v3129, %v3131
    %v3133 = vrot.slane %v3123, %v3132
    %v3135 = vunpack.c.l.s4 1966171168
    %v3136 = vunpack.c.0.s8 %v3135
    %v3137 = vlaneseq
    %v3138 = vshrl.u32 %v3137, 7
    %v3139 = vsub.s32 %v3136, %v3138
    %v3140 = vrot.slane %v3124, %v3139
    %v3142 = vunpack.c.l.s4 1966171168
    %v3143 = vunpack.c.0.s8 %v3142
    %v3144 = vlaneseq
    %v3145 = vshrl.u32 %v3144, 7
    %v3146 = vsub.s32 %v3143, %v3145
    %v3147 = vrot.slane %v3125, %v3146
    %v3149 = vunpack.c.l.s4 1966171168
    %v3150 = vunpack.c.0.s8 %v3149
    %v3151 = vlaneseq
    %v3152 = vshrl.u32 %v3151, 7
    %v3153 = vsub.s32 %v3150, %v3152
    %v3154 = vrot.slane %v3126, %v3153
    %v3155 = vcombine.low %v3133, %v3140
    %v3156 = vcombine.low %v3147, %v3154
    %v3158 = vunpack.c.l.s4 1966171168
    %v3159 = vunpack.c.0.s8 %v3158
    %v3160 = vlaneseq
    %v3161 = vshrl.u32 %v3160, 7
    %v3162 = vsub.s32 %v3159, %v3161
    %v3163 = vrot.slane %v3155, %v3162
    %v3165 = vunpack.c.l.s4 1966171168
    %v3166 = vunpack.c.0.s8 %v3165
    %v3167 = vlaneseq
    %v3168 = vshrl.u32 %v3167, 7
    %v3169 = vsub.s32 %v3166, %v3168
    %v3170 = vrot.slane %v3156, %v3169
    %v3171 = vcombine.low %v3163, %v3170
    %v3172 = vcombine.low %v1197, %v1201
    %v3173 = vcombine.low %v1205, %v1209
    %v3174 = vcombine.low %v1213, %v1217
    %v3175 = vcombine.low %v1221, %v1225
    %v3177 = vunpack.c.l.s4 1966171168
    %v3178 = vunpack.c.0.s8 %v3177
    %v3179 = vlaneseq
    %v3180 = vshrl.u32 %v3179, 7
    %v3181 = vsub.s32 %v3178, %v3180
    %v3182 = vrot.slane %v3172, %v3181
    %v3184 = vunpack.c.l.s4 1966171168
    %v3185 = vunpack.c.0.s8 %v3184
    %v3186 = vlaneseq
    %v3187 = vshrl.u32 %v3186, 7
    %v3188 = vsub.s32 %v3185, %v3187
    %v3189 = vrot.slane %v3173, %v3188
    %v3191 = vunpack.c.l.s4 1966171168
    %v3192 = vunpack.c.0.s8 %v3191
    %v3193 = vlaneseq
    %v3194 = vshrl.u32 %v3193, 7
    %v3195 = vsub.s32 %v3192, %v3194
    %v3196 = vrot.slane %v3174, %v3195
    %v3198 = vunpack.c.l.s4 1966171168
    %v3199 = vunpack.c.0.s8 %v3198
    %v3200 = vlaneseq
    %v3201 = vshrl.u32 %v3200, 7
    %v3202 = vsub.s32 %v3199, %v3201
    %v3203 = vrot.slane %v3175, %v3202
    %v3204 = vcombine.low %v3182, %v3189
    %v3205 = vcombine.low %v3196, %v3203
    %v3207 = vunpack.c.l.s4 1966171168
    %v3208 = vunpack.c.0.s8 %v3207
    %v3209 = vlaneseq
    %v3210 = vshrl.u32 %v3209, 7
    %v3211 = vsub.s32 %v3208, %v3210
    %v3212 = vrot.slane %v3204, %v3211
    %v3214 = vunpack.c.l.s4 1966171168
    %v3215 = vunpack.c.0.s8 %v3214
    %v3216 = vlaneseq
    %v3217 = vshrl.u32 %v3216, 7
    %v3218 = vsub.s32 %v3215, %v3217
    %v3219 = vrot.slane %v3205, %v3218
    %v3220 = vcombine.low %v3212, %v3219
    %v3221 = vcombine.low %v1229, %v1233
    %v3222 = vcombine.low %v1237, %v1241
    %v3223 = vcombine.low %v1245, %v1249
    %v3224 = vcombine.low %v1253, %v1257
    %v3226 = vunpack.c.l.s4 1966171168
    %v3227 = vunpack.c.0.s8 %v3226
    %v3228 = vlaneseq
    %v3229 = vshrl.u32 %v3228, 7
    %v3230 = vsub.s32 %v3227, %v3229
    %v3231 = vrot.slane %v3221, %v3230
    %v3233 = vunpack.c.l.s4 1966171168
    %v3234 = vunpack.c.0.s8 %v3233
    %v3235 = vlaneseq
    %v3236 = vshrl.u32 %v3235, 7
    %v3237 = vsub.s32 %v3234, %v3236
    %v3238 = vrot.slane %v3222, %v3237
    %v3240 = vunpack.c.l.s4 1966171168
    %v3241 = vunpack.c.0.s8 %v3240
    %v3242 = vlaneseq
    %v3243 = vshrl.u32 %v3242, 7
    %v3244 = vsub.s32 %v3241, %v3243
    %v3245 = vrot.slane %v3223, %v3244
    %v3247 = vunpack.c.l.s4 1966171168
    %v3248 = vunpack.c.0.s8 %v3247
    %v3249 = vlaneseq
    %v3250 = vshrl.u32 %v3249, 7
    %v3251 = vsub.s32 %v3248, %v3250
    %v3252 = vrot.slane %v3224, %v3251
    %v3253 = vcombine.low %v3231, %v3238
    %v3254 = vcombine.low %v3245, %v3252
    %v3256 = vunpack.c.l.s4 1966171168
    %v3257 = vunpack.c.0.s8 %v3256
    %v3258 = vlaneseq
    %v3259 = vshrl.u32 %v3258, 7
    %v3260 = vsub.s32 %v3257, %v3259
    %v3261 = vrot.slane %v3253, %v3260
    %v3263 = vunpack.c.l.s4 1966171168
    %v3264 = vunpack.c.0.s8 %v3263
    %v3265 = vlaneseq
    %v3266 = vshrl.u32 %v3265, 7
    %v3267 = vsub.s32 %v3264, %v3266
    %v3268 = vrot.slane %v3254, %v3267
    %v3269 = vcombine.low %v3261, %v3268
    %v3270 = vcombine.low %v1261, %v1265
    %v3271 = vcombine.low %v1269, %v1273
    %v3272 = vcombine.low %v1277, %v1281
    %v3273 = vcombine.low %v1285, %v1289
    %v3275 = vunpack.c.l.s4 1966171168
    %v3276 = vunpack.c.0.s8 %v3275
    %v3277 = vlaneseq
    %v3278 = vshrl.u32 %v3277, 7
    %v3279 = vsub.s32 %v3276, %v3278
    %v3280 = vrot.slane %v3270, %v3279
    %v3282 = vunpack.c.l.s4 1966171168
    %v3283 = vunpack.c.0.s8 %v3282
    %v3284 = vlaneseq
    %v3285 = vshrl.u32 %v3284, 7
    %v3286 = vsub.s32 %v3283, %v3285
    %v3287 = vrot.slane %v3271, %v3286
    %v3289 = vunpack.c.l.s4 1966171168
    %v3290 = vunpack.c.0.s8 %v3289
    %v3291 = vlaneseq
    %v3292 = vshrl.u32 %v3291, 7
    %v3293 = vsub.s32 %v3290, %v3292
    %v3294 = vrot.slane %v3272, %v3293
    %v3296 = vunpack.c.l.s4 1966171168
    %v3297 = vunpack.c.0.s8 %v3296
    %v3298 = vlaneseq
    %v3299 = vshrl.u32 %v3298, 7
    %v3300 = vsub.s32 %v3297, %v3299
    %v3301 = vrot.slane %v3273, %v3300
    %v3302 = vcombine.low %v3280, %v3287
    %v3303 = vcombine.low %v3294, %v3301
    %v3305 = vunpack.c.l.s4 1966171168
    %v3306 = vunpack.c.0.s8 %v3305
    %v3307 = vlaneseq
    %v3308 = vshrl.u32 %v3307, 7
    %v3309 = vsub.s32 %v3306, %v3308
    %v3310 = vrot.slane %v3302, %v3309
    %v3312 = vunpack.c.l.s4 1966171168
    %v3313 = vunpack.c.0.s8 %v3312
    %v3314 = vlaneseq
    %v3315 = vshrl.u32 %v3314, 7
    %v3316 = vsub.s32 %v3313, %v3315
    %v3317 = vrot.slane %v3303, %v3316
    %v3318 = vcombine.low %v3310, %v3317
    %v3319 = vcombine.low %v1293, %v1297
    %v3320 = vcombine.low %v1301, %v1305
    %v3321 = vcombine.low %v1309, %v1313
    %v3322 = vcombine.low %v1317, %v1321
    %v3324 = vunpack.c.l.s4 1966171168
    %v3325 = vunpack.c.0.s8 %v3324
    %v3326 = vlaneseq
    %v3327 = vshrl.u32 %v3326, 7
    %v3328 = vsub.s32 %v3325, %v3327
    %v3329 = vrot.slane %v3319, %v3328
    %v3331 = vunpack.c.l.s4 1966171168
    %v3332 = vunpack.c.0.s8 %v3331
    %v3333 = vlaneseq
    %v3334 = vshrl.u32 %v3333, 7
    %v3335 = vsub.s32 %v3332, %v3334
    %v3336 = vrot.slane %v3320, %v3335
    %v3338 = vunpack.c.l.s4 1966171168
    %v3339 = vunpack.c.0.s8 %v3338
    %v3340 = vlaneseq
    %v3341 = vshrl.u32 %v3340, 7
    %v3342 = vsub.s32 %v3339, %v3341
    %v3343 = vrot.slane %v3321, %v3342
    %v3345 = vunpack.c.l.s4 1966171168
    %v3346 = vunpack.c.0.s8 %v3345
    %v3347 = vlaneseq
    %v3348 = vshrl.u32 %v3347, 7
    %v3349 = vsub.s32 %v3346, %v3348
    %v3350 = vrot.slane %v3322, %v3349
    %v3351 = vcombine.low %v3329, %v3336
    %v3352 = vcombine.low %v3343, %v3350
    %v3354 = vunpack.c.l.s4 1966171168
    %v3355 = vunpack.c.0.s8 %v3354
    %v3356 = vlaneseq
    %v3357 = vshrl.u32 %v3356, 7
    %v3358 = vsub.s32 %v3355, %v3357
    %v3359 = vrot.slane %v3351, %v3358
    %v3361 = vunpack.c.l.s4 1966171168
    %v3362 = vunpack.c.0.s8 %v3361
    %v3363 = vlaneseq
    %v3364 = vshrl.u32 %v3363, 7
    %v3365 = vsub.s32 %v3362, %v3364
    %v3366 = vrot.slane %v3352, %v3365
    %v3367 = vcombine.low %v3359, %v3366
    %v3368 = vcombine.low %v1325, %v1329
    %v3369 = vcombine.low %v1333, %v1337
    %v3370 = vcombine.low %v1341, %v1345
    %v3371 = vcombine.low %v1349, %v1353
    %v3373 = vunpack.c.l.s4 1966171168
    %v3374 = vunpack.c.0.s8 %v3373
    %v3375 = vlaneseq
    %v3376 = vshrl.u32 %v3375, 7
    %v3377 = vsub.s32 %v3374, %v3376
    %v3378 = vrot.slane %v3368, %v3377
    %v3380 = vunpack.c.l.s4 1966171168
    %v3381 = vunpack.c.0.s8 %v3380
    %v3382 = vlaneseq
    %v3383 = vshrl.u32 %v3382, 7
    %v3384 = vsub.s32 %v3381, %v3383
    %v3385 = vrot.slane %v3369, %v3384
    %v3387 = vunpack.c.l.s4 1966171168
    %v3388 = vunpack.c.0.s8 %v3387
    %v3389 = vlaneseq
    %v3390 = vshrl.u32 %v3389, 7
    %v3391 = vsub.s32 %v3388, %v3390
    %v3392 = vrot.slane %v3370, %v3391
    %v3394 = vunpack.c.l.s4 1966171168
    %v3395 = vunpack.c.0.s8 %v3394
    %v3396 = vlaneseq
    %v3397 = vshrl.u32 %v3396, 7
    %v3398 = vsub.s32 %v3395, %v3397
    %v3399 = vrot.slane %v3371, %v3398
    %v3400 = vcombine.low %v3378, %v3385
    %v3401 = vcombine.low %v3392, %v3399
    %v3403 = vunpack.c.l.s4 1966171168
    %v3404 = vunpack.c.0.s8 %v3403
    %v3405 = vlaneseq
    %v3406 = vshrl.u32 %v3405, 7
    %v3407 = vsub.s32 %v3404, %v3406
    %v3408 = vrot.slane %v3400, %v3407
    %v3410 = vunpack.c.l.s4 1966171168
    %v3411 = vunpack.c.0.s8 %v3410
    %v3412 = vlaneseq
    %v3413 = vshrl.u32 %v3412, 7
    %v3414 = vsub.s32 %v3411, %v3413
    %v3415 = vrot.slane %v3401, %v3414
    %v3416 = vcombine.low %v3408, %v3415
    %v3417 = vcombine.low %v1357, %v1361
    %v3418 = vcombine.low %v1365, %v1369
    %v3419 = vcombine.low %v1373, %v1377
    %v3420 = vcombine.low %v1381, %v1385
    %v3422 = vunpack.c.l.s4 1966171168
    %v3423 = vunpack.c.0.s8 %v3422
    %v3424 = vlaneseq
    %v3425 = vshrl.u32 %v3424, 7
    %v3426 = vsub.s32 %v3423, %v3425
    %v3427 = vrot.slane %v3417, %v3426
    %v3429 = vunpack.c.l.s4 1966171168
    %v3430 = vunpack.c.0.s8 %v3429
    %v3431 = vlaneseq
    %v3432 = vshrl.u32 %v3431, 7
    %v3433 = vsub.s32 %v3430, %v3432
    %v3434 = vrot.slane %v3418, %v3433
    %v3436 = vunpack.c.l.s4 1966171168
    %v3437 = vunpack.c.0.s8 %v3436
    %v3438 = vlaneseq
    %v3439 = vshrl.u32 %v3438, 7
    %v3440 = vsub.s32 %v3437, %v3439
    %v3441 = vrot.slane %v3419, %v3440
    %v3443 = vunpack.c.l.s4 1966171168
    %v3444 = vunpack.c.0.s8 %v3443
    %v3445 = vlaneseq
    %v3446 = vshrl.u32 %v3445, 7
    %v3447 = vsub.s32 %v3444, %v3446
    %v3448 = vrot.slane %v3420, %v3447
    %v3449 = vcombine.low %v3427, %v3434
    %v3450 = vcombine.low %v3441, %v3448
    %v3452 = vunpack.c.l.s4 1966171168
    %v3453 = vunpack.c.0.s8 %v3452
    %v3454 = vlaneseq
    %v3455 = vshrl.u32 %v3454, 7
    %v3456 = vsub.s32 %v3453, %v3455
    %v3457 = vrot.slane %v3449, %v3456
    %v3459 = vunpack.c.l.s4 1966171168
    %v3460 = vunpack.c.0.s8 %v3459
    %v3461 = vlaneseq
    %v3462 = vshrl.u32 %v3461, 7
    %v3463 = vsub.s32 %v3460, %v3462
    %v3464 = vrot.slane %v3450, %v3463
    %v3465 = vcombine.low %v3457, %v3464
    %v3466 = vcombine.low %v1389, %v1393
    %v3467 = vcombine.low %v1397, %v1401
    %v3468 = vcombine.low %v1405, %v1409
    %v3469 = vcombine.low %v1413, %v1417
    %v3471 = vunpack.c.l.s4 1966171168
    %v3472 = vunpack.c.0.s8 %v3471
    %v3473 = vlaneseq
    %v3474 = vshrl.u32 %v3473, 7
    %v3475 = vsub.s32 %v3472, %v3474
    %v3476 = vrot.slane %v3466, %v3475
    %v3478 = vunpack.c.l.s4 1966171168
    %v3479 = vunpack.c.0.s8 %v3478
    %v3480 = vlaneseq
    %v3481 = vshrl.u32 %v3480, 7
    %v3482 = vsub.s32 %v3479, %v3481
    %v3483 = vrot.slane %v3467, %v3482
    %v3485 = vunpack.c.l.s4 1966171168
    %v3486 = vunpack.c.0.s8 %v3485
    %v3487 = vlaneseq
    %v3488 = vshrl.u32 %v3487, 7
    %v3489 = vsub.s32 %v3486, %v3488
    %v3490 = vrot.slane %v3468, %v3489
    %v3492 = vunpack.c.l.s4 1966171168
    %v3493 = vunpack.c.0.s8 %v3492
    %v3494 = vlaneseq
    %v3495 = vshrl.u32 %v3494, 7
    %v3496 = vsub.s32 %v3493, %v3495
    %v3497 = vrot.slane %v3469, %v3496
    %v3498 = vcombine.low %v3476, %v3483
    %v3499 = vcombine.low %v3490, %v3497
    %v3501 = vunpack.c.l.s4 1966171168
    %v3502 = vunpack.c.0.s8 %v3501
    %v3503 = vlaneseq
    %v3504 = vshrl.u32 %v3503, 7
    %v3505 = vsub.s32 %v3502, %v3504
    %v3506 = vrot.slane %v3498, %v3505
    %v3508 = vunpack.c.l.s4 1966171168
    %v3509 = vunpack.c.0.s8 %v3508
    %v3510 = vlaneseq
    %v3511 = vshrl.u32 %v3510, 7
    %v3512 = vsub.s32 %v3509, %v3511
    %v3513 = vrot.slane %v3499, %v3512
    %v3514 = vcombine.low %v3506, %v3513
    %v3515 = vcombine.low %v1421, %v1425
    %v3516 = vcombine.low %v1429, %v1433
    %v3517 = vcombine.low %v1437, %v1441
    %v3518 = vcombine.low %v1445, %v1449
    %v3520 = vunpack.c.l.s4 1966171168
    %v3521 = vunpack.c.0.s8 %v3520
    %v3522 = vlaneseq
    %v3523 = vshrl.u32 %v3522, 7
    %v3524 = vsub.s32 %v3521, %v3523
    %v3525 = vrot.slane %v3515, %v3524
    %v3527 = vunpack.c.l.s4 1966171168
    %v3528 = vunpack.c.0.s8 %v3527
    %v3529 = vlaneseq
    %v3530 = vshrl.u32 %v3529, 7
    %v3531 = vsub.s32 %v3528, %v3530
    %v3532 = vrot.slane %v3516, %v3531
    %v3534 = vunpack.c.l.s4 1966171168
    %v3535 = vunpack.c.0.s8 %v3534
    %v3536 = vlaneseq
    %v3537 = vshrl.u32 %v3536, 7
    %v3538 = vsub.s32 %v3535, %v3537
    %v3539 = vrot.slane %v3517, %v3538
    %v3541 = vunpack.c.l.s4 1966171168
    %v3542 = vunpack.c.0.s8 %v3541
    %v3543 = vlaneseq
    %v3544 = vshrl.u32 %v3543, 7
    %v3545 = vsub.s32 %v3542, %v3544
    %v3546 = vrot.slane %v3518, %v3545
    %v3547 = vcombine.low %v3525, %v3532
    %v3548 = vcombine.low %v3539, %v3546
    %v3550 = vunpack.c.l.s4 1966171168
    %v3551 = vunpack.c.0.s8 %v3550
    %v3552 = vlaneseq
    %v3553 = vshrl.u32 %v3552, 7
    %v3554 = vsub.s32 %v3551, %v3553
    %v3555 = vrot.slane %v3547, %v3554
    %v3557 = vunpack.c.l.s4 1966171168
    %v3558 = vunpack.c.0.s8 %v3557
    %v3559 = vlaneseq
    %v3560 = vshrl.u32 %v3559, 7
    %v3561 = vsub.s32 %v3558, %v3560
    %v3562 = vrot.slane %v3548, %v3561
    %v3563 = vcombine.low %v3555, %v3562
    %v3564 = vcombine.low %v1453, %v1457
    %v3565 = vcombine.low %v1461, %v1465
    %v3566 = vcombine.low %v1469, %v1473
    %v3567 = vcombine.low %v1477, %v1481
    %v3569 = vunpack.c.l.s4 1966171168
    %v3570 = vunpack.c.0.s8 %v3569
    %v3571 = vlaneseq
    %v3572 = vshrl.u32 %v3571, 7
    %v3573 = vsub.s32 %v3570, %v3572
    %v3574 = vrot.slane %v3564, %v3573
    %v3576 = vunpack.c.l.s4 1966171168
    %v3577 = vunpack.c.0.s8 %v3576
    %v3578 = vlaneseq
    %v3579 = vshrl.u32 %v3578, 7
    %v3580 = vsub.s32 %v3577, %v3579
    %v3581 = vrot.slane %v3565, %v3580
    %v3583 = vunpack.c.l.s4 1966171168
    %v3584 = vunpack.c.0.s8 %v3583
    %v3585 = vlaneseq
    %v3586 = vshrl.u32 %v3585, 7
    %v3587 = vsub.s32 %v3584, %v3586
    %v3588 = vrot.slane %v3566, %v3587
    %v3590 = vunpack.c.l.s4 1966171168
    %v3591 = vunpack.c.0.s8 %v3590
    %v3592 = vlaneseq
    %v3593 = vshrl.u32 %v3592, 7
    %v3594 = vsub.s32 %v3591, %v3593
    %v3595 = vrot.slane %v3567, %v3594
    %v3596 = vcombine.low %v3574, %v3581
    %v3597 = vcombine.low %v3588, %v3595
    %v3599 = vunpack.c.l.s4 1966171168
    %v3600 = vunpack.c.0.s8 %v3599
    %v3601 = vlaneseq
    %v3602 = vshrl.u32 %v3601, 7
    %v3603 = vsub.s32 %v3600, %v3602
    %v3604 = vrot.slane %v3596, %v3603
    %v3606 = vunpack.c.l.s4 1966171168
    %v3607 = vunpack.c.0.s8 %v3606
    %v3608 = vlaneseq
    %v3609 = vshrl.u32 %v3608, 7
    %v3610 = vsub.s32 %v3607, %v3609
    %v3611 = vrot.slane %v3597, %v3610
    %v3612 = vcombine.low %v3604, %v3611
    %v3613 = vcombine.low %v1485, %v1489
    %v3614 = vcombine.low %v1493, %v1497
    %v3615 = vcombine.low %v1501, %v1505
    %v3616 = vcombine.low %v1509, %v1513
    %v3618 = vunpack.c.l.s4 1966171168
    %v3619 = vunpack.c.0.s8 %v3618
    %v3620 = vlaneseq
    %v3621 = vshrl.u32 %v3620, 7
    %v3622 = vsub.s32 %v3619, %v3621
    %v3623 = vrot.slane %v3613, %v3622
    %v3625 = vunpack.c.l.s4 1966171168
    %v3626 = vunpack.c.0.s8 %v3625
    %v3627 = vlaneseq
    %v3628 = vshrl.u32 %v3627, 7
    %v3629 = vsub.s32 %v3626, %v3628
    %v3630 = vrot.slane %v3614, %v3629
    %v3632 = vunpack.c.l.s4 1966171168
    %v3633 = vunpack.c.0.s8 %v3632
    %v3634 = vlaneseq
    %v3635 = vshrl.u32 %v3634, 7
    %v3636 = vsub.s32 %v3633, %v3635
    %v3637 = vrot.slane %v3615, %v3636
    %v3639 = vunpack.c.l.s4 1966171168
    %v3640 = vunpack.c.0.s8 %v3639
    %v3641 = vlaneseq
    %v3642 = vshrl.u32 %v3641, 7
    %v3643 = vsub.s32 %v3640, %v3642
    %v3644 = vrot.slane %v3616, %v3643
    %v3645 = vcombine.low %v3623, %v3630
    %v3646 = vcombine.low %v3637, %v3644
    %v3648 = vunpack.c.l.s4 1966171168
    %v3649 = vunpack.c.0.s8 %v3648
    %v3650 = vlaneseq
    %v3651 = vshrl.u32 %v3650, 7
    %v3652 = vsub.s32 %v3649, %v3651
    %v3653 = vrot.slane %v3645, %v3652
    %v3655 = vunpack.c.l.s4 1966171168
    %v3656 = vunpack.c.0.s8 %v3655
    %v3657 = vlaneseq
    %v3658 = vshrl.u32 %v3657, 7
    %v3659 = vsub.s32 %v3656, %v3658
    %v3660 = vrot.slane %v3646, %v3659
    %v3661 = vcombine.low %v3653, %v3660
    %v3662 = vcombine.low %v1517, %v1521
    %v3663 = vcombine.low %v1525, %v1529
    %v3664 = vcombine.low %v1533, %v1537
    %v3665 = vcombine.low %v1541, %v1545
    %v3667 = vunpack.c.l.s4 1966171168
    %v3668 = vunpack.c.0.s8 %v3667
    %v3669 = vlaneseq
    %v3670 = vshrl.u32 %v3669, 7
    %v3671 = vsub.s32 %v3668, %v3670
    %v3672 = vrot.slane %v3662, %v3671
    %v3674 = vunpack.c.l.s4 1966171168
    %v3675 = vunpack.c.0.s8 %v3674
    %v3676 = vlaneseq
    %v3677 = vshrl.u32 %v3676, 7
    %v3678 = vsub.s32 %v3675, %v3677
    %v3679 = vrot.slane %v3663, %v3678
    %v3681 = vunpack.c.l.s4 1966171168
    %v3682 = vunpack.c.0.s8 %v3681
    %v3683 = vlaneseq
    %v3684 = vshrl.u32 %v3683, 7
    %v3685 = vsub.s32 %v3682, %v3684
    %v3686 = vrot.slane %v3664, %v3685
    %v3688 = vunpack.c.l.s4 1966171168
    %v3689 = vunpack.c.0.s8 %v3688
    %v3690 = vlaneseq
    %v3691 = vshrl.u32 %v3690, 7
    %v3692 = vsub.s32 %v3689, %v3691
    %v3693 = vrot.slane %v3665, %v3692
    %v3694 = vcombine.low %v3672, %v3679
    %v3695 = vcombine.low %v3686, %v3693
    %v3697 = vunpack.c.l.s4 1966171168
    %v3698 = vunpack.c.0.s8 %v3697
    %v3699 = vlaneseq
    %v3700 = vshrl.u32 %v3699, 7
    %v3701 = vsub.s32 %v3698, %v3700
    %v3702 = vrot.slane %v3694, %v3701
    %v3704 = vunpack.c.l.s4 1966171168
    %v3705 = vunpack.c.0.s8 %v3704
    %v3706 = vlaneseq
    %v3707 = vshrl.u32 %v3706, 7
    %v3708 = vsub.s32 %v3705, %v3707
    %v3709 = vrot.slane %v3695, %v3708
    %v3710 = vcombine.low %v3702, %v3709
    %v3711 = vcombine.low %v1549, %v1553
    %v3712 = vcombine.low %v1557, %v1561
    %v3713 = vcombine.low %v1565, %v1569
    %v3714 = vcombine.low %v1573, %v1577
    %v3716 = vunpack.c.l.s4 1966171168
    %v3717 = vunpack.c.0.s8 %v3716
    %v3718 = vlaneseq
    %v3719 = vshrl.u32 %v3718, 7
    %v3720 = vsub.s32 %v3717, %v3719
    %v3721 = vrot.slane %v3711, %v3720
    %v3723 = vunpack.c.l.s4 1966171168
    %v3724 = vunpack.c.0.s8 %v3723
    %v3725 = vlaneseq
    %v3726 = vshrl.u32 %v3725, 7
    %v3727 = vsub.s32 %v3724, %v3726
    %v3728 = vrot.slane %v3712, %v3727
    %v3730 = vunpack.c.l.s4 1966171168
    %v3731 = vunpack.c.0.s8 %v3730
    %v3732 = vlaneseq
    %v3733 = vshrl.u32 %v3732, 7
    %v3734 = vsub.s32 %v3731, %v3733
    %v3735 = vrot.slane %v3713, %v3734
    %v3737 = vunpack.c.l.s4 1966171168
    %v3738 = vunpack.c.0.s8 %v3737
    %v3739 = vlaneseq
    %v3740 = vshrl.u32 %v3739, 7
    %v3741 = vsub.s32 %v3738, %v3740
    %v3742 = vrot.slane %v3714, %v3741
    %v3743 = vcombine.low %v3721, %v3728
    %v3744 = vcombine.low %v3735, %v3742
    %v3746 = vunpack.c.l.s4 1966171168
    %v3747 = vunpack.c.0.s8 %v3746
    %v3748 = vlaneseq
    %v3749 = vshrl.u32 %v3748, 7
    %v3750 = vsub.s32 %v3747, %v3749
    %v3751 = vrot.slane %v3743, %v3750
    %v3753 = vunpack.c.l.s4 1966171168
    %v3754 = vunpack.c.0.s8 %v3753
    %v3755 = vlaneseq
    %v3756 = vshrl.u32 %v3755, 7
    %v3757 = vsub.s32 %v3754, %v3756
    %v3758 = vrot.slane %v3744, %v3757
    %v3759 = vcombine.low %v3751, %v3758
    %v3760 = vcombine.low %v1581, %v1585
    %v3761 = vcombine.low %v1589, %v1593
    %v3762 = vcombine.low %v1597, %v1601
    %v3763 = vcombine.low %v1605, %v1609
    %v3765 = vunpack.c.l.s4 1966171168
    %v3766 = vunpack.c.0.s8 %v3765
    %v3767 = vlaneseq
    %v3768 = vshrl.u32 %v3767, 7
    %v3769 = vsub.s32 %v3766, %v3768
    %v3770 = vrot.slane %v3760, %v3769
    %v3772 = vunpack.c.l.s4 1966171168
    %v3773 = vunpack.c.0.s8 %v3772
    %v3774 = vlaneseq
    %v3775 = vshrl.u32 %v3774, 7
    %v3776 = vsub.s32 %v3773, %v3775
    %v3777 = vrot.slane %v3761, %v3776
    %v3779 = vunpack.c.l.s4 1966171168
    %v3780 = vunpack.c.0.s8 %v3779
    %v3781 = vlaneseq
    %v3782 = vshrl.u32 %v3781, 7
    %v3783 = vsub.s32 %v3780, %v3782
    %v3784 = vrot.slane %v3762, %v3783
    %v3786 = vunpack.c.l.s4 1966171168
    %v3787 = vunpack.c.0.s8 %v3786
    %v3788 = vlaneseq
    %v3789 = vshrl.u32 %v3788, 7
    %v3790 = vsub.s32 %v3787, %v3789
    %v3791 = vrot.slane %v3763, %v3790
    %v3792 = vcombine.low %v3770, %v3777
    %v3793 = vcombine.low %v3784, %v3791
    %v3795 = vunpack.c.l.s4 1966171168
    %v3796 = vunpack.c.0.s8 %v3795
    %v3797 = vlaneseq
    %v3798 = vshrl.u32 %v3797, 7
    %v3799 = vsub.s32 %v3796, %v3798
    %v3800 = vrot.slane %v3792, %v3799
    %v3802 = vunpack.c.l.s4 1966171168
    %v3803 = vunpack.c.0.s8 %v3802
    %v3804 = vlaneseq
    %v3805 = vshrl.u32 %v3804, 7
    %v3806 = vsub.s32 %v3803, %v3805
    %v3807 = vrot.slane %v3793, %v3806
    %v3808 = vcombine.low %v3800, %v3807
    %v3809 = vcombine.low %v1613, %v1617
    %v3810 = vcombine.low %v1621, %v1625
    %v3811 = vcombine.low %v1629, %v1633
    %v3812 = vcombine.low %v1637, %v1641
    %v3814 = vunpack.c.l.s4 1966171168
    %v3815 = vunpack.c.0.s8 %v3814
    %v3816 = vlaneseq
    %v3817 = vshrl.u32 %v3816, 7
    %v3818 = vsub.s32 %v3815, %v3817
    %v3819 = vrot.slane %v3809, %v3818
    %v3821 = vunpack.c.l.s4 1966171168
    %v3822 = vunpack.c.0.s8 %v3821
    %v3823 = vlaneseq
    %v3824 = vshrl.u32 %v3823, 7
    %v3825 = vsub.s32 %v3822, %v3824
    %v3826 = vrot.slane %v3810, %v3825
    %v3828 = vunpack.c.l.s4 1966171168
    %v3829 = vunpack.c.0.s8 %v3828
    %v3830 = vlaneseq
    %v3831 = vshrl.u32 %v3830, 7
    %v3832 = vsub.s32 %v3829, %v3831
    %v3833 = vrot.slane %v3811, %v3832
    %v3835 = vunpack.c.l.s4 1966171168
    %v3836 = vunpack.c.0.s8 %v3835
    %v3837 = vlaneseq
    %v3838 = vshrl.u32 %v3837, 7
    %v3839 = vsub.s32 %v3836, %v3838
    %v3840 = vrot.slane %v3812, %v3839
    %v3841 = vcombine.low %v3819, %v3826
    %v3842 = vcombine.low %v3833, %v3840
    %v3844 = vunpack.c.l.s4 1966171168
    %v3845 = vunpack.c.0.s8 %v3844
    %v3846 = vlaneseq
    %v3847 = vshrl.u32 %v3846, 7
    %v3848 = vsub.s32 %v3845, %v3847
    %v3849 = vrot.slane %v3841, %v3848
    %v3851 = vunpack.c.l.s4 1966171168
    %v3852 = vunpack.c.0.s8 %v3851
    %v3853 = vlaneseq
    %v3854 = vshrl.u32 %v3853, 7
    %v3855 = vsub.s32 %v3852, %v3854
    %v3856 = vrot.slane %v3842, %v3855
    %v3857 = vcombine.low %v3849, %v3856
    %v3858 = vcombine.low %v1645, %v1649
    %v3859 = vcombine.low %v1653, %v1657
    %v3860 = vcombine.low %v1661, %v1665
    %v3861 = vcombine.low %v1669, %v1673
    %v3863 = vunpack.c.l.s4 1966171168
    %v3864 = vunpack.c.0.s8 %v3863
    %v3865 = vlaneseq
    %v3866 = vshrl.u32 %v3865, 7
    %v3867 = vsub.s32 %v3864, %v3866
    %v3868 = vrot.slane %v3858, %v3867
    %v3870 = vunpack.c.l.s4 1966171168
    %v3871 = vunpack.c.0.s8 %v3870
    %v3872 = vlaneseq
    %v3873 = vshrl.u32 %v3872, 7
    %v3874 = vsub.s32 %v3871, %v3873
    %v3875 = vrot.slane %v3859, %v3874
    %v3877 = vunpack.c.l.s4 1966171168
    %v3878 = vunpack.c.0.s8 %v3877
    %v3879 = vlaneseq
    %v3880 = vshrl.u32 %v3879, 7
    %v3881 = vsub.s32 %v3878, %v3880
    %v3882 = vrot.slane %v3860, %v3881
    %v3884 = vunpack.c.l.s4 1966171168
    %v3885 = vunpack.c.0.s8 %v3884
    %v3886 = vlaneseq
    %v3887 = vshrl.u32 %v3886, 7
    %v3888 = vsub.s32 %v3885, %v3887
    %v3889 = vrot.slane %v3861, %v3888
    %v3890 = vcombine.low %v3868, %v3875
    %v3891 = vcombine.low %v3882, %v3889
    %v3893 = vunpack.c.l.s4 1966171168
    %v3894 = vunpack.c.0.s8 %v3893
    %v3895 = vlaneseq
    %v3896 = vshrl.u32 %v3895, 7
    %v3897 = vsub.s32 %v3894, %v3896
    %v3898 = vrot.slane %v3890, %v3897
    %v3900 = vunpack.c.l.s4 1966171168
    %v3901 = vunpack.c.0.s8 %v3900
    %v3902 = vlaneseq
    %v3903 = vshrl.u32 %v3902, 7
    %v3904 = vsub.s32 %v3901, %v3903
    %v3905 = vrot.slane %v3891, %v3904
    %v3906 = vcombine.low %v3898, %v3905
    %v3907 = vcombine.low %v1677, %v1681
    %v3908 = vcombine.low %v1685, %v1689
    %v3909 = vcombine.low %v1693, %v1697
    %v3910 = vcombine.low %v1701, %v1705
    %v3912 = vunpack.c.l.s4 1966171168
    %v3913 = vunpack.c.0.s8 %v3912
    %v3914 = vlaneseq
    %v3915 = vshrl.u32 %v3914, 7
    %v3916 = vsub.s32 %v3913, %v3915
    %v3917 = vrot.slane %v3907, %v3916
    %v3919 = vunpack.c.l.s4 1966171168
    %v3920 = vunpack.c.0.s8 %v3919
    %v3921 = vlaneseq
    %v3922 = vshrl.u32 %v3921, 7
    %v3923 = vsub.s32 %v3920, %v3922
    %v3924 = vrot.slane %v3908, %v3923
    %v3926 = vunpack.c.l.s4 1966171168
    %v3927 = vunpack.c.0.s8 %v3926
    %v3928 = vlaneseq
    %v3929 = vshrl.u32 %v3928, 7
    %v3930 = vsub.s32 %v3927, %v3929
    %v3931 = vrot.slane %v3909, %v3930
    %v3933 = vunpack.c.l.s4 1966171168
    %v3934 = vunpack.c.0.s8 %v3933
    %v3935 = vlaneseq
    %v3936 = vshrl.u32 %v3935, 7
    %v3937 = vsub.s32 %v3934, %v3936
    %v3938 = vrot.slane %v3910, %v3937
    %v3939 = vcombine.low %v3917, %v3924
    %v3940 = vcombine.low %v3931, %v3938
    %v3942 = vunpack.c.l.s4 1966171168
    %v3943 = vunpack.c.0.s8 %v3942
    %v3944 = vlaneseq
    %v3945 = vshrl.u32 %v3944, 7
    %v3946 = vsub.s32 %v3943, %v3945
    %v3947 = vrot.slane %v3939, %v3946
    %v3949 = vunpack.c.l.s4 1966171168
    %v3950 = vunpack.c.0.s8 %v3949
    %v3951 = vlaneseq
    %v3952 = vshrl.u32 %v3951, 7
    %v3953 = vsub.s32 %v3950, %v3952
    %v3954 = vrot.slane %v3940, %v3953
    %v3955 = vcombine.low %v3947, %v3954
    %v3956 = vcombine.low %v1709, %v1713
    %v3957 = vcombine.low %v1717, %v1721
    %v3958 = vcombine.low %v1725, %v1729
    %v3959 = vcombine.low %v1733, %v1737
    %v3961 = vunpack.c.l.s4 1966171168
    %v3962 = vunpack.c.0.s8 %v3961
    %v3963 = vlaneseq
    %v3964 = vshrl.u32 %v3963, 7
    %v3965 = vsub.s32 %v3962, %v3964
    %v3966 = vrot.slane %v3956, %v3965
    %v3968 = vunpack.c.l.s4 1966171168
    %v3969 = vunpack.c.0.s8 %v3968
    %v3970 = vlaneseq
    %v3971 = vshrl.u32 %v3970, 7
    %v3972 = vsub.s32 %v3969, %v3971
    %v3973 = vrot.slane %v3957, %v3972
    %v3975 = vunpack.c.l.s4 1966171168
    %v3976 = vunpack.c.0.s8 %v3975
    %v3977 = vlaneseq
    %v3978 = vshrl.u32 %v3977, 7
    %v3979 = vsub.s32 %v3976, %v3978
    %v3980 = vrot.slane %v3958, %v3979
    %v3982 = vunpack.c.l.s4 1966171168
    %v3983 = vunpack.c.0.s8 %v3982
    %v3984 = vlaneseq
    %v3985 = vshrl.u32 %v3984, 7
    %v3986 = vsub.s32 %v3983, %v3985
    %v3987 = vrot.slane %v3959, %v3986
    %v3988 = vcombine.low %v3966, %v3973
    %v3989 = vcombine.low %v3980, %v3987
    %v3991 = vunpack.c.l.s4 1966171168
    %v3992 = vunpack.c.0.s8 %v3991
    %v3993 = vlaneseq
    %v3994 = vshrl.u32 %v3993, 7
    %v3995 = vsub.s32 %v3992, %v3994
    %v3996 = vrot.slane %v3988, %v3995
    %v3998 = vunpack.c.l.s4 1966171168
    %v3999 = vunpack.c.0.s8 %v3998
    %v4000 = vlaneseq
    %v4001 = vshrl.u32 %v4000, 7
    %v4002 = vsub.s32 %v3999, %v4001
    %v4003 = vrot.slane %v3989, %v4002
    %v4004 = vcombine.low %v3996, %v4003
    %v4005 = vcombine.low %v1741, %v1745
    %v4006 = vcombine.low %v1749, %v1753
    %v4007 = vcombine.low %v1757, %v1761
    %v4008 = vcombine.low %v1765, %v1769
    %v4010 = vunpack.c.l.s4 1966171168
    %v4011 = vunpack.c.0.s8 %v4010
    %v4012 = vlaneseq
    %v4013 = vshrl.u32 %v4012, 7
    %v4014 = vsub.s32 %v4011, %v4013
    %v4015 = vrot.slane %v4005, %v4014
    %v4017 = vunpack.c.l.s4 1966171168
    %v4018 = vunpack.c.0.s8 %v4017
    %v4019 = vlaneseq
    %v4020 = vshrl.u32 %v4019, 7
    %v4021 = vsub.s32 %v4018, %v4020
    %v4022 = vrot.slane %v4006, %v4021
    %v4024 = vunpack.c.l.s4 1966171168
    %v4025 = vunpack.c.0.s8 %v4024
    %v4026 = vlaneseq
    %v4027 = vshrl.u32 %v4026, 7
    %v4028 = vsub.s32 %v4025, %v4027
    %v4029 = vrot.slane %v4007, %v4028
    %v4031 = vunpack.c.l.s4 1966171168
    %v4032 = vunpack.c.0.s8 %v4031
    %v4033 = vlaneseq
    %v4034 = vshrl.u32 %v4033, 7
    %v4035 = vsub.s32 %v4032, %v4034
    %v4036 = vrot.slane %v4008, %v4035
    %v4037 = vcombine.low %v4015, %v4022
    %v4038 = vcombine.low %v4029, %v4036
    %v4040 = vunpack.c.l.s4 1966171168
    %v4041 = vunpack.c.0.s8 %v4040
    %v4042 = vlaneseq
    %v4043 = vshrl.u32 %v4042, 7
    %v4044 = vsub.s32 %v4041, %v4043
    %v4045 = vrot.slane %v4037, %v4044
    %v4047 = vunpack.c.l.s4 1966171168
    %v4048 = vunpack.c.0.s8 %v4047
    %v4049 = vlaneseq
    %v4050 = vshrl.u32 %v4049, 7
    %v4051 = vsub.s32 %v4048, %v4050
    %v4052 = vrot.slane %v4038, %v4051
    %v4053 = vcombine.low %v4045, %v4052
    %v4054 = vcombine.low %v1773, %v1777
    %v4055 = vcombine.low %v1781, %v1785
    %v4056 = vcombine.low %v1789, %v1793
    %v4057 = vcombine.low %v1797, %v1801
    %v4059 = vunpack.c.l.s4 1966171168
    %v4060 = vunpack.c.0.s8 %v4059
    %v4061 = vlaneseq
    %v4062 = vshrl.u32 %v4061, 7
    %v4063 = vsub.s32 %v4060, %v4062
    %v4064 = vrot.slane %v4054, %v4063
    %v4066 = vunpack.c.l.s4 1966171168
    %v4067 = vunpack.c.0.s8 %v4066
    %v4068 = vlaneseq
    %v4069 = vshrl.u32 %v4068, 7
    %v4070 = vsub.s32 %v4067, %v4069
    %v4071 = vrot.slane %v4055, %v4070
    %v4073 = vunpack.c.l.s4 1966171168
    %v4074 = vunpack.c.0.s8 %v4073
    %v4075 = vlaneseq
    %v4076 = vshrl.u32 %v4075, 7
    %v4077 = vsub.s32 %v4074, %v4076
    %v4078 = vrot.slane %v4056, %v4077
    %v4080 = vunpack.c.l.s4 1966171168
    %v4081 = vunpack.c.0.s8 %v4080
    %v4082 = vlaneseq
    %v4083 = vshrl.u32 %v4082, 7
    %v4084 = vsub.s32 %v4081, %v4083
    %v4085 = vrot.slane %v4057, %v4084
    %v4086 = vcombine.low %v4064, %v4071
    %v4087 = vcombine.low %v4078, %v4085
    %v4089 = vunpack.c.l.s4 1966171168
    %v4090 = vunpack.c.0.s8 %v4089
    %v4091 = vlaneseq
    %v4092 = vshrl.u32 %v4091, 7
    %v4093 = vsub.s32 %v4090, %v4092
    %v4094 = vrot.slane %v4086, %v4093
    %v4096 = vunpack.c.l.s4 1966171168
    %v4097 = vunpack.c.0.s8 %v4096
    %v4098 = vlaneseq
    %v4099 = vshrl.u32 %v4098, 7
    %v4100 = vsub.s32 %v4097, %v4099
    %v4101 = vrot.slane %v4087, %v4100
    %v4102 = vcombine.low %v4094, %v4101
    %v4103 = vcombine.low %v1805, %v1809
    %v4104 = vcombine.low %v1813, %v1817
    %v4105 = vcombine.low %v1821, %v1825
    %v4106 = vcombine.low %v1829, %v1833
    %v4108 = vunpack.c.l.s4 1966171168
    %v4109 = vunpack.c.0.s8 %v4108
    %v4110 = vlaneseq
    %v4111 = vshrl.u32 %v4110, 7
    %v4112 = vsub.s32 %v4109, %v4111
    %v4113 = vrot.slane %v4103, %v4112
    %v4115 = vunpack.c.l.s4 1966171168
    %v4116 = vunpack.c.0.s8 %v4115
    %v4117 = vlaneseq
    %v4118 = vshrl.u32 %v4117, 7
    %v4119 = vsub.s32 %v4116, %v4118
    %v4120 = vrot.slane %v4104, %v4119
    %v4122 = vunpack.c.l.s4 1966171168
    %v4123 = vunpack.c.0.s8 %v4122
    %v4124 = vlaneseq
    %v4125 = vshrl.u32 %v4124, 7
    %v4126 = vsub.s32 %v4123, %v4125
    %v4127 = vrot.slane %v4105, %v4126
    %v4129 = vunpack.c.l.s4 1966171168
    %v4130 = vunpack.c.0.s8 %v4129
    %v4131 = vlaneseq
    %v4132 = vshrl.u32 %v4131, 7
    %v4133 = vsub.s32 %v4130, %v4132
    %v4134 = vrot.slane %v4106, %v4133
    %v4135 = vcombine.low %v4113, %v4120
    %v4136 = vcombine.low %v4127, %v4134
    %v4138 = vunpack.c.l.s4 1966171168
    %v4139 = vunpack.c.0.s8 %v4138
    %v4140 = vlaneseq
    %v4141 = vshrl.u32 %v4140, 7
    %v4142 = vsub.s32 %v4139, %v4141
    %v4143 = vrot.slane %v4135, %v4142
    %v4145 = vunpack.c.l.s4 1966171168
    %v4146 = vunpack.c.0.s8 %v4145
    %v4147 = vlaneseq
    %v4148 = vshrl.u32 %v4147, 7
    %v4149 = vsub.s32 %v4146, %v4148
    %v4150 = vrot.slane %v4136, %v4149
    %v4151 = vcombine.low %v4143, %v4150
    %v4152 = vcombine.low %v1837, %v1841
    %v4153 = vcombine.low %v1845, %v1849
    %v4154 = vcombine.low %v1853, %v1857
    %v4155 = vcombine.low %v1861, %v1865
    %v4157 = vunpack.c.l.s4 1966171168
    %v4158 = vunpack.c.0.s8 %v4157
    %v4159 = vlaneseq
    %v4160 = vshrl.u32 %v4159, 7
    %v4161 = vsub.s32 %v4158, %v4160
    %v4162 = vrot.slane %v4152, %v4161
    %v4164 = vunpack.c.l.s4 1966171168
    %v4165 = vunpack.c.0.s8 %v4164
    %v4166 = vlaneseq
    %v4167 = vshrl.u32 %v4166, 7
    %v4168 = vsub.s32 %v4165, %v4167
    %v4169 = vrot.slane %v4153, %v4168
    %v4171 = vunpack.c.l.s4 1966171168
    %v4172 = vunpack.c.0.s8 %v4171
    %v4173 = vlaneseq
    %v4174 = vshrl.u32 %v4173, 7
    %v4175 = vsub.s32 %v4172, %v4174
    %v4176 = vrot.slane %v4154, %v4175
    %v4178 = vunpack.c.l.s4 1966171168
    %v4179 = vunpack.c.0.s8 %v4178
    %v4180 = vlaneseq
    %v4181 = vshrl.u32 %v4180, 7
    %v4182 = vsub.s32 %v4179, %v4181
    %v4183 = vrot.slane %v4155, %v4182
    %v4184 = vcombine.low %v4162, %v4169
    %v4185 = vcombine.low %v4176, %v4183
    %v4187 = vunpack.c.l.s4 1966171168
    %v4188 = vunpack.c.0.s8 %v4187
    %v4189 = vlaneseq
    %v4190 = vshrl.u32 %v4189, 7
    %v4191 = vsub.s32 %v4188, %v4190
    %v4192 = vrot.slane %v4184, %v4191
    %v4194 = vunpack.c.l.s4 1966171168
    %v4195 = vunpack.c.0.s8 %v4194
    %v4196 = vlaneseq
    %v4197 = vshrl.u32 %v4196, 7
    %v4198 = vsub.s32 %v4195, %v4197
    %v4199 = vrot.slane %v4185, %v4198
    %v4200 = vcombine.low %v4192, %v4199
    %v4201 = vcombine.low %v1869, %v1873
    %v4202 = vcombine.low %v1877, %v1881
    %v4203 = vcombine.low %v1885, %v1889
    %v4204 = vcombine.low %v1893, %v1897
    %v4206 = vunpack.c.l.s4 1966171168
    %v4207 = vunpack.c.0.s8 %v4206
    %v4208 = vlaneseq
    %v4209 = vshrl.u32 %v4208, 7
    %v4210 = vsub.s32 %v4207, %v4209
    %v4211 = vrot.slane %v4201, %v4210
    %v4213 = vunpack.c.l.s4 1966171168
    %v4214 = vunpack.c.0.s8 %v4213
    %v4215 = vlaneseq
    %v4216 = vshrl.u32 %v4215, 7
    %v4217 = vsub.s32 %v4214, %v4216
    %v4218 = vrot.slane %v4202, %v4217
    %v4220 = vunpack.c.l.s4 1966171168
    %v4221 = vunpack.c.0.s8 %v4220
    %v4222 = vlaneseq
    %v4223 = vshrl.u32 %v4222, 7
    %v4224 = vsub.s32 %v4221, %v4223
    %v4225 = vrot.slane %v4203, %v4224
    %v4227 = vunpack.c.l.s4 1966171168
    %v4228 = vunpack.c.0.s8 %v4227
    %v4229 = vlaneseq
    %v4230 = vshrl.u32 %v4229, 7
    %v4231 = vsub.s32 %v4228, %v4230
    %v4232 = vrot.slane %v4204, %v4231
    %v4233 = vcombine.low %v4211, %v4218
    %v4234 = vcombine.low %v4225, %v4232
    %v4236 = vunpack.c.l.s4 1966171168
    %v4237 = vunpack.c.0.s8 %v4236
    %v4238 = vlaneseq
    %v4239 = vshrl.u32 %v4238, 7
    %v4240 = vsub.s32 %v4237, %v4239
    %v4241 = vrot.slane %v4233, %v4240
    %v4243 = vunpack.c.l.s4 1966171168
    %v4244 = vunpack.c.0.s8 %v4243
    %v4245 = vlaneseq
    %v4246 = vshrl.u32 %v4245, 7
    %v4247 = vsub.s32 %v4244, %v4246
    %v4248 = vrot.slane %v4234, %v4247
    %v4249 = vcombine.low %v4241, %v4248
    %4250 = vset.pattern.permute.xlu0 0
    %4251 = vperm.xlu0 %4250, %v1946
    %v4252 = vpop.permute.xlu0 %4251
    %4253 = vset.pattern.permute.xlu0 0
    %4254 = vperm.xlu0 %4253, %v1995
    %v4255 = vpop.permute.xlu0 %4254
    %4256 = vset.pattern.permute.xlu0 0
    %4257 = vperm.xlu0 %4256, %v2044
    %v4258 = vpop.permute.xlu0 %4257
    %4259 = vset.pattern.permute.xlu0 0
    %4260 = vperm.xlu0 %4259, %v2093
    %v4261 = vpop.permute.xlu0 %4260
    %4262 = vset.pattern.permute.xlu0 0
    %4263 = vperm.xlu0 %4262, %v2142
    %v4264 = vpop.permute.xlu0 %4263
    %4265 = vset.pattern.permute.xlu0 0
    %4266 = vperm.xlu0 %4265, %v2191
    %v4267 = vpop.permute.xlu0 %4266
    %4268 = vset.pattern.permute.xlu0 0
    %4269 = vperm.xlu0 %4268, %v2240
    %v4270 = vpop.permute.xlu0 %4269
    %4271 = vset.pattern.permute.xlu0 0
    %4272 = vperm.xlu0 %4271, %v2289
    %v4273 = vpop.permute.xlu0 %4272
    %4274 = vset.pattern.permute.xlu0 0
    %4275 = vperm.xlu0 %4274, %v2338
    %v4276 = vpop.permute.xlu0 %4275
    %4277 = vset.pattern.permute.xlu0 0
    %4278 = vperm.xlu0 %4277, %v2387
    %v4279 = vpop.permute.xlu0 %4278
    %4280 = vset.pattern.permute.xlu0 0
    %4281 = vperm.xlu0 %4280, %v2436
    %v4282 = vpop.permute.xlu0 %4281
    %4283 = vset.pattern.permute.xlu0 0
    %4284 = vperm.xlu0 %4283, %v2485
    %v4285 = vpop.permute.xlu0 %4284
    %4286 = vset.pattern.permute.xlu0 0
    %4287 = vperm.xlu0 %4286, %v2534
    %v4288 = vpop.permute.xlu0 %4287
    %4289 = vset.pattern.permute.xlu0 0
    %4290 = vperm.xlu0 %4289, %v2583
    %v4291 = vpop.permute.xlu0 %4290
    %4292 = vset.pattern.permute.xlu0 0
    %4293 = vperm.xlu0 %4292, %v2632
    %v4294 = vpop.permute.xlu0 %4293
    %4295 = vset.pattern.permute.xlu0 0
    %4296 = vperm.xlu0 %4295, %v2681
    %v4297 = vpop.permute.xlu0 %4296
    %4298 = vset.pattern.permute.xlu0 0
    %4299 = vperm.xlu0 %4298, %v2730
    %v4300 = vpop.permute.xlu0 %4299
    %4301 = vset.pattern.permute.xlu0 0
    %4302 = vperm.xlu0 %4301, %v2779
    %v4303 = vpop.permute.xlu0 %4302
    %4304 = vset.pattern.permute.xlu0 0
    %4305 = vperm.xlu0 %4304, %v2828
    %v4306 = vpop.permute.xlu0 %4305
    %4307 = vset.pattern.permute.xlu0 0
    %4308 = vperm.xlu0 %4307, %v2877
    %v4309 = vpop.permute.xlu0 %4308
    %4310 = vset.pattern.permute.xlu0 0
    %4311 = vperm.xlu0 %4310, %v2926
    %v4312 = vpop.permute.xlu0 %4311
    %4313 = vset.pattern.permute.xlu0 0
    %4314 = vperm.xlu0 %4313, %v2975
    %v4315 = vpop.permute.xlu0 %4314
    %4316 = vset.pattern.permute.xlu0 0
    %4317 = vperm.xlu0 %4316, %v3024
    %v4318 = vpop.permute.xlu0 %4317
    %4319 = vset.pattern.permute.xlu0 0
    %4320 = vperm.xlu0 %4319, %v3073
    %v4321 = vpop.permute.xlu0 %4320
    %4322 = vset.pattern.permute.xlu0 0
    %4323 = vperm.xlu0 %4322, %v3122
    %v4324 = vpop.permute.xlu0 %4323
    %4325 = vset.pattern.permute.xlu0 0
    %4326 = vperm.xlu0 %4325, %v3171
    %v4327 = vpop.permute.xlu0 %4326
    %4328 = vset.pattern.permute.xlu0 0
    %4329 = vperm.xlu0 %4328, %v3220
    %v4330 = vpop.permute.xlu0 %4329
    %4331 = vset.pattern.permute.xlu0 0
    %4332 = vperm.xlu0 %4331, %v3269
    %v4333 = vpop.permute.xlu0 %4332
    %4334 = vset.pattern.permute.xlu0 0
    %4335 = vperm.xlu0 %4334, %v3318
    %v4336 = vpop.permute.xlu0 %4335
    %4337 = vset.pattern.permute.xlu0 0
    %4338 = vperm.xlu0 %4337, %v3367
    %v4339 = vpop.permute.xlu0 %4338
    %4340 = vset.pattern.permute.xlu0 0
    %4341 = vperm.xlu0 %4340, %v3416
    %v4342 = vpop.permute.xlu0 %4341
    %4343 = vset.pattern.permute.xlu0 0
    %4344 = vperm.xlu0 %4343, %v3465
    %v4345 = vpop.permute.xlu0 %4344
    %4346 = vset.pattern.permute.xlu0 0
    %4347 = vperm.xlu0 %4346, %v3514
    %v4348 = vpop.permute.xlu0 %4347
    %4349 = vset.pattern.permute.xlu0 0
    %4350 = vperm.xlu0 %4349, %v3563
    %v4351 = vpop.permute.xlu0 %4350
    %4352 = vset.pattern.permute.xlu0 0
    %4353 = vperm.xlu0 %4352, %v3612
    %v4354 = vpop.permute.xlu0 %4353
    %4355 = vset.pattern.permute.xlu0 0
    %4356 = vperm.xlu0 %4355, %v3661
    %v4357 = vpop.permute.xlu0 %4356
    %4358 = vset.pattern.permute.xlu0 0
    %4359 = vperm.xlu0 %4358, %v3710
    %v4360 = vpop.permute.xlu0 %4359
    %4361 = vset.pattern.permute.xlu0 0
    %4362 = vperm.xlu0 %4361, %v3759
    %v4363 = vpop.permute.xlu0 %4362
    %4364 = vset.pattern.permute.xlu0 0
    %4365 = vperm.xlu0 %4364, %v3808
    %v4366 = vpop.permute.xlu0 %4365
    %4367 = vset.pattern.permute.xlu0 0
    %4368 = vperm.xlu0 %4367, %v3857
    %v4369 = vpop.permute.xlu0 %4368
    %4370 = vset.pattern.permute.xlu0 0
    %4371 = vperm.xlu0 %4370, %v3906
    %v4372 = vpop.permute.xlu0 %4371
    %4373 = vset.pattern.permute.xlu0 0
    %4374 = vperm.xlu0 %4373, %v3955
    %v4375 = vpop.permute.xlu0 %4374
    %4376 = vset.pattern.permute.xlu0 0
    %4377 = vperm.xlu0 %4376, %v4004
    %v4378 = vpop.permute.xlu0 %4377
    %4379 = vset.pattern.permute.xlu0 0
    %4380 = vperm.xlu0 %4379, %v4053
    %v4381 = vpop.permute.xlu0 %4380
    %4382 = vset.pattern.permute.xlu0 0
    %4383 = vperm.xlu0 %4382, %v4102
    %v4384 = vpop.permute.xlu0 %4383
    %4385 = vset.pattern.permute.xlu0 0
    %4386 = vperm.xlu0 %4385, %v4151
    %v4387 = vpop.permute.xlu0 %4386
    %4388 = vset.pattern.permute.xlu0 0
    %4389 = vperm.xlu0 %4388, %v4200
    %v4390 = vpop.permute.xlu0 %4389
    %4391 = vset.pattern.permute.xlu0 0
    %4392 = vperm.xlu0 %4391, %v4249
    %v4393 = vpop.permute.xlu0 %4392
    %v4394 = vlaneseq
    %v4395 = vand.u32 %v4394, 127
    %v4396 = vlaneseq
    %v4397 = vshrl.u32 %v4396, 7
    %v4398 = vsub.s32 %v4395, %v4397
    %v4399 = vrot.slane %v4252, %v4398
    %v4400 = vadd.s32 %v4395, 4294967288
    %v4401 = vlaneseq
    %v4402 = vshrl.u32 %v4401, 7
    %v4403 = vsub.s32 %v4400, %v4402
    %v4404 = vrot.slane %v4255, %v4403
    %vm4405 = vcmask 130112
    %v4406 = vsel %vm4405, %v4404, %v4399
    %v4407 = vadd.s32 %v4395, 4294967280
    %v4408 = vlaneseq
    %v4409 = vshrl.u32 %v4408, 7
    %v4410 = vsub.s32 %v4407, %v4409
    %v4411 = vrot.slane %v4258, %v4410
    %vm4412 = vcmask 195712
    %v4413 = vsel %vm4412, %v4411, %v4406
    %v4414 = vadd.s32 %v4395, 4294967272
    %v4415 = vlaneseq
    %v4416 = vshrl.u32 %v4415, 7
    %v4417 = vsub.s32 %v4414, %v4416
    %v4418 = vrot.slane %v4261, %v4417
    %vm4419 = vcmask 261312
    %v4420 = vsel %vm4419, %v4418, %v4413
    %v4421 = vadd.s32 %v4395, 4294967264
    %v4422 = vlaneseq
    %v4423 = vshrl.u32 %v4422, 7
    %v4424 = vsub.s32 %v4421, %v4423
    %v4425 = vrot.slane %v4264, %v4424
    %vm4426 = vcmask 326912
    %v4427 = vsel %vm4426, %v4425, %v4420
    %v4428 = vadd.s32 %v4395, 4294967256
    %v4429 = vlaneseq
    %v4430 = vshrl.u32 %v4429, 7
    %v4431 = vsub.s32 %v4428, %v4430
    %v4432 = vrot.slane %v4267, %v4431
    %vm4433 = vcmask 392512
    %v4434 = vsel %vm4433, %v4432, %v4427
    %v4435 = vadd.s32 %v4395, 4294967248
    %v4436 = vlaneseq
    %v4437 = vshrl.u32 %v4436, 7
    %v4438 = vsub.s32 %v4435, %v4437
    %v4439 = vrot.slane %v4270, %v4438
    %vm4440 = vcmask 458112
    %v4441 = vsel %vm4440, %v4439, %v4434
    %v4442 = vadd.s32 %v4395, 4294967240
    %v4443 = vlaneseq
    %v4444 = vshrl.u32 %v4443, 7
    %v4445 = vsub.s32 %v4442, %v4444
    %v4446 = vrot.slane %v4273, %v4445
    %vm4447 = vcmask 523712
    %v4448 = vsel %vm4447, %v4446, %v4441
    %v4449 = vadd.s32 %v4395, 4294967232
    %v4450 = vlaneseq
    %v4451 = vshrl.u32 %v4450, 7
    %v4452 = vsub.s32 %v4449, %v4451
    %v4453 = vrot.slane %v4276, %v4452
    %vm4454 = vcmask 589312
    %v4455 = vsel %vm4454, %v4453, %v4448
    %v4456 = vadd.s32 %v4395, 4294967224
    %v4457 = vlaneseq
    %v4458 = vshrl.u32 %v4457, 7
    %v4459 = vsub.s32 %v4456, %v4458
    %v4460 = vrot.slane %v4279, %v4459
    %vm4461 = vcmask 654912
    %v4462 = vsel %vm4461, %v4460, %v4455
    %v4463 = vadd.s32 %v4395, 4294967216
    %v4464 = vlaneseq
    %v4465 = vshrl.u32 %v4464, 7
    %v4466 = vsub.s32 %v4463, %v4465
    %v4467 = vrot.slane %v4282, %v4466
    %vm4468 = vcmask 720512
    %v4469 = vsel %vm4468, %v4467, %v4462
    %v4470 = vadd.s32 %v4395, 4294967208
    %v4471 = vlaneseq
    %v4472 = vshrl.u32 %v4471, 7
    %v4473 = vsub.s32 %v4470, %v4472
    %v4474 = vrot.slane %v4285, %v4473
    %vm4475 = vcmask 786112
    %v4476 = vsel %vm4475, %v4474, %v4469
    %v4477 = vadd.s32 %v4395, 4294967200
    %v4478 = vlaneseq
    %v4479 = vshrl.u32 %v4478, 7
    %v4480 = vsub.s32 %v4477, %v4479
    %v4481 = vrot.slane %v4288, %v4480
    %vm4482 = vcmask 851712
    %v4483 = vsel %vm4482, %v4481, %v4476
    %v4484 = vadd.s32 %v4395, 4294967192
    %v4485 = vlaneseq
    %v4486 = vshrl.u32 %v4485, 7
    %v4487 = vsub.s32 %v4484, %v4486
    %v4488 = vrot.slane %v4291, %v4487
    %vm4489 = vcmask 917312
    %v4490 = vsel %vm4489, %v4488, %v4483
    %v4491 = vadd.s32 %v4395, 4294967184
    %v4492 = vlaneseq
    %v4493 = vshrl.u32 %v4492, 7
    %v4494 = vsub.s32 %v4491, %v4493
    %v4495 = vrot.slane %v4294, %v4494
    %vm4496 = vcmask 982912
    %v4497 = vsel %vm4496, %v4495, %v4490
    %v4498 = vadd.s32 %v4395, 4294967176
    %v4499 = vlaneseq
    %v4500 = vshrl.u32 %v4499, 7
    %v4501 = vsub.s32 %v4498, %v4500
    %v4502 = vrot.slane %v4297, %v4501
    %vm4503 = vcmask 1048512
    %v4504 = vsel %vm4503, %v4502, %v4497
    %v4505 = vlaneseq
    %v4506 = vshrl.u32 %v4505, 7
    %v4507 = vsub.s32 %v4395, %v4506
    %v4508 = vrot.slane %v4300, %v4507
    %v4509 = vlaneseq
    %v4510 = vshrl.u32 %v4509, 7
    %v4511 = vsub.s32 %v4400, %v4510
    %v4512 = vrot.slane %v4303, %v4511
    %v4513 = vsel %vm4405, %v4512, %v4508
    %v4514 = vlaneseq
    %v4515 = vshrl.u32 %v4514, 7
    %v4516 = vsub.s32 %v4407, %v4515
    %v4517 = vrot.slane %v4306, %v4516
    %v4518 = vsel %vm4412, %v4517, %v4513
    %v4519 = vlaneseq
    %v4520 = vshrl.u32 %v4519, 7
    %v4521 = vsub.s32 %v4414, %v4520
    %v4522 = vrot.slane %v4309, %v4521
    %v4523 = vsel %vm4419, %v4522, %v4518
    %v4524 = vlaneseq
    %v4525 = vshrl.u32 %v4524, 7
    %v4526 = vsub.s32 %v4421, %v4525
    %v4527 = vrot.slane %v4312, %v4526
    %v4528 = vsel %vm4426, %v4527, %v4523
    %v4529 = vlaneseq
    %v4530 = vshrl.u32 %v4529, 7
    %v4531 = vsub.s32 %v4428, %v4530
    %v4532 = vrot.slane %v4315, %v4531
    %v4533 = vsel %vm4433, %v4532, %v4528
    %v4534 = vlaneseq
    %v4535 = vshrl.u32 %v4534, 7
    %v4536 = vsub.s32 %v4435, %v4535
    %v4537 = vrot.slane %v4318, %v4536
    %v4538 = vsel %vm4440, %v4537, %v4533
    %v4539 = vlaneseq
    %v4540 = vshrl.u32 %v4539, 7
    %v4541 = vsub.s32 %v4442, %v4540
    %v4542 = vrot.slane %v4321, %v4541
    %v4543 = vsel %vm4447, %v4542, %v4538
    %v4544 = vlaneseq
    %v4545 = vshrl.u32 %v4544, 7
    %v4546 = vsub.s32 %v4449, %v4545
    %v4547 = vrot.slane %v4324, %v4546
    %v4548 = vsel %vm4454, %v4547, %v4543
    %v4549 = vlaneseq
    %v4550 = vshrl.u32 %v4549, 7
    %v4551 = vsub.s32 %v4456, %v4550
    %v4552 = vrot.slane %v4327, %v4551
    %v4553 = vsel %vm4461, %v4552, %v4548
    %v4554 = vlaneseq
    %v4555 = vshrl.u32 %v4554, 7
    %v4556 = vsub.s32 %v4463, %v4555
    %v4557 = vrot.slane %v4330, %v4556
    %v4558 = vsel %vm4468, %v4557, %v4553
    %v4559 = vlaneseq
    %v4560 = vshrl.u32 %v4559, 7
    %v4561 = vsub.s32 %v4470, %v4560
    %v4562 = vrot.slane %v4333, %v4561
    %v4563 = vsel %vm4475, %v4562, %v4558
    %v4564 = vlaneseq
    %v4565 = vshrl.u32 %v4564, 7
    %v4566 = vsub.s32 %v4477, %v4565
    %v4567 = vrot.slane %v4336, %v4566
    %v4568 = vsel %vm4482, %v4567, %v4563
    %v4569 = vlaneseq
    %v4570 = vshrl.u32 %v4569, 7
    %v4571 = vsub.s32 %v4484, %v4570
    %v4572 = vrot.slane %v4339, %v4571
    %v4573 = vsel %vm4489, %v4572, %v4568
    %v4574 = vlaneseq
    %v4575 = vshrl.u32 %v4574, 7
    %v4576 = vsub.s32 %v4491, %v4575
    %v4577 = vrot.slane %v4342, %v4576
    %v4578 = vsel %vm4496, %v4577, %v4573
    %v4579 = vlaneseq
    %v4580 = vshrl.u32 %v4579, 7
    %v4581 = vsub.s32 %v4498, %v4580
    %v4582 = vrot.slane %v4345, %v4581
    %v4583 = vsel %vm4503, %v4582, %v4578
    %v4584 = vlaneseq
    %v4585 = vshrl.u32 %v4584, 7
    %v4586 = vsub.s32 %v4395, %v4585
    %v4587 = vrot.slane %v4348, %v4586
    %v4588 = vlaneseq
    %v4589 = vshrl.u32 %v4588, 7
    %v4590 = vsub.s32 %v4400, %v4589
    %v4591 = vrot.slane %v4351, %v4590
    %v4592 = vsel %vm4405, %v4591, %v4587
    %v4593 = vlaneseq
    %v4594 = vshrl.u32 %v4593, 7
    %v4595 = vsub.s32 %v4407, %v4594
    %v4596 = vrot.slane %v4354, %v4595
    %v4597 = vsel %vm4412, %v4596, %v4592
    %v4598 = vlaneseq
    %v4599 = vshrl.u32 %v4598, 7
    %v4600 = vsub.s32 %v4414, %v4599
    %v4601 = vrot.slane %v4357, %v4600
    %v4602 = vsel %vm4419, %v4601, %v4597
    %v4603 = vlaneseq
    %v4604 = vshrl.u32 %v4603, 7
    %v4605 = vsub.s32 %v4421, %v4604
    %v4606 = vrot.slane %v4360, %v4605
    %v4607 = vsel %vm4426, %v4606, %v4602
    %v4608 = vlaneseq
    %v4609 = vshrl.u32 %v4608, 7
    %v4610 = vsub.s32 %v4428, %v4609
    %v4611 = vrot.slane %v4363, %v4610
    %v4612 = vsel %vm4433, %v4611, %v4607
    %v4613 = vlaneseq
    %v4614 = vshrl.u32 %v4613, 7
    %v4615 = vsub.s32 %v4435, %v4614
    %v4616 = vrot.slane %v4366, %v4615
    %v4617 = vsel %vm4440, %v4616, %v4612
    %v4618 = vlaneseq
    %v4619 = vshrl.u32 %v4618, 7
    %v4620 = vsub.s32 %v4442, %v4619
    %v4621 = vrot.slane %v4369, %v4620
    %v4622 = vsel %vm4447, %v4621, %v4617
    %v4623 = vlaneseq
    %v4624 = vshrl.u32 %v4623, 7
    %v4625 = vsub.s32 %v4449, %v4624
    %v4626 = vrot.slane %v4372, %v4625
    %v4627 = vsel %vm4454, %v4626, %v4622
    %v4628 = vlaneseq
    %v4629 = vshrl.u32 %v4628, 7
    %v4630 = vsub.s32 %v4456, %v4629
    %v4631 = vrot.slane %v4375, %v4630
    %v4632 = vsel %vm4461, %v4631, %v4627
    %v4633 = vlaneseq
    %v4634 = vshrl.u32 %v4633, 7
    %v4635 = vsub.s32 %v4463, %v4634
    %v4636 = vrot.slane %v4378, %v4635
    %v4637 = vsel %vm4468, %v4636, %v4632
    %v4638 = vlaneseq
    %v4639 = vshrl.u32 %v4638, 7
    %v4640 = vsub.s32 %v4470, %v4639
    %v4641 = vrot.slane %v4381, %v4640
    %v4642 = vsel %vm4475, %v4641, %v4637
    %v4643 = vlaneseq
    %v4644 = vshrl.u32 %v4643, 7
    %v4645 = vsub.s32 %v4477, %v4644
    %v4646 = vrot.slane %v4384, %v4645
    %v4647 = vsel %vm4482, %v4646, %v4642
    %v4648 = vlaneseq
    %v4649 = vshrl.u32 %v4648, 7
    %v4650 = vsub.s32 %v4484, %v4649
    %v4651 = vrot.slane %v4387, %v4650
    %v4652 = vsel %vm4489, %v4651, %v4647
    %v4653 = vlaneseq
    %v4654 = vshrl.u32 %v4653, 7
    %v4655 = vsub.s32 %v4491, %v4654
    %v4656 = vrot.slane %v4390, %v4655
    %v4657 = vsel %vm4496, %v4656, %v4652
    %v4658 = vlaneseq
    %v4659 = vshrl.u32 %v4658, 7
    %v4660 = vsub.s32 %v4498, %v4659
    %v4661 = vrot.slane %v4393, %v4660
    %v4662 = vsel %vm4503, %v4661, %v4657
    %v4663 = vcombine.low %v4504, %v4583
    %v4665 = vunpack.c.l.s4 1966171168
    %v4666 = vunpack.c.0.s8 %v4665
    %v4667 = vlaneseq
    %v4668 = vshrl.u32 %v4667, 7
    %v4669 = vsub.s32 %v4666, %v4668
    %v4670 = vrot.slane %v4663, %v4669
    %v4672 = vunpack.c.l.s4 1966171168
    %v4673 = vunpack.c.0.s8 %v4672
    %v4674 = vlaneseq
    %v4675 = vshrl.u32 %v4674, 7
    %v4676 = vsub.s32 %v4673, %v4675
    %v4677 = vrot.slane %v4662, %v4676
    %v4678 = vcombine.low %v4670, %v4677
    %v4680 = vunpack.c.l.s4 1966171168
    %v4681 = vunpack.c.0.s8 %v4680
    %v4682 = vlaneseq
    %v4683 = vshrl.u32 %v4682, 7
    %v4684 = vsub.s32 %v4681, %v4683
    %v4685 = vrot.slane %v4678, %v4684
    %v4687 = vlaneseq
    %vm4688 = vcmp.ge.s32.totalorder %v4687, 0
    %vm4689 = vcmp.lt.s32.totalorder %v4687, 384
    %vm4690 = vmand %vm4688, %vm4689
    %4691 = vst.msk [vmem:[#allocation3] sm:$0x7] %vm4690, %v4685
    // Predicated region
    $region14: #{tpu_custom_call.1} parent=1 // pred_check
      _
    $region15: #{tpu_custom_call.1} parent=1 // pred_check_branch
      %4693 = sbr.rel (0) target = $region17
    $region16: #{tpu_custom_call.1} parent=1 // pred_region
      %s4695 = ssub.s32 48, 48
      %4696 = vsyncadd [#allocation4], %s4695
      %s4698 = sshll.u32 [#allocation3], 4
      %s4699 = int_to_ptr.vmem [resolvable:$true] %s4698
      %4701 = dma.vmem_to_hbm [thread:$0]  %s4699, 48, %s3, [#allocation4]
    $region17: #{tpu_custom_call.1} parent=1 // pred_fallthru
      _
    // Predicated region
    $region18: #{tpu_custom_call.1} parent=1 // pred_check
      _
    $region19: #{tpu_custom_call.1} parent=1 // pred_check_branch
      %4703 = sbr.rel (0) target = $region21
    $region20: #{tpu_custom_call.1} parent=1 // pred_region
      %4704 = dma.done [#allocation4], 48
    $region21: #{tpu_custom_call.1} parent=1 // pred_fallthru
      _
    %4705 = vsyncpa [#allocation4], 1

</llo_original>
